<compile_context>
chip_gen: v7x
topology: tpu7x:2x2x1
jax: 0.10.0
libtpu: 0.0.40
codegen_flags: <defaults>
</compile_context>

<pallas_src>
from typing import NamedTuple

import jax
import jax.numpy as jnp
from jax.experimental import pallas as pl
from jax.experimental.pallas import tpu as pltpu

# ----------------------------- MANO constants ------------------------------
NUM_VERTS = 778
NUM_BETAS = 10
NUM_JOINTS = 16                       # 1 global + 15 hand joints (MANO internal)
NUM_HAND_POSE = 45                    # use_pca=False -> raw axis-angle (15 * 3)
NUM_POSE_FEAT = (NUM_JOINTS - 1) * 9  # 135
NUM_FEAT = NUM_BETAS + NUM_POSE_FEAT  # 145
NUM_OUT_JOINTS = 21
PARENTS = (-1, 0, 1, 2, 0, 4, 5, 0, 7, 8, 0, 10, 11, 0, 13, 14)

VP = 896                              # vertex lane axis padded to 7*128
NV3P = 3 * VP                         # 2688 (planar: column = r*VP + i)
JBLK = 128                            # padded rest-joint column block (48 used)
MAX_CHUNK = 64                        # batch rows per grid step (cap)


def _round_up(x, m):
    return ((x + m - 1) // m) * m


# ------------------------------ Pallas kernels ------------------------------
def _blend_kernel(feat_ref, w_ref, tmpl_ref, vposed_ref, j_ref):
    # feat: (Bc, 145) f32 = [betas | pose_feature]
    # w:    (145, 3*VP + 128) bf16 = [shapedirs; posedirs] columns, with the
    #       pre-composed rest-joint dirs packed into the last 128 columns.
    # tmpl: (1, 3*VP + 128) f32 = [v_template planar | j_template | 0]
    feat = feat_ref[...].astype(w_ref.dtype)
    out = jnp.dot(feat, w_ref[...], preferred_element_type=jnp.float32)
    out = out + tmpl_ref[...]                       # (Bc, 3*VP + 128)
    vposed_ref[...] = out[:, :NV3P]                 # lane-aligned split (2688=21*128)
    j_ref[...] = out[:, NV3P:]                      # (Bc, 128), first 48 cols used


def blend_pallas(params, feat, Bc):
    Bpad = feat.shape[0]
    nchunks = Bpad // Bc
    return pl.pallas_call(
        _blend_kernel,
        out_shape=(jax.ShapeDtypeStruct((Bpad, NV3P), jnp.float32),
                   jax.ShapeDtypeStruct((Bpad, JBLK), jnp.float32)),
        grid=(nchunks,),
        in_specs=[pl.BlockSpec((Bc, NUM_FEAT), lambda c: (c, 0)),
                  pl.BlockSpec((NUM_FEAT, NV3P + JBLK), lambda c: (0, 0)),
                  pl.BlockSpec((1, NV3P + JBLK), lambda c: (0, 0))],
        out_specs=(pl.BlockSpec((Bc, NV3P), lambda c: (c, 0)),
                   pl.BlockSpec((Bc, JBLK), lambda c: (c, 0))),
        compiler_params=pltpu.CompilerParams(dimension_semantics=("parallel",)),
    )(feat, params.blend_w, params.blend_tmpl)


def _skin_kernel(a_ref, w_ref, jr_ref, v_ref, t_ref, verts_ref, joints_ref):
    # a:  (12*Bc, 16) f32, row k*Bc + b holds A'[b, r, c] with k = 4*r + c
    # w:  (16, VP) lbs weights transposed (zero-padded verts)
    # jr: (VP, 21) 21-joint regressor transposed (zero-padded verts)
    # v:  (Bc, 3*VP) posed rest verts, planar
    # t:  (Bc, 3) global translation
    # outputs: verts (Bc, 3*VP) planar, joints (3, Bc, 21)
    Bc = v_ref.shape[0]
    w = w_ref[...]
    jr = jr_ref[...]
    v = v_ref[...]
    t = t_ref[...]
    vx = v[:, 0 * VP:1 * VP]
    vy = v[:, 1 * VP:2 * VP]
    vz = v[:, 2 * VP:3 * VP]
    for r in range(3):
        # rows [4r*Bc, (4r+4)*Bc) carry transform entries (r, 0..3) for the chunk
        a_r = a_ref[4 * r * Bc:(4 * r + 4) * Bc, :]               # (4*Bc, 16)
        Tr = jnp.dot(a_r, w, preferred_element_type=jnp.float32)  # (4*Bc, VP)
        row = (Tr[0 * Bc:1 * Bc, :] * vx
               + Tr[1 * Bc:2 * Bc, :] * vy
               + Tr[2 * Bc:3 * Bc, :] * vz
               + Tr[3 * Bc:4 * Bc, :]
               + t[:, r:r + 1])                                    # (Bc, VP)
        verts_ref[:, r * VP:(r + 1) * VP] = row
        joints_ref[r, :, :] = jnp.dot(row, jr,
                                      preferred_element_type=jnp.float32)


def skin_pallas(params, a_chunk, v_posed_p, transl_p, Bc):
    Bpad = v_posed_p.shape[0]
    nchunks = Bpad // Bc
    return pl.pallas_call(
        _skin_kernel,
        out_shape=(jax.ShapeDtypeStruct((Bpad, NV3P), jnp.float32),
                   jax.ShapeDtypeStruct((3, Bpad, NUM_OUT_JOINTS), jnp.float32)),
        grid=(nchunks,),
        in_specs=[pl.BlockSpec((None, 12 * Bc, NUM_JOINTS), lambda c: (c, 0, 0)),
                  pl.BlockSpec((NUM_JOINTS, VP), lambda c: (0, 0)),
                  pl.BlockSpec((VP, NUM_OUT_JOINTS), lambda c: (0, 0)),
                  pl.BlockSpec((Bc, NV3P), lambda c: (c, 0)),
                  pl.BlockSpec((Bc, 3), lambda c: (c, 0))],
        out_specs=(pl.BlockSpec((Bc, NV3P), lambda c: (c, 0)),
                   pl.BlockSpec((3, Bc, NUM_OUT_JOINTS), lambda c: (0, c, 0))),
        compiler_params=pltpu.CompilerParams(dimension_semantics=("parallel",)),
    )(a_chunk, params.lbs_weights_T, params.joint_regressor_T, v_posed_p, transl_p)


# ------------------------------ JAX glue (small) -----------------------------
def batch_rodrigues(rot_vecs, eps=1e-8):
    # (N, 3) axis-angle -> (N, 3, 3), matches smplx.lbs.batch_rodrigues
    angle = jnp.linalg.norm(rot_vecs + eps, axis=1, keepdims=True)      # (N,1)
    rot_dir = rot_vecs / angle
    cos = jnp.cos(angle)[:, None, :]                                    # (N,1,1)
    sin = jnp.sin(angle)[:, None, :]
    rx, ry, rz = rot_dir[:, 0], rot_dir[:, 1], rot_dir[:, 2]
    zeros = jnp.zeros_like(rx)
    K = jnp.stack([zeros, -rz, ry, rz, zeros, -rx, -ry, rx, zeros],
                  axis=1).reshape(-1, 3, 3)
    ident = jnp.eye(3, dtype=rot_vecs.dtype)[None]
    return ident + sin * K + (1.0 - cos) * jnp.matmul(K, K)


def batch_rigid_transform(rot_mats, joints, parents):
    # rot_mats: (B,J,3,3), joints: (B,J,3) -> posed joints (B,J,3), rel A (B,J,4,4)
    # TODO(synk): 16-step kinematic chain stays as plain-JAX glue (tiny 4x4
    # matmuls, data-dependent on the parent chain); not moved into the kernels.
    B, J = joints.shape[:2]
    parents = list(parents)
    rel_joints = joints.at[:, 1:].add(-joints[:, jnp.array(parents[1:])])
    bottom = jnp.tile(jnp.array([0., 0., 0., 1.], jnp.float32).reshape(1, 1, 1, 4),
                      (B, J, 1, 1))
    transforms_mat = jnp.concatenate(
        [jnp.concatenate([rot_mats, rel_joints[..., None]], axis=-1), bottom],
        axis=-2)                                                        # (B,J,4,4)
    chain = [transforms_mat[:, 0]]
    for i in range(1, J):
        chain.append(jnp.matmul(chain[parents[i]], transforms_mat[:, i]))
    transforms = jnp.stack(chain, axis=1)                               # (B,J,4,4)
    posed_joints = transforms[:, :, :3, 3]
    joints_hom = jnp.concatenate(
        [joints, jnp.zeros((B, J, 1), joints.dtype)], axis=-1)[..., None]
    rel = transforms - jnp.concatenate(
        [jnp.zeros((B, J, 4, 3), joints.dtype), jnp.matmul(transforms, joints_hom)],
        axis=-1)
    return posed_joints, rel


# ------------------------------ Parameters ----------------------------------
class MANOParams(NamedTuple):
    blend_w: jnp.ndarray            # (145, 3*VP + 128) bf16: [shapedirs; posedirs]
    blend_tmpl: jnp.ndarray         # (1, 3*VP + 128) f32: [v_template | j_template | 0]
    lbs_weights_T: jnp.ndarray      # (16, VP) f32 (zero padded verts)
    joint_regressor: jnp.ndarray    # (21, 778) f32 (fingertip-augmented + reordered)
    joint_regressor_T: jnp.ndarray  # (VP, 21) f32 (zero padded verts)


def init_mano_params(key):
    ks = jax.random.split(key, 5)
    vt3 = 0.1 * jax.random.normal(ks[0], (3, NUM_VERTS), jnp.float32)
    sd3 = 0.01 * jax.random.normal(ks[1], (NUM_BETAS, 3, NUM_VERTS), jnp.float32)
    pd3 = 0.001 * jax.random.normal(ks[2], (NUM_POSE_FEAT, 3, NUM_VERTS), jnp.float32)
    jr16 = jax.random.uniform(ks[3], (NUM_JOINTS, NUM_VERTS), jnp.float32)
    jr16 = jr16 / jnp.sum(jr16, axis=1, keepdims=True)
    lw = jax.random.uniform(ks[4], (NUM_VERTS, NUM_JOINTS), jnp.float32)
    lw = lw / jnp.sum(lw, axis=1, keepdims=True)

    def planar(x):  # (..., 3, 778) -> (..., 3*VP): pad vertex lane axis, flatten
        pad_width = [(0, 0)] * (x.ndim - 1) + [(0, VP - NUM_VERTS)]
        return jnp.pad(x, pad_width).reshape(x.shape[:-2] + (3 * VP,))

    vt_p = planar(vt3).reshape(1, NV3P)                       # (1, 2688)
    sd_p = planar(sd3)                                        # (10, 2688)
    pd_p = planar(pd3)                                        # (135, 2688)

    # Pre-compose the internal 16-joint regressor with the (linear) shape path:
    #   J(betas) = J_reg @ v_shaped = j_template + betas @ j_dirs   (exact algebra)
    j_template = jnp.einsum('ki,ji->kj', vt3, jr16).reshape(1, 3 * NUM_JOINTS)
    j_dirs = jnp.einsum('lki,ji->lkj', sd3, jr16).reshape(NUM_BETAS, 3 * NUM_JOINTS)

    # One packed blend weight: vertex offsets plus rest-joint dirs (bf16 storage,
    # f32 MXU accumulation; documented precision deviation from the f32 torch ref).
    w_verts = jnp.concatenate([sd_p, pd_p], axis=0)           # (145, 2688)
    w_joint = jnp.zeros((NUM_FEAT, JBLK), jnp.float32)
    w_joint = w_joint.at[:NUM_BETAS, :3 * NUM_JOINTS].set(j_dirs)
    blend_w = jnp.concatenate([w_verts, w_joint], axis=1).astype(jnp.bfloat16)

    blend_tmpl = jnp.zeros((1, NV3P + JBLK), jnp.float32)
    blend_tmpl = blend_tmpl.at[:, :NV3P].set(vt_p)
    blend_tmpl = blend_tmpl.at[:, NV3P:NV3P + 3 * NUM_JOINTS].set(j_template)

    lbs_weights_T = jnp.pad(lw.T, ((0, 0), (0, VP - NUM_VERTS)))        # (16, VP)

    # Fingertip one-hot rows, exactly as in the torch wrapper (including the
    # 445-vs-444 middle-fingertip quirk of the reference code).
    def onehot(idx):
        return jax.nn.one_hot(idx, NUM_VERTS, dtype=jnp.float32)[None, :]
    joint_regressor = jnp.concatenate(
        [jr16, onehot(745), onehot(317), onehot(445), onehot(556), onehot(673)],
        axis=0)
    reorder = jnp.array([0, 13, 14, 15, 16, 1, 2, 3, 17, 4, 5, 6, 18,
                         10, 11, 12, 19, 7, 8, 9, 20], dtype=jnp.int32)
    joint_regressor = joint_regressor[reorder]                          # (21, 778)
    joint_regressor_T = jnp.pad(joint_regressor.T,
                                ((0, VP - NUM_VERTS), (0, 0)))          # (VP, 21)

    return MANOParams(blend_w=blend_w, blend_tmpl=blend_tmpl,
                      lbs_weights_T=lbs_weights_T,
                      joint_regressor=joint_regressor,
                      joint_regressor_T=joint_regressor_T)


# ------------------------------ Forward pass ---------------------------------
class MANOOutput(NamedTuple):
    vertices: jnp.ndarray   # (B, 778, 3)
    joints: jnp.ndarray     # (B, 16, 3) internal posed joints (+ transl)


def mano_forward(params, betas, hand_pose, global_orient, transl):
    B = betas.shape[0]
    Bc = min(_round_up(B, 8), MAX_CHUNK)            # sublane-aligned batch chunk
    Bpad = _round_up(B, Bc)
    nchunks = Bpad // Bc

    def padB(x):
        return jnp.pad(x, ((0, Bpad - B), (0, 0))) if Bpad != B else x

    betas_p = padB(betas)
    hand_pose_p = padB(hand_pose)
    go_p = padB(global_orient)
    transl_p = padB(transl)

    # pose -> rotation matrices (tiny, plain JAX glue)
    full_pose = jnp.concatenate([go_p, hand_pose_p], axis=1)             # (Bp, 48)
    rot_mats = batch_rodrigues(full_pose.reshape(-1, 3)).reshape(
        Bpad, NUM_JOINTS, 3, 3)
    ident = jnp.eye(3, dtype=jnp.float32)
    pose_feature = (rot_mats[:, 1:] - ident).reshape(Bpad, NUM_POSE_FEAT)
    feat = jnp.concatenate([betas_p, pose_feature], axis=1)              # (Bp, 145)

    # fused shape+pose blendshapes and rest-joint regression (one MXU matmul)
    v_posed_p, j_p = blend_pallas(params, feat, Bc)                      # planar
    J = j_p[:, :3 * NUM_JOINTS].reshape(Bpad, 3, NUM_JOINTS).transpose(0, 2, 1)

    # forward kinematics: 16 chained 4x4 transforms (plain JAX glue)
    posed_joints, rel = batch_rigid_transform(rot_mats, J, PARENTS)
    # A'[b, k, j] = rel[b, j, r, c] with k = 4*r + c; pre-chunk to (nc, 12*Bc, 16)
    # so the kernel can matmul entry-major (4*Bc, 16) slabs without reshapes.
    a_perm = rel[:, :, :3, :].transpose(0, 2, 3, 1).reshape(Bpad, 12, NUM_JOINTS)
    a_chunk = (a_perm.reshape(nchunks, Bc, 12, NUM_JOINTS)
               .transpose(0, 2, 1, 3)
               .reshape(nchunks, 12 * Bc, NUM_JOINTS))

    # fused LBS skinning + transl + 21-joint regression (Pallas)
    verts_p, joints_p = skin_pallas(params, a_chunk, v_posed_p, transl_p, Bc)

    vertices = (verts_p[:B].reshape(B, 3, VP)[:, :, :NUM_VERTS]
                .transpose(0, 2, 1))                                     # (B,778,3)
    joints = joints_p[:, :B, :].transpose(1, 2, 0)                       # (B,21,3)

    # TODO(synk): smplx's VertexJointSelector / joint_mapper extras on
    # outputs.joints are not reproduced; outputs.vertices (the only field
    # used downstream by the wrapper) is computed exactly.
    outputs = MANOOutput(vertices=vertices,
                         joints=posed_joints[:B] + transl[:, None, :])
    return outputs, joints


# ----------------------------------- main ------------------------------------
if __name__ == "__main__":
    key = jax.random.PRNGKey(0)
    kp, kb, kh, kg, kt = jax.random.split(key, 5)
    params = init_mano_params(kp)

    B = 2
    betas = 0.5 * jax.random.normal(kb, (B, NUM_BETAS), jnp.float32)
    hand_pose = 0.2 * jax.random.normal(kh, (B, NUM_HAND_POSE), jnp.float32)
    global_orient = 0.2 * jax.random.normal(kg, (B, 3), jnp.float32)
    transl = 0.1 * jax.random.normal(kt, (B, 3), jnp.float32)

    outputs, joints = jax.jit(mano_forward)(params, betas, hand_pose,
                                            global_orient, transl)
    jax.block_until_ready(joints)

    # sanity check the fused in-kernel 21-joint regression against a plain-JAX
    # einsum on the produced vertices (same contraction the torch wrapper does)
    ref_joints = jnp.einsum('bik,ji->bjk', outputs.vertices, params.joint_regressor)
    assert outputs.vertices.shape == (B, NUM_VERTS, 3)
    assert joints.shape == (B, NUM_OUT_JOINTS, 3)
    assert jnp.allclose(joints, ref_joints, atol=1e-4, rtol=1e-4)
    print("KERNEL_OK")
</pallas_src>

<mosaic_0001>
module attributes {stable_mosaic.version = 11 : i64} {
  func.func @_blend_kernel(%arg0: i32, %arg1: memref<8x145xf32, #tpu.memory_space<vmem>>, %arg2: memref<145x2816xbf16, #tpu.memory_space<vmem>>, %arg3: memref<1x2816xf32, #tpu.memory_space<vmem>>, %arg4: memref<8x2688xf32, #tpu.memory_space<vmem>>, %arg5: memref<8x128xf32, #tpu.memory_space<vmem>>) attributes {dimension_semantics = [#tpu.dimension_semantics<parallel>], iteration_bounds = array<i64: 1>, scalar_prefetch = 0 : i64, scratch_operands = 0 : i64, tpu.core_type = #tpu.core_type<tc>, window_params = [{transform_indices = @transform_0, window_bounds = array<i64: 8, 145>}, {pipeline_mode = #tpu.pipeline_mode<synchronous>, transform_indices = @transform_1, window_bounds = array<i64: 145, 2816>}, {pipeline_mode = #tpu.pipeline_mode<synchronous>, transform_indices = @transform_2, window_bounds = array<i64: 1, 2816>}, {transform_indices = @transform_3, window_bounds = array<i64: 8, 2688>}, {transform_indices = @transform_4, window_bounds = array<i64: 8, 128>}]} {
    %c0 = arith.constant 0 : index
    %c0_0 = arith.constant 0 : index
    %0 = vector.load %arg1[%c0, %c0_0] : memref<8x145xf32, #tpu.memory_space<vmem>>, vector<8x145xf32>
    %1 = arith.truncf %0 : vector<8x145xf32> to vector<8x145xbf16>
    %c0_1 = arith.constant 0 : index
    %c0_2 = arith.constant 0 : index
    %2 = vector.load %arg2[%c0_1, %c0_2] : memref<145x2816xbf16, #tpu.memory_space<vmem>>, vector<145x2816xbf16>
    %cst = arith.constant dense<0.000000e+00> : vector<8x2816xf32>
    %3 = tpu.matmul %1, %2, %cst {dimension_numbers = #tpu.dot_dimension_numbers<[1], [0], [0], [1], [0, 0, 1, 1], [], []>} : vector<8x145xbf16>, vector<145x2816xbf16>, vector<8x2816xf32> -> vector<8x2816xf32>
    %c0_3 = arith.constant 0 : index
    %c0_4 = arith.constant 0 : index
    %4 = vector.load %arg3[%c0_3, %c0_4] : memref<1x2816xf32, #tpu.memory_space<vmem>>, vector<1x2816xf32>
    %5 = vector.broadcast %4 : vector<1x2816xf32> to vector<8x2816xf32>
    %6 = arith.addf %3, %5 : vector<8x2816xf32>
    %7 = vector.extract_strided_slice %6 {offsets = [0, 0], sizes = [8, 2688], strides = [1, 1]} : vector<8x2816xf32> to vector<8x2688xf32>
    %c0_5 = arith.constant 0 : index
    %c0_6 = arith.constant 0 : index
    %8 = vector.load %arg4[%c0_5, %c0_6] : memref<8x2688xf32, #tpu.memory_space<vmem>>, vector<8x2688xf32>
    tpu.vector_store %arg4[%c0_5, %c0_6], %7 {strides = array<i32>} : memref<8x2688xf32, #tpu.memory_space<vmem>>, vector<8x2688xf32>,
    %9 = vector.extract_strided_slice %6 {offsets = [0, 2688], sizes = [8, 128], strides = [1, 1]} : vector<8x2816xf32> to vector<8x128xf32>
    %c0_7 = arith.constant 0 : index
    %c0_8 = arith.constant 0 : index
    %10 = vector.load %arg5[%c0_7, %c0_8] : memref<8x128xf32, #tpu.memory_space<vmem>>, vector<8x128xf32>
    tpu.vector_store %arg5[%c0_7, %c0_8], %9 {strides = array<i32>} : memref<8x128xf32, #tpu.memory_space<vmem>>, vector<8x128xf32>,
    return
  }
  func.func @transform_0(%arg0: i32) -> (i32, i32) {
    %c0_i32 = arith.constant 0 : i32
    %c0_i32_0 = arith.constant 0 : i32
    return %arg0, %c0_i32 : i32, i32
  }
  func.func @transform_1(%arg0: i32) -> (i32, i32) {
    %c0_i32 = arith.constant 0 : i32
    %c0_i32_0 = arith.constant 0 : i32
    %c0_i32_1 = arith.constant 0 : i32
    return %c0_i32, %c0_i32_0 : i32, i32
  }
  func.func @transform_2(%arg0: i32) -> (i32, i32) {
    %c0_i32 = arith.constant 0 : i32
    %c0_i32_0 = arith.constant 0 : i32
    %c0_i32_1 = arith.constant 0 : i32
    return %c0_i32, %c0_i32_0 : i32, i32
  }
  func.func @transform_3(%arg0: i32) -> (i32, i32) {
    %c0_i32 = arith.constant 0 : i32
    %c0_i32_0 = arith.constant 0 : i32
    return %arg0, %c0_i32 : i32, i32
  }
  func.func @transform_4(%arg0: i32) -> (i32, i32) {
    %c0_i32 = arith.constant 0 : i32
    %c0_i32_0 = arith.constant 0 : i32
    return %arg0, %c0_i32 : i32, i32
  }
}

module attributes {stable_mosaic.version = 11 : i64} {
  func.func @_skin_kernel(%arg0: i32, %arg1: memref<1x96x16xf32, #tpu.memory_space<vmem>>, %arg2: memref<16x896xf32, #tpu.memory_space<vmem>>, %arg3: memref<896x21xf32, #tpu.memory_space<vmem>>, %arg4: memref<8x2688xf32, #tpu.memory_space<vmem>>, %arg5: memref<8x3xf32, #tpu.memory_space<vmem>>, %arg6: memref<8x2688xf32, #tpu.memory_space<vmem>>, %arg7: memref<3x8x21xf32, #tpu.memory_space<vmem>>) attributes {dimension_semantics = [#tpu.dimension_semantics<parallel>], iteration_bounds = array<i64: 1>, scalar_prefetch = 0 : i64, scratch_operands = 0 : i64, tpu.core_type = #tpu.core_type<tc>, window_params = [{transform_indices = @transform_0, window_bounds = array<i64: 1, 96, 16>}, {pipeline_mode = #tpu.pipeline_mode<synchronous>, transform_indices = @transform_1, window_bounds = array<i64: 16, 896>}, {pipeline_mode = #tpu.pipeline_mode<synchronous>, transform_indices = @transform_2, window_bounds = array<i64: 896, 21>}, {transform_indices = @transform_3, window_bounds = array<i64: 8, 2688>}, {transform_indices = @transform_4, window_bounds = array<i64: 8, 3>}, {transform_indices = @transform_5, window_bounds = array<i64: 8, 2688>}, {transform_indices = @transform_6, window_bounds = array<i64: 3, 8, 21>}]} {
    %c0 = arith.constant 0 : index
    %c0_0 = arith.constant 0 : index
    %0 = vector.load %arg2[%c0, %c0_0] : memref<16x896xf32, #tpu.memory_space<vmem>>, vector<16x896xf32>
    %c0_1 = arith.constant 0 : index
    %c0_2 = arith.constant 0 : index
    %1 = vector.load %arg3[%c0_1, %c0_2] : memref<896x21xf32, #tpu.memory_space<vmem>>, vector<896x21xf32>
    %c0_3 = arith.constant 0 : index
    %c0_4 = arith.constant 0 : index
    %2 = vector.load %arg4[%c0_3, %c0_4] : memref<8x2688xf32, #tpu.memory_space<vmem>>, vector<8x2688xf32>
    %c0_5 = arith.constant 0 : index
    %c0_6 = arith.constant 0 : index
    %3 = vector.load %arg5[%c0_5, %c0_6] : memref<8x3xf32, #tpu.memory_space<vmem>>, vector<8x3xf32>
    %4 = vector.extract_strided_slice %2 {offsets = [0, 0], sizes = [8, 896], strides = [1, 1]} : vector<8x2688xf32> to vector<8x896xf32>
    %5 = vector.extract_strided_slice %2 {offsets = [0, 896], sizes = [8, 896], strides = [1, 1]} : vector<8x2688xf32> to vector<8x896xf32>
    %6 = vector.extract_strided_slice %2 {offsets = [0, 1792], sizes = [8, 896], strides = [1, 1]} : vector<8x2688xf32> to vector<8x896xf32>
    %c0_7 = arith.constant 0 : index
    %c0_8 = arith.constant 0 : index
    %c0_9 = arith.constant 0 : index
    %7 = vector.load %arg1[%c0_7, %c0_8, %c0_9] : memref<1x96x16xf32, #tpu.memory_space<vmem>>, vector<1x32x16xf32>
    %8 = vector.shape_cast %7 : vector<1x32x16xf32> to vector<32x16xf32>
    %cst = arith.constant dense<0.000000e+00> : vector<32x896xf32>
    %9 = tpu.matmul %8, %0, %cst {dimension_numbers = #tpu.dot_dimension_numbers<[1], [0], [0], [1], [0, 0, 1, 1], [], []>} : vector<32x16xf32>, vector<16x896xf32>, vector<32x896xf32> -> vector<32x896xf32>
    %10 = vector.extract_strided_slice %9 {offsets = [0, 0], sizes = [8, 896], strides = [1, 1]} : vector<32x896xf32> to vector<8x896xf32>
    %11 = arith.mulf %10, %4 : vector<8x896xf32>
    %12 = vector.extract_strided_slice %9 {offsets = [8, 0], sizes = [8, 896], strides = [1, 1]} : vector<32x896xf32> to vector<8x896xf32>
    %13 = arith.mulf %12, %5 : vector<8x896xf32>
    %14 = arith.addf %11, %13 : vector<8x896xf32>
    %15 = vector.extract_strided_slice %9 {offsets = [16, 0], sizes = [8, 896], strides = [1, 1]} : vector<32x896xf32> to vector<8x896xf32>
    %16 = arith.mulf %15, %6 : vector<8x896xf32>
    %17 = arith.addf %14, %16 : vector<8x896xf32>
    %18 = vector.extract_strided_slice %9 {offsets = [24, 0], sizes = [8, 896], strides = [1, 1]} : vector<32x896xf32> to vector<8x896xf32>
    %19 = arith.addf %17, %18 : vector<8x896xf32>
    %20 = vector.extract_strided_slice %3 {offsets = [0, 0], sizes = [8, 1], strides = [1, 1]} : vector<8x3xf32> to vector<8x1xf32>
    %21 = vector.broadcast %20 : vector<8x1xf32> to vector<8x896xf32>
    %22 = arith.addf %19, %21 : vector<8x896xf32>
    %c0_10 = arith.constant 0 : index
    %c0_11 = arith.constant 0 : index
    %23 = vector.load %arg6[%c0_10, %c0_11] : memref<8x2688xf32, #tpu.memory_space<vmem>>, vector<8x896xf32>
    tpu.vector_store %arg6[%c0_10, %c0_11], %22 {strides = array<i32>} : memref<8x2688xf32, #tpu.memory_space<vmem>>, vector<8x896xf32>,
    %cst_12 = arith.constant dense<0.000000e+00> : vector<8x21xf32>
    %24 = tpu.matmul %22, %1, %cst_12 {dimension_numbers = #tpu.dot_dimension_numbers<[1], [0], [0], [1], [0, 0, 1, 1], [], []>} : vector<8x896xf32>, vector<896x21xf32>, vector<8x21xf32> -> vector<8x21xf32>
    %c0_13 = arith.constant 0 : index
    %c0_14 = arith.constant 0 : index
    %c0_15 = arith.constant 0 : index
    %25 = vector.load %arg7[%c0_13, %c0_14, %c0_15] : memref<3x8x21xf32, #tpu.memory_space<vmem>>, vector<1x8x21xf32>
    %26 = vector.shape_cast %25 : vector<1x8x21xf32> to vector<8x21xf32>
    %27 = vector.shape_cast %24 : vector<8x21xf32> to vector<1x8x21xf32>
    tpu.vector_store %arg7[%c0_13, %c0_14, %c0_15], %27 {strides = array<i32>} : memref<3x8x21xf32, #tpu.memory_space<vmem>>, vector<1x8x21xf32>,
    %c0_16 = arith.constant 0 : index
    %c32 = arith.constant 32 : index
    %c0_17 = arith.constant 0 : index
    %28 = vector.load %arg1[%c0_16, %c32, %c0_17] : memref<1x96x16xf32, #tpu.memory_space<vmem>>, vector<1x32x16xf32>
    %29 = vector.shape_cast %28 : vector<1x32x16xf32> to vector<32x16xf32>
    %cst_18 = arith.constant dense<0.000000e+00> : vector<32x896xf32>
    %30 = tpu.matmul %29, %0, %cst_18 {dimension_numbers = #tpu.dot_dimension_numbers<[1], [0], [0], [1], [0, 0, 1, 1], [], []>} : vector<32x16xf32>, vector<16x896xf32>, vector<32x896xf32> -> vector<32x896xf32>
    %31 = vector.extract_strided_slice %30 {offsets = [0, 0], sizes = [8, 896], strides = [1, 1]} : vector<32x896xf32> to vector<8x896xf32>
    %32 = arith.mulf %31, %4 : vector<8x896xf32>
    %33 = vector.extract_strided_slice %30 {offsets = [8, 0], sizes = [8, 896], strides = [1, 1]} : vector<32x896xf32> to vector<8x896xf32>
    %34 = arith.mulf %33, %5 : vector<8x896xf32>
    %35 = arith.addf %32, %34 : vector<8x896xf32>
    %36 = vector.extract_strided_slice %30 {offsets = [16, 0], sizes = [8, 896], strides = [1, 1]} : vector<32x896xf32> to vector<8x896xf32>
    %37 = arith.mulf %36, %6 : vector<8x896xf32>
    %38 = arith.addf %35, %37 : vector<8x896xf32>
    %39 = vector.extract_strided_slice %30 {offsets = [24, 0], sizes = [8, 896], strides = [1, 1]} : vector<32x896xf32> to vector<8x896xf32>
    %40 = arith.addf %38, %39 : vector<8x896xf32>
    %41 = vector.extract_strided_slice %3 {offsets = [0, 1], sizes = [8, 1], strides = [1, 1]} : vector<8x3xf32> to vector<8x1xf32>
    %42 = vector.broadcast %41 : vector<8x1xf32> to vector<8x896xf32>
    %43 = arith.addf %40, %42 : vector<8x896xf32>
    %c0_19 = arith.constant 0 : index
    %c896 = arith.constant 896 : index
    %44 = vector.load %arg6[%c0_19, %c896] : memref<8x2688xf32, #tpu.memory_space<vmem>>, vector<8x896xf32>
    tpu.vector_store %arg6[%c0_19, %c896], %43 {strides = array<i32>} : memref<8x2688xf32, #tpu.memory_space<vmem>>, vector<8x896xf32>,
    %cst_20 = arith.constant dense<0.000000e+00> : vector<8x21xf32>
    %45 = tpu.matmul %43, %1, %cst_20 {dimension_numbers = #tpu.dot_dimension_numbers<[1], [0], [0], [1], [0, 0, 1, 1], [], []>} : vector<8x896xf32>, vector<896x21xf32>, vector<8x21xf32> -> vector<8x21xf32>
    %c1 = arith.constant 1 : index
    %c0_21 = arith.constant 0 : index
    %c0_22 = arith.constant 0 : index
    %46 = vector.load %arg7[%c1, %c0_21, %c0_22] : memref<3x8x21xf32, #tpu.memory_space<vmem>>, vector<1x8x21xf32>
    %47 = vector.shape_cast %46 : vector<1x8x21xf32> to vector<8x21xf32>
    %48 = vector.shape_cast %45 : vector<8x21xf32> to vector<1x8x21xf32>
    tpu.vector_store %arg7[%c1, %c0_21, %c0_22], %48 {strides = array<i32>} : memref<3x8x21xf32, #tpu.memory_space<vmem>>, vector<1x8x21xf32>,
    %c0_23 = arith.constant 0 : index
    %c64 = arith.constant 64 : index
    %c0_24 = arith.constant 0 : index
    %49 = vector.load %arg1[%c0_23, %c64, %c0_24] : memref<1x96x16xf32, #tpu.memory_space<vmem>>, vector<1x32x16xf32>
    %50 = vector.shape_cast %49 : vector<1x32x16xf32> to vector<32x16xf32>
    %cst_25 = arith.constant dense<0.000000e+00> : vector<32x896xf32>
    %51 = tpu.matmul %50, %0, %cst_25 {dimension_numbers = #tpu.dot_dimension_numbers<[1], [0], [0], [1], [0, 0, 1, 1], [], []>} : vector<32x16xf32>, vector<16x896xf32>, vector<32x896xf32> -> vector<32x896xf32>
    %52 = vector.extract_strided_slice %51 {offsets = [0, 0], sizes = [8, 896], strides = [1, 1]} : vector<32x896xf32> to vector<8x896xf32>
    %53 = arith.mulf %52, %4 : vector<8x896xf32>
    %54 = vector.extract_strided_slice %51 {offsets = [8, 0], sizes = [8, 896], strides = [1, 1]} : vector<32x896xf32> to vector<8x896xf32>
    %55 = arith.mulf %54, %5 : vector<8x896xf32>
    %56 = arith.addf %53, %55 : vector<8x896xf32>
    %57 = vector.extract_strided_slice %51 {offsets = [16, 0], sizes = [8, 896], strides = [1, 1]} : vector<32x896xf32> to vector<8x896xf32>
    %58 = arith.mulf %57, %6 : vector<8x896xf32>
    %59 = arith.addf %56, %58 : vector<8x896xf32>
    %60 = vector.extract_strided_slice %51 {offsets = [24, 0], sizes = [8, 896], strides = [1, 1]} : vector<32x896xf32> to vector<8x896xf32>
    %61 = arith.addf %59, %60 : vector<8x896xf32>
    %62 = vector.extract_strided_slice %3 {offsets = [0, 2], sizes = [8, 1], strides = [1, 1]} : vector<8x3xf32> to vector<8x1xf32>
    %63 = vector.broadcast %62 : vector<8x1xf32> to vector<8x896xf32>
    %64 = arith.addf %61, %63 : vector<8x896xf32>
    %c0_26 = arith.constant 0 : index
    %c1792 = arith.constant 1792 : index
    %65 = vector.load %arg6[%c0_26, %c1792] : memref<8x2688xf32, #tpu.memory_space<vmem>>, vector<8x896xf32>
    tpu.vector_store %arg6[%c0_26, %c1792], %64 {strides = array<i32>} : memref<8x2688xf32, #tpu.memory_space<vmem>>, vector<8x896xf32>,
    %cst_27 = arith.constant dense<0.000000e+00> : vector<8x21xf32>
    %66 = tpu.matmul %64, %1, %cst_27 {dimension_numbers = #tpu.dot_dimension_numbers<[1], [0], [0], [1], [0, 0, 1, 1], [], []>} : vector<8x896xf32>, vector<896x21xf32>, vector<8x21xf32> -> vector<8x21xf32>
    %c2 = arith.constant 2 : index
    %c0_28 = arith.constant 0 : index
    %c0_29 = arith.constant 0 : index
    %67 = vector.load %arg7[%c2, %c0_28, %c0_29] : memref<3x8x21xf32, #tpu.memory_space<vmem>>, vector<1x8x21xf32>
    %68 = vector.shape_cast %67 : vector<1x8x21xf32> to vector<8x21xf32>
    %69 = vector.shape_cast %66 : vector<8x21xf32> to vector<1x8x21xf32>
    tpu.vector_store %arg7[%c2, %c0_28, %c0_29], %69 {strides = array<i32>} : memref<3x8x21xf32, #tpu.memory_space<vmem>>, vector<1x8x21xf32>,
    return
  }
  func.func @transform_0(%arg0: i32) -> (i32, i32, i32) {
    %c0_i32 = arith.constant 0 : i32
    %c0_i32_0 = arith.constant 0 : i32
    %c0_i32_1 = arith.constant 0 : i32
    return %arg0, %c0_i32, %c0_i32_0 : i32, i32, i32
  }
  func.func @transform_1(%arg0: i32) -> (i32, i32) {
    %c0_i32 = arith.constant 0 : i32
    %c0_i32_0 = arith.constant 0 : i32
    %c0_i32_1 = arith.constant 0 : i32
    return %c0_i32, %c0_i32_0 : i32, i32
  }
  func.func @transform_2(%arg0: i32) -> (i32, i32) {
    %c0_i32 = arith.constant 0 : i32
    %c0_i32_0 = arith.constant 0 : i32
    %c0_i32_1 = arith.constant 0 : i32
    return %c0_i32, %c0_i32_0 : i32, i32
  }
  func.func @transform_3(%arg0: i32) -> (i32, i32) {
    %c0_i32 = arith.constant 0 : i32
    %c0_i32_0 = arith.constant 0 : i32
    return %arg0, %c0_i32 : i32, i32
  }
  func.func @transform_4(%arg0: i32) -> (i32, i32) {
    %c0_i32 = arith.constant 0 : i32
    %c0_i32_0 = arith.constant 0 : i32
    return %arg0, %c0_i32 : i32, i32
  }
  func.func @transform_5(%arg0: i32) -> (i32, i32) {
    %c0_i32 = arith.constant 0 : i32
    %c0_i32_0 = arith.constant 0 : i32
    return %arg0, %c0_i32 : i32, i32
  }
  func.func @transform_6(%arg0: i32) -> (i32, i32, i32) {
    %c0_i32 = arith.constant 0 : i32
    %c0_i32_0 = arith.constant 0 : i32
    %c0_i32_1 = arith.constant 0 : i32
    return %c0_i32, %arg0, %c0_i32_0 : i32, i32, i32
  }
}

</mosaic_0001>

<llo_original>
// kernel: mano_forward.2
$region0: #{mano_forward.2}
  #allocation0 [shape = 'u32[]', space=smem, size = 0x4, offset = 0x4, fixed_abs, tag = 'smem constant byte address 0x4 - core index']
  #allocation1 [shape = 'u32[144,128]{1,0:T(1,128)}', space=vmem, size = 0x12000, scoped, tag = 'internal scratch']
  %s0 = inlined_call_operand.vmem [shape: f32[8,145], index: 0, kind: input, shape index: {}]
  %s1 = inlined_call_operand.vmem [shape: bf16[145,2816], index: 1, kind: input, shape index: {}]
  %s2 = inlined_call_operand.vmem [shape: f32[1,2816], index: 2, kind: input, shape index: {}]
  %s3 = inlined_call_operand.vmem [shape: f32[8,2688], index: 3, kind: output, shape index: {0}]
  %s4 = inlined_call_operand.vmem [shape: f32[8,128], index: 4, kind: output, shape index: {1}]
  %5 = xla_tuple %s3, %s4
  %s6 = sld [smem:[#allocation0]]
  $region30: #{mano_forward.2} parent=0
    _
  %s8 = ssub.s32 1, %s6
  %s9 = scalar_select 0, %s8, %s6
  // Predicated region
  $region2: #{mano_forward.2} parent=0 // pred_check
    _
  $region3: #{mano_forward.2} parent=0 // pred_check_branch
    %11 = sbr.rel (0) target = $region5
  $region4: #{mano_forward.2} parent=0 // pred_region
    _
  $region5: #{mano_forward.2} parent=0 // pred_fallthru
    _
  // Predicated region
  $region6: #{mano_forward.2} parent=0 // pred_check
    _
  $region7: #{mano_forward.2} parent=0 // pred_check_branch
    %13 = sbr.rel (0) target = $region9
  $region8: #{mano_forward.2} parent=0 // pred_region
    _
  $region9: #{mano_forward.2} parent=0 // pred_fallthru
    _
  // Predicated region
  $region10: #{mano_forward.2} parent=0 // pred_check
    _
  $region11: #{mano_forward.2} parent=0 // pred_check_branch
    %15 = sbr.rel (0) target = $region13
  $region12: #{mano_forward.2} parent=0 // pred_region
    _
  $region13: #{mano_forward.2} parent=0 // pred_fallthru
    _
  %v17 = vld [vmem:[%s0] sm:$0xff]
  %v18 = vld [vmem:[%s0 + $0x8] sm:$0xff]
  %v19 = vpack.c.bf16 %v17, %v17
  %v20 = vpack.c.bf16 %v18, %v18
  %v21 = vld [vmem:[%s1] sm:$0xff]
  %v22 = vld [vmem:[%s1 + $0x8] sm:$0xff]
  %v23 = vld [vmem:[%s1 + $0x10] sm:$0xff]
  %v24 = vld [vmem:[%s1 + $0x18] sm:$0xff]
  %v25 = vld [vmem:[%s1 + $0x20] sm:$0xff]
  %v26 = vld [vmem:[%s1 + $0x28] sm:$0xff]
  %v27 = vld [vmem:[%s1 + $0x30] sm:$0xff]
  %v28 = vld [vmem:[%s1 + $0x38] sm:$0xff]
  %v29 = vld [vmem:[%s1 + $0x40] sm:$0xff]
  %v30 = vld [vmem:[%s1 + $0x48] sm:$0xff]
  %v31 = vld [vmem:[%s1 + $0x50] sm:$0xff]
  %v32 = vld [vmem:[%s1 + $0x58] sm:$0xff]
  %v33 = vld [vmem:[%s1 + $0x60] sm:$0xff]
  %v34 = vld [vmem:[%s1 + $0x68] sm:$0xff]
  %v35 = vld [vmem:[%s1 + $0x70] sm:$0xff]
  %v36 = vld [vmem:[%s1 + $0x78] sm:$0xff]
  %v37 = vld [vmem:[%s1 + $0x80] sm:$0xff]
  %v38 = vld [vmem:[%s1 + $0x88] sm:$0xff]
  %v39 = vld [vmem:[%s1 + $0x90] sm:$0xff]
  %v40 = vld [vmem:[%s1 + $0x98] sm:$0xff]
  %v41 = vld [vmem:[%s1 + $0xa0] sm:$0xff]
  %v42 = vld [vmem:[%s1 + $0xa8] sm:$0xff]
  %v43 = vld [vmem:[%s1 + $0xb0] sm:$0xff]
  %v44 = vld [vmem:[%s1 + $0xb8] sm:$0xff]
  %v45 = vld [vmem:[%s1 + $0xc0] sm:$0xff]
  %v46 = vld [vmem:[%s1 + $0xc8] sm:$0xff]
  %v47 = vld [vmem:[%s1 + $0xd0] sm:$0xff]
  %v48 = vld [vmem:[%s1 + $0xd8] sm:$0xff]
  %v49 = vld [vmem:[%s1 + $0xe0] sm:$0xff]
  %v50 = vld [vmem:[%s1 + $0xe8] sm:$0xff]
  %v51 = vld [vmem:[%s1 + $0xf0] sm:$0xff]
  %v52 = vld [vmem:[%s1 + $0xf8] sm:$0xff]
  %v53 = vld [vmem:[%s1 + $0x100] sm:$0xff]
  %v54 = vld [vmem:[%s1 + $0x108] sm:$0xff]
  %v55 = vld [vmem:[%s1 + $0x110] sm:$0xff]
  %v56 = vld [vmem:[%s1 + $0x118] sm:$0xff]
  %v57 = vld [vmem:[%s1 + $0x120] sm:$0xff]
  %v58 = vld [vmem:[%s1 + $0x128] sm:$0xff]
  %v59 = vld [vmem:[%s1 + $0x130] sm:$0xff]
  %v60 = vld [vmem:[%s1 + $0x138] sm:$0xff]
  %v61 = vld [vmem:[%s1 + $0x140] sm:$0xff]
  %v62 = vld [vmem:[%s1 + $0x148] sm:$0xff]
  %v63 = vld [vmem:[%s1 + $0x150] sm:$0xff]
  %v64 = vld [vmem:[%s1 + $0x158] sm:$0xff]
  %v65 = vld [vmem:[%s1 + $0x160] sm:$0xff]
  %v66 = vld [vmem:[%s1 + $0x168] sm:$0xff]
  %v67 = vld [vmem:[%s1 + $0x170] sm:$0xff]
  %v68 = vld [vmem:[%s1 + $0x178] sm:$0xff]
  %v69 = vld [vmem:[%s1 + $0x180] sm:$0xff]
  %v70 = vld [vmem:[%s1 + $0x188] sm:$0xff]
  %v71 = vld [vmem:[%s1 + $0x190] sm:$0xff]
  %v72 = vld [vmem:[%s1 + $0x198] sm:$0xff]
  %v73 = vld [vmem:[%s1 + $0x1a0] sm:$0xff]
  %v74 = vld [vmem:[%s1 + $0x1a8] sm:$0xff]
  %v75 = vld [vmem:[%s1 + $0x1b0] sm:$0xff]
  %v76 = vld [vmem:[%s1 + $0x1b8] sm:$0xff]
  %v77 = vld [vmem:[%s1 + $0x1c0] sm:$0xff]
  %v78 = vld [vmem:[%s1 + $0x1c8] sm:$0xff]
  %v79 = vld [vmem:[%s1 + $0x1d0] sm:$0xff]
  %v80 = vld [vmem:[%s1 + $0x1d8] sm:$0xff]
  %v81 = vld [vmem:[%s1 + $0x1e0] sm:$0xff]
  %v82 = vld [vmem:[%s1 + $0x1e8] sm:$0xff]
  %v83 = vld [vmem:[%s1 + $0x1f0] sm:$0xff]
  %v84 = vld [vmem:[%s1 + $0x1f8] sm:$0xff]
  %v85 = vld [vmem:[%s1 + $0x200] sm:$0xff]
  %v86 = vld [vmem:[%s1 + $0x208] sm:$0xff]
  %v87 = vld [vmem:[%s1 + $0x210] sm:$0xff]
  %v88 = vld [vmem:[%s1 + $0x218] sm:$0xff]
  %v89 = vld [vmem:[%s1 + $0x220] sm:$0xff]
  %v90 = vld [vmem:[%s1 + $0x228] sm:$0xff]
  %v91 = vld [vmem:[%s1 + $0x230] sm:$0xff]
  %v92 = vld [vmem:[%s1 + $0x238] sm:$0xff]
  %v93 = vld [vmem:[%s1 + $0x240] sm:$0xff]
  %v94 = vld [vmem:[%s1 + $0x248] sm:$0xff]
  %v95 = vld [vmem:[%s1 + $0x250] sm:$0xff]
  %v96 = vld [vmem:[%s1 + $0x258] sm:$0xff]
  %v97 = vld [vmem:[%s1 + $0x260] sm:$0xff]
  %v98 = vld [vmem:[%s1 + $0x268] sm:$0xff]
  %v99 = vld [vmem:[%s1 + $0x270] sm:$0xff]
  %v100 = vld [vmem:[%s1 + $0x278] sm:$0xff]
  %v101 = vld [vmem:[%s1 + $0x280] sm:$0xff]
  %v102 = vld [vmem:[%s1 + $0x288] sm:$0xff]
  %v103 = vld [vmem:[%s1 + $0x290] sm:$0xff]
  %v104 = vld [vmem:[%s1 + $0x298] sm:$0xff]
  %v105 = vld [vmem:[%s1 + $0x2a0] sm:$0xff]
  %v106 = vld [vmem:[%s1 + $0x2a8] sm:$0xff]
  %v107 = vld [vmem:[%s1 + $0x2b0] sm:$0xff]
  %v108 = vld [vmem:[%s1 + $0x2b8] sm:$0xff]
  %v109 = vld [vmem:[%s1 + $0x2c0] sm:$0xff]
  %v110 = vld [vmem:[%s1 + $0x2c8] sm:$0xff]
  %v111 = vld [vmem:[%s1 + $0x2d0] sm:$0xff]
  %v112 = vld [vmem:[%s1 + $0x2d8] sm:$0xff]
  %v113 = vld [vmem:[%s1 + $0x2e0] sm:$0xff]
  %v114 = vld [vmem:[%s1 + $0x2e8] sm:$0xff]
  %v115 = vld [vmem:[%s1 + $0x2f0] sm:$0xff]
  %v116 = vld [vmem:[%s1 + $0x2f8] sm:$0xff]
  %v117 = vld [vmem:[%s1 + $0x300] sm:$0xff]
  %v118 = vld [vmem:[%s1 + $0x308] sm:$0xff]
  %v119 = vld [vmem:[%s1 + $0x310] sm:$0xff]
  %v120 = vld [vmem:[%s1 + $0x318] sm:$0xff]
  %v121 = vld [vmem:[%s1 + $0x320] sm:$0xff]
  %v122 = vld [vmem:[%s1 + $0x328] sm:$0xff]
  %v123 = vld [vmem:[%s1 + $0x330] sm:$0xff]
  %v124 = vld [vmem:[%s1 + $0x338] sm:$0xff]
  %v125 = vld [vmem:[%s1 + $0x340] sm:$0xff]
  %v126 = vld [vmem:[%s1 + $0x348] sm:$0xff]
  %v127 = vld [vmem:[%s1 + $0x350] sm:$0xff]
  %v128 = vld [vmem:[%s1 + $0x358] sm:$0xff]
  %v129 = vld [vmem:[%s1 + $0x360] sm:$0xff]
  %v130 = vld [vmem:[%s1 + $0x368] sm:$0xff]
  %v131 = vld [vmem:[%s1 + $0x370] sm:$0xff]
  %v132 = vld [vmem:[%s1 + $0x378] sm:$0xff]
  %v133 = vld [vmem:[%s1 + $0x380] sm:$0xff]
  %v134 = vld [vmem:[%s1 + $0x388] sm:$0xff]
  %v135 = vld [vmem:[%s1 + $0x390] sm:$0xff]
  %v136 = vld [vmem:[%s1 + $0x398] sm:$0xff]
  %v137 = vld [vmem:[%s1 + $0x3a0] sm:$0xff]
  %v138 = vld [vmem:[%s1 + $0x3a8] sm:$0xff]
  %v139 = vld [vmem:[%s1 + $0x3b0] sm:$0xff]
  %v140 = vld [vmem:[%s1 + $0x3b8] sm:$0xff]
  %v141 = vld [vmem:[%s1 + $0x3c0] sm:$0xff]
  %v142 = vld [vmem:[%s1 + $0x3c8] sm:$0xff]
  %v143 = vld [vmem:[%s1 + $0x3d0] sm:$0xff]
  %v144 = vld [vmem:[%s1 + $0x3d8] sm:$0xff]
  %v145 = vld [vmem:[%s1 + $0x3e0] sm:$0xff]
  %v146 = vld [vmem:[%s1 + $0x3e8] sm:$0xff]
  %v147 = vld [vmem:[%s1 + $0x3f0] sm:$0xff]
  %v148 = vld [vmem:[%s1 + $0x3f8] sm:$0xff]
  %v149 = vld [vmem:[%s1 + $0x400] sm:$0xff]
  %v150 = vld [vmem:[%s1 + $0x408] sm:$0xff]
  %v151 = vld [vmem:[%s1 + $0x410] sm:$0xff]
  %v152 = vld [vmem:[%s1 + $0x418] sm:$0xff]
  %v153 = vld [vmem:[%s1 + $0x420] sm:$0xff]
  %v154 = vld [vmem:[%s1 + $0x428] sm:$0xff]
  %v155 = vld [vmem:[%s1 + $0x430] sm:$0xff]
  %v156 = vld [vmem:[%s1 + $0x438] sm:$0xff]
  %v157 = vld [vmem:[%s1 + $0x440] sm:$0xff]
  %v158 = vld [vmem:[%s1 + $0x448] sm:$0xff]
  %v159 = vld [vmem:[%s1 + $0x450] sm:$0xff]
  %v160 = vld [vmem:[%s1 + $0x458] sm:$0xff]
  %v161 = vld [vmem:[%s1 + $0x460] sm:$0xff]
  %v162 = vld [vmem:[%s1 + $0x468] sm:$0xff]
  %v163 = vld [vmem:[%s1 + $0x470] sm:$0xff]
  %v164 = vld [vmem:[%s1 + $0x478] sm:$0xff]
  %v165 = vld [vmem:[%s1 + $0x480] sm:$0xff]
  %v166 = vld [vmem:[%s1 + $0x488] sm:$0xff]
  %v167 = vld [vmem:[%s1 + $0x490] sm:$0xff]
  %v168 = vld [vmem:[%s1 + $0x498] sm:$0xff]
  %v169 = vld [vmem:[%s1 + $0x4a0] sm:$0xff]
  %v170 = vld [vmem:[%s1 + $0x4a8] sm:$0xff]
  %v171 = vld [vmem:[%s1 + $0x4b0] sm:$0xff]
  %v172 = vld [vmem:[%s1 + $0x4b8] sm:$0xff]
  %v173 = vld [vmem:[%s1 + $0x4c0] sm:$0xff]
  %v174 = vld [vmem:[%s1 + $0x4c8] sm:$0xff]
  %v175 = vld [vmem:[%s1 + $0x4d0] sm:$0xff]
  %v176 = vld [vmem:[%s1 + $0x4d8] sm:$0xff]
  %v177 = vld [vmem:[%s1 + $0x4e0] sm:$0xff]
  %v178 = vld [vmem:[%s1 + $0x4e8] sm:$0xff]
  %v179 = vld [vmem:[%s1 + $0x4f0] sm:$0xff]
  %v180 = vld [vmem:[%s1 + $0x4f8] sm:$0xff]
  %v181 = vld [vmem:[%s1 + $0x500] sm:$0xff]
  %v182 = vld [vmem:[%s1 + $0x508] sm:$0xff]
  %v183 = vld [vmem:[%s1 + $0x510] sm:$0xff]
  %v184 = vld [vmem:[%s1 + $0x518] sm:$0xff]
  %v185 = vld [vmem:[%s1 + $0x520] sm:$0xff]
  %v186 = vld [vmem:[%s1 + $0x528] sm:$0xff]
  %v187 = vld [vmem:[%s1 + $0x530] sm:$0xff]
  %v188 = vld [vmem:[%s1 + $0x538] sm:$0xff]
  %v189 = vld [vmem:[%s1 + $0x540] sm:$0xff]
  %v190 = vld [vmem:[%s1 + $0x548] sm:$0xff]
  %v191 = vld [vmem:[%s1 + $0x550] sm:$0xff]
  %v192 = vld [vmem:[%s1 + $0x558] sm:$0xff]
  %v193 = vld [vmem:[%s1 + $0x560] sm:$0xff]
  %v194 = vld [vmem:[%s1 + $0x568] sm:$0xff]
  %v195 = vld [vmem:[%s1 + $0x570] sm:$0xff]
  %v196 = vld [vmem:[%s1 + $0x578] sm:$0xff]
  %v197 = vld [vmem:[%s1 + $0x580] sm:$0xff]
  %v198 = vld [vmem:[%s1 + $0x588] sm:$0xff]
  %v199 = vld [vmem:[%s1 + $0x590] sm:$0xff]
  %v200 = vld [vmem:[%s1 + $0x598] sm:$0xff]
  %v201 = vld [vmem:[%s1 + $0x5a0] sm:$0xff]
  %v202 = vld [vmem:[%s1 + $0x5a8] sm:$0xff]
  %v203 = vld [vmem:[%s1 + $0x5b0] sm:$0xff]
  %v204 = vld [vmem:[%s1 + $0x5b8] sm:$0xff]
  %v205 = vld [vmem:[%s1 + $0x5c0] sm:$0xff]
  %v206 = vld [vmem:[%s1 + $0x5c8] sm:$0xff]
  %v207 = vld [vmem:[%s1 + $0x5d0] sm:$0xff]
  %v208 = vld [vmem:[%s1 + $0x5d8] sm:$0xff]
  %v209 = vld [vmem:[%s1 + $0x5e0] sm:$0xff]
  %v210 = vld [vmem:[%s1 + $0x5e8] sm:$0xff]
  %v211 = vld [vmem:[%s1 + $0x5f0] sm:$0xff]
  %v212 = vld [vmem:[%s1 + $0x5f8] sm:$0xff]
  %v213 = vld [vmem:[%s1 + $0x600] sm:$0xff]
  %v214 = vld [vmem:[%s1 + $0x608] sm:$0xff]
  %v215 = vld [vmem:[%s1 + $0x610] sm:$0xff]
  %v216 = vld [vmem:[%s1 + $0x618] sm:$0xff]
  %v217 = vld [vmem:[%s1 + $0x620] sm:$0xff]
  %v218 = vld [vmem:[%s1 + $0x628] sm:$0xff]
  %v219 = vld [vmem:[%s1 + $0x630] sm:$0x11]
  %v220 = vld [vmem:[%s1 + $0x638] sm:$0x11]
  %v221 = vld [vmem:[%s1 + $0x640] sm:$0x11]
  %v222 = vld [vmem:[%s1 + $0x648] sm:$0x11]
  %v223 = vld [vmem:[%s1 + $0x650] sm:$0x11]
  %v224 = vld [vmem:[%s1 + $0x658] sm:$0x11]
  %v225 = vld [vmem:[%s1 + $0x660] sm:$0x11]
  %v226 = vld [vmem:[%s1 + $0x668] sm:$0x11]
  %v227 = vld [vmem:[%s1 + $0x670] sm:$0x11]
  %v228 = vld [vmem:[%s1 + $0x678] sm:$0x11]
  %v229 = vld [vmem:[%s1 + $0x680] sm:$0x11]
  %v230 = vld [vmem:[%s2] sm:$0xff]
  %v231 = vld [vmem:[%s2 + $0x8] sm:$0xff]
  %v232 = vld [vmem:[%s2 + $0x10] sm:$0x3f]
  %v236 = vlaneseq
  %v237 = vshrl.u32 %v236, 7
  %v238 = vsub.s32 0, %v237
  %v239 = vrot.slane %v230, %v238
  %v240 = vlaneseq
  %v241 = vshrl.u32 %v240, 7
  %v242 = vsub.s32 1, %v241
  %v243 = vrot.slane %v230, %v242
  %v244 = vlaneseq
  %v245 = vshrl.u32 %v244, 7
  %v246 = vsub.s32 2, %v245
  %v247 = vrot.slane %v230, %v246
  %v248 = vlaneseq
  %v249 = vshrl.u32 %v248, 7
  %v250 = vsub.s32 3, %v249
  %v251 = vrot.slane %v230, %v250
  %v252 = vlaneseq
  %v253 = vshrl.u32 %v252, 7
  %v254 = vsub.s32 4, %v253
  %v255 = vrot.slane %v230, %v254
  %v256 = vlaneseq
  %v257 = vshrl.u32 %v256, 7
  %v258 = vsub.s32 5, %v257
  %v259 = vrot.slane %v230, %v258
  %v260 = vlaneseq
  %v261 = vshrl.u32 %v260, 7
  %v262 = vsub.s32 6, %v261
  %v263 = vrot.slane %v230, %v262
  %v264 = vlaneseq
  %v265 = vshrl.u32 %v264, 7
  %v266 = vsub.s32 7, %v265
  %v267 = vrot.slane %v230, %v266
  %v268 = vlaneseq
  %v269 = vshrl.u32 %v268, 7
  %v270 = vsub.s32 0, %v269
  %v271 = vrot.slane %v231, %v270
  %v272 = vlaneseq
  %v273 = vshrl.u32 %v272, 7
  %v274 = vsub.s32 1, %v273
  %v275 = vrot.slane %v231, %v274
  %v276 = vlaneseq
  %v277 = vshrl.u32 %v276, 7
  %v278 = vsub.s32 2, %v277
  %v279 = vrot.slane %v231, %v278
  %v280 = vlaneseq
  %v281 = vshrl.u32 %v280, 7
  %v282 = vsub.s32 3, %v281
  %v283 = vrot.slane %v231, %v282
  %v284 = vlaneseq
  %v285 = vshrl.u32 %v284, 7
  %v286 = vsub.s32 4, %v285
  %v287 = vrot.slane %v231, %v286
  %v288 = vlaneseq
  %v289 = vshrl.u32 %v288, 7
  %v290 = vsub.s32 5, %v289
  %v291 = vrot.slane %v231, %v290
  %v292 = vlaneseq
  %v293 = vshrl.u32 %v292, 7
  %v294 = vsub.s32 6, %v293
  %v295 = vrot.slane %v231, %v294
  %v296 = vlaneseq
  %v297 = vshrl.u32 %v296, 7
  %v298 = vsub.s32 7, %v297
  %v299 = vrot.slane %v231, %v298
  %v300 = vlaneseq
  %v301 = vshrl.u32 %v300, 7
  %v302 = vsub.s32 0, %v301
  %v303 = vrot.slane %v232, %v302
  %v304 = vlaneseq
  %v305 = vshrl.u32 %v304, 7
  %v306 = vsub.s32 1, %v305
  %v307 = vrot.slane %v232, %v306
  %v308 = vlaneseq
  %v309 = vshrl.u32 %v308, 7
  %v310 = vsub.s32 2, %v309
  %v311 = vrot.slane %v232, %v310
  %v312 = vlaneseq
  %v313 = vshrl.u32 %v312, 7
  %v314 = vsub.s32 3, %v313
  %v315 = vrot.slane %v232, %v314
  %v316 = vlaneseq
  %v317 = vshrl.u32 %v316, 7
  %v318 = vsub.s32 4, %v317
  %v319 = vrot.slane %v232, %v318
  %v320 = vlaneseq
  %v321 = vshrl.u32 %v320, 7
  %v322 = vsub.s32 5, %v321
  %v323 = vrot.slane %v232, %v322
  %v555 = vunpack.c.l.b16 %v21
  %v556 = vunpack.c.h.b16 %v21
  %v557 = vunpack.c.l.b16 %v22
  %v558 = vunpack.c.h.b16 %v22
  %v559 = vunpack.c.l.b16 %v23
  %v560 = vunpack.c.h.b16 %v23
  %v561 = vunpack.c.l.b16 %v24
  %v562 = vunpack.c.h.b16 %v24
  %v563 = vunpack.c.l.b16 %v25
  %v564 = vunpack.c.h.b16 %v25
  %v565 = vunpack.c.l.b16 %v26
  %v566 = vunpack.c.h.b16 %v26
  %v567 = vunpack.c.l.b16 %v27
  %v568 = vunpack.c.h.b16 %v27
  %v569 = vunpack.c.l.b16 %v28
  %v570 = vunpack.c.h.b16 %v28
  %v571 = vunpack.c.l.b16 %v29
  %v572 = vunpack.c.h.b16 %v29
  %v573 = vunpack.c.l.b16 %v30
  %v574 = vunpack.c.h.b16 %v30
  %v575 = vunpack.c.l.b16 %v31
  %v576 = vunpack.c.h.b16 %v31
  %v577 = vunpack.c.l.b16 %v32
  %v578 = vunpack.c.h.b16 %v32
  %v579 = vunpack.c.l.b16 %v33
  %v580 = vunpack.c.h.b16 %v33
  %v581 = vunpack.c.l.b16 %v34
  %v582 = vunpack.c.h.b16 %v34
  %v583 = vunpack.c.l.b16 %v35
  %v584 = vunpack.c.h.b16 %v35
  %v585 = vunpack.c.l.b16 %v36
  %v586 = vunpack.c.h.b16 %v36
  %v587 = vunpack.c.l.b16 %v37
  %v588 = vunpack.c.h.b16 %v37
  %v589 = vunpack.c.l.b16 %v38
  %v590 = vunpack.c.h.b16 %v38
  %v591 = vunpack.c.l.b16 %v39
  %v592 = vunpack.c.h.b16 %v39
  %v593 = vunpack.c.l.b16 %v40
  %v594 = vunpack.c.h.b16 %v40
  %v595 = vunpack.c.l.b16 %v41
  %v596 = vunpack.c.h.b16 %v41
  %v597 = vunpack.c.l.b16 %v42
  %v598 = vunpack.c.h.b16 %v42
  %v599 = vunpack.c.l.b16 %v43
  %v600 = vunpack.c.h.b16 %v43
  %v601 = vunpack.c.l.b16 %v44
  %v602 = vunpack.c.h.b16 %v44
  %v603 = vunpack.c.l.b16 %v45
  %v604 = vunpack.c.h.b16 %v45
  %v605 = vunpack.c.l.b16 %v46
  %v606 = vunpack.c.h.b16 %v46
  %v607 = vunpack.c.l.b16 %v47
  %v608 = vunpack.c.h.b16 %v47
  %v609 = vunpack.c.l.b16 %v48
  %v610 = vunpack.c.h.b16 %v48
  %v611 = vunpack.c.l.b16 %v49
  %v612 = vunpack.c.h.b16 %v49
  %v613 = vunpack.c.l.b16 %v50
  %v614 = vunpack.c.h.b16 %v50
  %v615 = vunpack.c.l.b16 %v51
  %v616 = vunpack.c.h.b16 %v51
  %v617 = vunpack.c.l.b16 %v52
  %v618 = vunpack.c.h.b16 %v52
  %v619 = vunpack.c.l.b16 %v53
  %v620 = vunpack.c.h.b16 %v53
  %v621 = vunpack.c.l.b16 %v54
  %v622 = vunpack.c.h.b16 %v54
  %v623 = vunpack.c.l.b16 %v55
  %v624 = vunpack.c.h.b16 %v55
  %v625 = vunpack.c.l.b16 %v56
  %v626 = vunpack.c.h.b16 %v56
  %v627 = vunpack.c.l.b16 %v57
  %v628 = vunpack.c.h.b16 %v57
  %v629 = vunpack.c.l.b16 %v58
  %v630 = vunpack.c.h.b16 %v58
  %v631 = vunpack.c.l.b16 %v59
  %v632 = vunpack.c.h.b16 %v59
  %v633 = vunpack.c.l.b16 %v60
  %v634 = vunpack.c.h.b16 %v60
  %v635 = vunpack.c.l.b16 %v61
  %v636 = vunpack.c.h.b16 %v61
  %v637 = vunpack.c.l.b16 %v62
  %v638 = vunpack.c.h.b16 %v62
  %v639 = vunpack.c.l.b16 %v63
  %v640 = vunpack.c.h.b16 %v63
  %v641 = vunpack.c.l.b16 %v64
  %v642 = vunpack.c.h.b16 %v64
  %v643 = vunpack.c.l.b16 %v65
  %v644 = vunpack.c.h.b16 %v65
  %v645 = vunpack.c.l.b16 %v66
  %v646 = vunpack.c.h.b16 %v66
  %v647 = vunpack.c.l.b16 %v67
  %v648 = vunpack.c.h.b16 %v67
  %v649 = vunpack.c.l.b16 %v68
  %v650 = vunpack.c.h.b16 %v68
  %v651 = vunpack.c.l.b16 %v69
  %v652 = vunpack.c.h.b16 %v69
  %v653 = vunpack.c.l.b16 %v70
  %v654 = vunpack.c.h.b16 %v70
  %v655 = vunpack.c.l.b16 %v71
  %v656 = vunpack.c.h.b16 %v71
  %v657 = vunpack.c.l.b16 %v72
  %v658 = vunpack.c.h.b16 %v72
  %v659 = vunpack.c.l.b16 %v73
  %v660 = vunpack.c.h.b16 %v73
  %v661 = vunpack.c.l.b16 %v74
  %v662 = vunpack.c.h.b16 %v74
  %v663 = vunpack.c.l.b16 %v75
  %v664 = vunpack.c.h.b16 %v75
  %v665 = vunpack.c.l.b16 %v76
  %v666 = vunpack.c.h.b16 %v76
  %v667 = vunpack.c.l.b16 %v77
  %v668 = vunpack.c.h.b16 %v77
  %v669 = vunpack.c.l.b16 %v78
  %v670 = vunpack.c.h.b16 %v78
  %v671 = vunpack.c.l.b16 %v79
  %v672 = vunpack.c.h.b16 %v79
  %v673 = vunpack.c.l.b16 %v80
  %v674 = vunpack.c.h.b16 %v80
  %v675 = vunpack.c.l.b16 %v81
  %v676 = vunpack.c.h.b16 %v81
  %v677 = vunpack.c.l.b16 %v82
  %v678 = vunpack.c.h.b16 %v82
  %v679 = vunpack.c.l.b16 %v83
  %v680 = vunpack.c.h.b16 %v83
  %v681 = vunpack.c.l.b16 %v84
  %v682 = vunpack.c.h.b16 %v84
  %v683 = vunpack.c.l.b16 %v85
  %v684 = vunpack.c.h.b16 %v85
  %v685 = vunpack.c.l.b16 %v86
  %v686 = vunpack.c.h.b16 %v86
  %v687 = vunpack.c.l.b16 %v87
  %v688 = vunpack.c.h.b16 %v87
  %v689 = vunpack.c.l.b16 %v88
  %v690 = vunpack.c.h.b16 %v88
  %v691 = vunpack.c.l.b16 %v89
  %v692 = vunpack.c.h.b16 %v89
  %v693 = vunpack.c.l.b16 %v90
  %v694 = vunpack.c.h.b16 %v90
  %v695 = vunpack.c.l.b16 %v91
  %v696 = vunpack.c.h.b16 %v91
  %v697 = vunpack.c.l.b16 %v92
  %v698 = vunpack.c.h.b16 %v92
  %v699 = vunpack.c.l.b16 %v93
  %v700 = vunpack.c.h.b16 %v93
  %v701 = vunpack.c.l.b16 %v94
  %v702 = vunpack.c.h.b16 %v94
  %v703 = vunpack.c.l.b16 %v95
  %v704 = vunpack.c.h.b16 %v95
  %v705 = vunpack.c.l.b16 %v96
  %v706 = vunpack.c.h.b16 %v96
  %v707 = vunpack.c.l.b16 %v97
  %v708 = vunpack.c.h.b16 %v97
  %v709 = vunpack.c.l.b16 %v98
  %v710 = vunpack.c.h.b16 %v98
  %v711 = vunpack.c.l.b16 %v99
  %v712 = vunpack.c.h.b16 %v99
  %v713 = vunpack.c.l.b16 %v100
  %v714 = vunpack.c.h.b16 %v100
  %v715 = vunpack.c.l.b16 %v101
  %v716 = vunpack.c.h.b16 %v101
  %v717 = vunpack.c.l.b16 %v102
  %v718 = vunpack.c.h.b16 %v102
  %v719 = vunpack.c.l.b16 %v103
  %v720 = vunpack.c.h.b16 %v103
  %v721 = vunpack.c.l.b16 %v104
  %v722 = vunpack.c.h.b16 %v104
  %v723 = vunpack.c.l.b16 %v105
  %v724 = vunpack.c.h.b16 %v105
  %v725 = vunpack.c.l.b16 %v106
  %v726 = vunpack.c.h.b16 %v106
  %v727 = vunpack.c.l.b16 %v107
  %v728 = vunpack.c.h.b16 %v107
  %v729 = vunpack.c.l.b16 %v108
  %v730 = vunpack.c.h.b16 %v108
  %v731 = vunpack.c.l.b16 %v109
  %v732 = vunpack.c.h.b16 %v109
  %v733 = vunpack.c.l.b16 %v110
  %v734 = vunpack.c.h.b16 %v110
  %v735 = vunpack.c.l.b16 %v111
  %v736 = vunpack.c.h.b16 %v111
  %v737 = vunpack.c.l.b16 %v112
  %v738 = vunpack.c.h.b16 %v112
  %v739 = vunpack.c.l.b16 %v113
  %v740 = vunpack.c.h.b16 %v113
  %v741 = vunpack.c.l.b16 %v114
  %v742 = vunpack.c.h.b16 %v114
  %v743 = vunpack.c.l.b16 %v115
  %v744 = vunpack.c.h.b16 %v115
  %v745 = vunpack.c.l.b16 %v116
  %v746 = vunpack.c.h.b16 %v116
  %v747 = vunpack.c.l.b16 %v117
  %v748 = vunpack.c.h.b16 %v117
  %v749 = vunpack.c.l.b16 %v118
  %v750 = vunpack.c.h.b16 %v118
  %v751 = vunpack.c.l.b16 %v119
  %v752 = vunpack.c.h.b16 %v119
  %v753 = vunpack.c.l.b16 %v120
  %v754 = vunpack.c.h.b16 %v120
  %v755 = vunpack.c.l.b16 %v121
  %v756 = vunpack.c.h.b16 %v121
  %v757 = vunpack.c.l.b16 %v122
  %v758 = vunpack.c.h.b16 %v122
  %v759 = vunpack.c.l.b16 %v123
  %v760 = vunpack.c.h.b16 %v123
  %v761 = vunpack.c.l.b16 %v124
  %v762 = vunpack.c.h.b16 %v124
  %v763 = vunpack.c.l.b16 %v125
  %v764 = vunpack.c.h.b16 %v125
  %v765 = vunpack.c.l.b16 %v126
  %v766 = vunpack.c.h.b16 %v126
  %v767 = vunpack.c.l.b16 %v127
  %v768 = vunpack.c.h.b16 %v127
  %v769 = vunpack.c.l.b16 %v128
  %v770 = vunpack.c.h.b16 %v128
  %v771 = vunpack.c.l.b16 %v129
  %v772 = vunpack.c.h.b16 %v129
  %v773 = vunpack.c.l.b16 %v130
  %v774 = vunpack.c.h.b16 %v130
  %v775 = vunpack.c.l.b16 %v131
  %v776 = vunpack.c.h.b16 %v131
  %v777 = vunpack.c.l.b16 %v132
  %v778 = vunpack.c.h.b16 %v132
  %v779 = vunpack.c.l.b16 %v133
  %v780 = vunpack.c.h.b16 %v133
  %v781 = vunpack.c.l.b16 %v134
  %v782 = vunpack.c.h.b16 %v134
  %v783 = vunpack.c.l.b16 %v135
  %v784 = vunpack.c.h.b16 %v135
  %v785 = vunpack.c.l.b16 %v136
  %v786 = vunpack.c.h.b16 %v136
  %v787 = vunpack.c.l.b16 %v137
  %v788 = vunpack.c.h.b16 %v137
  %v789 = vunpack.c.l.b16 %v138
  %v790 = vunpack.c.h.b16 %v138
  %v791 = vunpack.c.l.b16 %v139
  %v792 = vunpack.c.h.b16 %v139
  %v793 = vunpack.c.l.b16 %v140
  %v794 = vunpack.c.h.b16 %v140
  %v795 = vunpack.c.l.b16 %v141
  %v796 = vunpack.c.h.b16 %v141
  %v797 = vunpack.c.l.b16 %v142
  %v798 = vunpack.c.h.b16 %v142
  %v799 = vunpack.c.l.b16 %v143
  %v800 = vunpack.c.h.b16 %v143
  %v801 = vunpack.c.l.b16 %v144
  %v802 = vunpack.c.h.b16 %v144
  %v803 = vunpack.c.l.b16 %v145
  %v804 = vunpack.c.h.b16 %v145
  %v805 = vunpack.c.l.b16 %v146
  %v806 = vunpack.c.h.b16 %v146
  %v807 = vunpack.c.l.b16 %v147
  %v808 = vunpack.c.h.b16 %v147
  %v809 = vunpack.c.l.b16 %v148
  %v810 = vunpack.c.h.b16 %v148
  %v811 = vunpack.c.l.b16 %v149
  %v812 = vunpack.c.h.b16 %v149
  %v813 = vunpack.c.l.b16 %v150
  %v814 = vunpack.c.h.b16 %v150
  %v815 = vunpack.c.l.b16 %v151
  %v816 = vunpack.c.h.b16 %v151
  %v817 = vunpack.c.l.b16 %v152
  %v818 = vunpack.c.h.b16 %v152
  %v819 = vunpack.c.l.b16 %v153
  %v820 = vunpack.c.h.b16 %v153
  %v821 = vunpack.c.l.b16 %v154
  %v822 = vunpack.c.h.b16 %v154
  %v823 = vunpack.c.l.b16 %v155
  %v824 = vunpack.c.h.b16 %v155
  %v825 = vunpack.c.l.b16 %v156
  %v826 = vunpack.c.h.b16 %v156
  %v827 = vunpack.c.l.b16 %v157
  %v828 = vunpack.c.h.b16 %v157
  %v829 = vunpack.c.l.b16 %v158
  %v830 = vunpack.c.h.b16 %v158
  %v831 = vunpack.c.l.b16 %v159
  %v832 = vunpack.c.h.b16 %v159
  %v833 = vunpack.c.l.b16 %v160
  %v834 = vunpack.c.h.b16 %v160
  %v835 = vunpack.c.l.b16 %v161
  %v836 = vunpack.c.h.b16 %v161
  %v837 = vunpack.c.l.b16 %v162
  %v838 = vunpack.c.h.b16 %v162
  %v839 = vunpack.c.l.b16 %v163
  %v840 = vunpack.c.h.b16 %v163
  %v841 = vunpack.c.l.b16 %v164
  %v842 = vunpack.c.h.b16 %v164
  %v843 = vunpack.c.l.b16 %v165
  %v844 = vunpack.c.h.b16 %v165
  %v845 = vunpack.c.l.b16 %v166
  %v846 = vunpack.c.h.b16 %v166
  %v847 = vunpack.c.l.b16 %v167
  %v848 = vunpack.c.h.b16 %v167
  %v849 = vunpack.c.l.b16 %v168
  %v850 = vunpack.c.h.b16 %v168
  %v851 = vunpack.c.l.b16 %v169
  %v852 = vunpack.c.h.b16 %v169
  %v853 = vunpack.c.l.b16 %v170
  %v854 = vunpack.c.h.b16 %v170
  %v855 = vunpack.c.l.b16 %v171
  %v856 = vunpack.c.h.b16 %v171
  %v857 = vunpack.c.l.b16 %v172
  %v858 = vunpack.c.h.b16 %v172
  %v859 = vunpack.c.l.b16 %v173
  %v860 = vunpack.c.h.b16 %v173
  %v861 = vunpack.c.l.b16 %v174
  %v862 = vunpack.c.h.b16 %v174
  %v863 = vunpack.c.l.b16 %v175
  %v864 = vunpack.c.h.b16 %v175
  %v865 = vunpack.c.l.b16 %v176
  %v866 = vunpack.c.h.b16 %v176
  %v867 = vunpack.c.l.b16 %v177
  %v868 = vunpack.c.h.b16 %v177
  %v869 = vunpack.c.l.b16 %v178
  %v870 = vunpack.c.h.b16 %v178
  %v871 = vunpack.c.l.b16 %v179
  %v872 = vunpack.c.h.b16 %v179
  %v873 = vunpack.c.l.b16 %v180
  %v874 = vunpack.c.h.b16 %v180
  %v875 = vunpack.c.l.b16 %v181
  %v876 = vunpack.c.h.b16 %v181
  %v877 = vunpack.c.l.b16 %v182
  %v878 = vunpack.c.h.b16 %v182
  %v879 = vunpack.c.l.b16 %v183
  %v880 = vunpack.c.h.b16 %v183
  %v881 = vunpack.c.l.b16 %v184
  %v882 = vunpack.c.h.b16 %v184
  %v883 = vunpack.c.l.b16 %v185
  %v884 = vunpack.c.h.b16 %v185
  %v885 = vunpack.c.l.b16 %v186
  %v886 = vunpack.c.h.b16 %v186
  %v887 = vunpack.c.l.b16 %v187
  %v888 = vunpack.c.h.b16 %v187
  %v889 = vunpack.c.l.b16 %v188
  %v890 = vunpack.c.h.b16 %v188
  %v891 = vunpack.c.l.b16 %v189
  %v892 = vunpack.c.h.b16 %v189
  %v893 = vunpack.c.l.b16 %v190
  %v894 = vunpack.c.h.b16 %v190
  %v895 = vunpack.c.l.b16 %v191
  %v896 = vunpack.c.h.b16 %v191
  %v897 = vunpack.c.l.b16 %v192
  %v898 = vunpack.c.h.b16 %v192
  %v899 = vunpack.c.l.b16 %v193
  %v900 = vunpack.c.h.b16 %v193
  %v901 = vunpack.c.l.b16 %v194
  %v902 = vunpack.c.h.b16 %v194
  %v903 = vunpack.c.l.b16 %v195
  %v904 = vunpack.c.h.b16 %v195
  %v905 = vunpack.c.l.b16 %v196
  %v906 = vunpack.c.h.b16 %v196
  %v907 = vunpack.c.l.b16 %v197
  %v908 = vunpack.c.h.b16 %v197
  %v909 = vunpack.c.l.b16 %v198
  %v910 = vunpack.c.h.b16 %v198
  %v911 = vunpack.c.l.b16 %v199
  %v912 = vunpack.c.h.b16 %v199
  %v913 = vunpack.c.l.b16 %v200
  %v914 = vunpack.c.h.b16 %v200
  %v915 = vunpack.c.l.b16 %v201
  %v916 = vunpack.c.h.b16 %v201
  %v917 = vunpack.c.l.b16 %v202
  %v918 = vunpack.c.h.b16 %v202
  %v919 = vunpack.c.l.b16 %v203
  %v920 = vunpack.c.h.b16 %v203
  %v921 = vunpack.c.l.b16 %v204
  %v922 = vunpack.c.h.b16 %v204
  %v923 = vunpack.c.l.b16 %v205
  %v924 = vunpack.c.h.b16 %v205
  %v925 = vunpack.c.l.b16 %v206
  %v926 = vunpack.c.h.b16 %v206
  %v927 = vunpack.c.l.b16 %v207
  %v928 = vunpack.c.h.b16 %v207
  %v929 = vunpack.c.l.b16 %v208
  %v930 = vunpack.c.h.b16 %v208
  %v931 = vunpack.c.l.b16 %v209
  %v932 = vunpack.c.h.b16 %v209
  %v933 = vunpack.c.l.b16 %v210
  %v934 = vunpack.c.h.b16 %v210
  %v935 = vunpack.c.l.b16 %v211
  %v936 = vunpack.c.h.b16 %v211
  %v937 = vunpack.c.l.b16 %v212
  %v938 = vunpack.c.h.b16 %v212
  %v939 = vunpack.c.l.b16 %v213
  %v940 = vunpack.c.h.b16 %v213
  %v941 = vunpack.c.l.b16 %v214
  %v942 = vunpack.c.h.b16 %v214
  %v943 = vunpack.c.l.b16 %v215
  %v944 = vunpack.c.h.b16 %v215
  %v945 = vunpack.c.l.b16 %v216
  %v946 = vunpack.c.h.b16 %v216
  %v947 = vunpack.c.l.b16 %v217
  %v948 = vunpack.c.h.b16 %v217
  %v949 = vunpack.c.l.b16 %v218
  %v950 = vunpack.c.h.b16 %v218
  %v951 = vunpack.c.l.b16 %v219
  %v952 = vunpack.c.h.b16 %v219
  %v953 = vunpack.c.l.b16 %v220
  %v954 = vunpack.c.h.b16 %v220
  %v955 = vunpack.c.l.b16 %v221
  %v956 = vunpack.c.h.b16 %v221
  %v957 = vunpack.c.l.b16 %v222
  %v958 = vunpack.c.h.b16 %v222
  %v959 = vunpack.c.l.b16 %v223
  %v960 = vunpack.c.h.b16 %v223
  %v961 = vunpack.c.l.b16 %v224
  %v962 = vunpack.c.h.b16 %v224
  %v963 = vunpack.c.l.b16 %v225
  %v964 = vunpack.c.h.b16 %v225
  %v965 = vunpack.c.l.b16 %v226
  %v966 = vunpack.c.h.b16 %v226
  %v967 = vunpack.c.l.b16 %v227
  %v968 = vunpack.c.h.b16 %v227
  %v969 = vunpack.c.l.b16 %v228
  %v970 = vunpack.c.h.b16 %v228
  %v971 = vunpack.c.l.b16 %v229
  %v972 = vunpack.c.h.b16 %v229
  %v973 = vpack.c.b16 %v577, %v555
  %v974 = vpack.c.b16 %v578, %v556
  %v975 = vpack.c.b16 %v579, %v557
  %v976 = vpack.c.b16 %v580, %v558
  %v977 = vpack.c.b16 %v581, %v559
  %v978 = vpack.c.b16 %v582, %v560
  %v979 = vpack.c.b16 %v583, %v561
  %v980 = vpack.c.b16 %v584, %v562
  %v981 = vpack.c.b16 %v585, %v563
  %v982 = vpack.c.b16 %v586, %v564
  %v983 = vpack.c.b16 %v587, %v565
  %v984 = vpack.c.b16 %v588, %v566
  %v985 = vpack.c.b16 %v589, %v567
  %v986 = vpack.c.b16 %v590, %v568
  %v987 = vpack.c.b16 %v591, %v569
  %v988 = vpack.c.b16 %v592, %v570
  %v989 = vpack.c.b16 %v593, %v571
  %v990 = vpack.c.b16 %v594, %v572
  %v991 = vpack.c.b16 %v595, %v573
  %v992 = vpack.c.b16 %v596, %v574
  %v993 = vpack.c.b16 %v597, %v575
  %v994 = vpack.c.b16 %v598, %v576
  %v995 = vpack.c.b16 %v621, %v599
  %v996 = vpack.c.b16 %v622, %v600
  %v997 = vpack.c.b16 %v623, %v601
  %v998 = vpack.c.b16 %v624, %v602
  %v999 = vpack.c.b16 %v625, %v603
  %v1000 = vpack.c.b16 %v626, %v604
  %v1001 = vpack.c.b16 %v627, %v605
  %v1002 = vpack.c.b16 %v628, %v606
  %v1003 = vpack.c.b16 %v629, %v607
  %v1004 = vpack.c.b16 %v630, %v608
  %v1005 = vpack.c.b16 %v631, %v609
  %v1006 = vpack.c.b16 %v632, %v610
  %v1007 = vpack.c.b16 %v633, %v611
  %v1008 = vpack.c.b16 %v634, %v612
  %v1009 = vpack.c.b16 %v635, %v613
  %v1010 = vpack.c.b16 %v636, %v614
  %v1011 = vpack.c.b16 %v637, %v615
  %v1012 = vpack.c.b16 %v638, %v616
  %v1013 = vpack.c.b16 %v639, %v617
  %v1014 = vpack.c.b16 %v640, %v618
  %v1015 = vpack.c.b16 %v641, %v619
  %v1016 = vpack.c.b16 %v642, %v620
  %v1017 = vpack.c.b16 %v665, %v643
  %v1018 = vpack.c.b16 %v666, %v644
  %v1019 = vpack.c.b16 %v667, %v645
  %v1020 = vpack.c.b16 %v668, %v646
  %v1021 = vpack.c.b16 %v669, %v647
  %v1022 = vpack.c.b16 %v670, %v648
  %v1023 = vpack.c.b16 %v671, %v649
  %v1024 = vpack.c.b16 %v672, %v650
  %v1025 = vpack.c.b16 %v673, %v651
  %v1026 = vpack.c.b16 %v674, %v652
  %v1027 = vpack.c.b16 %v675, %v653
  %v1028 = vpack.c.b16 %v676, %v654
  %v1029 = vpack.c.b16 %v677, %v655
  %v1030 = vpack.c.b16 %v678, %v656
  %v1031 = vpack.c.b16 %v679, %v657
  %v1032 = vpack.c.b16 %v680, %v658
  %v1033 = vpack.c.b16 %v681, %v659
  %v1034 = vpack.c.b16 %v682, %v660
  %v1035 = vpack.c.b16 %v683, %v661
  %v1036 = vpack.c.b16 %v684, %v662
  %v1037 = vpack.c.b16 %v685, %v663
  %v1038 = vpack.c.b16 %v686, %v664
  %v1039 = vpack.c.b16 %v709, %v687
  %v1040 = vpack.c.b16 %v710, %v688
  %v1041 = vpack.c.b16 %v711, %v689
  %v1042 = vpack.c.b16 %v712, %v690
  %v1043 = vpack.c.b16 %v713, %v691
  %v1044 = vpack.c.b16 %v714, %v692
  %v1045 = vpack.c.b16 %v715, %v693
  %v1046 = vpack.c.b16 %v716, %v694
  %v1047 = vpack.c.b16 %v717, %v695
  %v1048 = vpack.c.b16 %v718, %v696
  %v1049 = vpack.c.b16 %v719, %v697
  %v1050 = vpack.c.b16 %v720, %v698
  %v1051 = vpack.c.b16 %v721, %v699
  %v1052 = vpack.c.b16 %v722, %v700
  %v1053 = vpack.c.b16 %v723, %v701
  %v1054 = vpack.c.b16 %v724, %v702
  %v1055 = vpack.c.b16 %v725, %v703
  %v1056 = vpack.c.b16 %v726, %v704
  %v1057 = vpack.c.b16 %v727, %v705
  %v1058 = vpack.c.b16 %v728, %v706
  %v1059 = vpack.c.b16 %v729, %v707
  %v1060 = vpack.c.b16 %v730, %v708
  %v1061 = vpack.c.b16 %v753, %v731
  %v1062 = vpack.c.b16 %v754, %v732
  %v1063 = vpack.c.b16 %v755, %v733
  %v1064 = vpack.c.b16 %v756, %v734
  %v1065 = vpack.c.b16 %v757, %v735
  %v1066 = vpack.c.b16 %v758, %v736
  %v1067 = vpack.c.b16 %v759, %v737
  %v1068 = vpack.c.b16 %v760, %v738
  %v1069 = vpack.c.b16 %v761, %v739
  %v1070 = vpack.c.b16 %v762, %v740
  %v1071 = vpack.c.b16 %v763, %v741
  %v1072 = vpack.c.b16 %v764, %v742
  %v1073 = vpack.c.b16 %v765, %v743
  %v1074 = vpack.c.b16 %v766, %v744
  %v1075 = vpack.c.b16 %v767, %v745
  %v1076 = vpack.c.b16 %v768, %v746
  %v1077 = vpack.c.b16 %v769, %v747
  %v1078 = vpack.c.b16 %v770, %v748
  %v1079 = vpack.c.b16 %v771, %v749
  %v1080 = vpack.c.b16 %v772, %v750
  %v1081 = vpack.c.b16 %v773, %v751
  %v1082 = vpack.c.b16 %v774, %v752
  %v1083 = vpack.c.b16 %v797, %v775
  %v1084 = vpack.c.b16 %v798, %v776
  %v1085 = vpack.c.b16 %v799, %v777
  %v1086 = vpack.c.b16 %v800, %v778
  %v1087 = vpack.c.b16 %v801, %v779
  %v1088 = vpack.c.b16 %v802, %v780
  %v1089 = vpack.c.b16 %v803, %v781
  %v1090 = vpack.c.b16 %v804, %v782
  %v1091 = vpack.c.b16 %v805, %v783
  %v1092 = vpack.c.b16 %v806, %v784
  %v1093 = vpack.c.b16 %v807, %v785
  %v1094 = vpack.c.b16 %v808, %v786
  %v1095 = vpack.c.b16 %v809, %v787
  %v1096 = vpack.c.b16 %v810, %v788
  %v1097 = vpack.c.b16 %v811, %v789
  %v1098 = vpack.c.b16 %v812, %v790
  %v1099 = vpack.c.b16 %v813, %v791
  %v1100 = vpack.c.b16 %v814, %v792
  %v1101 = vpack.c.b16 %v815, %v793
  %v1102 = vpack.c.b16 %v816, %v794
  %v1103 = vpack.c.b16 %v817, %v795
  %v1104 = vpack.c.b16 %v818, %v796
  %v1105 = vpack.c.b16 %v841, %v819
  %v1106 = vpack.c.b16 %v842, %v820
  %v1107 = vpack.c.b16 %v843, %v821
  %v1108 = vpack.c.b16 %v844, %v822
  %v1109 = vpack.c.b16 %v845, %v823
  %v1110 = vpack.c.b16 %v846, %v824
  %v1111 = vpack.c.b16 %v847, %v825
  %v1112 = vpack.c.b16 %v848, %v826
  %v1113 = vpack.c.b16 %v849, %v827
  %v1114 = vpack.c.b16 %v850, %v828
  %v1115 = vpack.c.b16 %v851, %v829
  %v1116 = vpack.c.b16 %v852, %v830
  %v1117 = vpack.c.b16 %v853, %v831
  %v1118 = vpack.c.b16 %v854, %v832
  %v1119 = vpack.c.b16 %v855, %v833
  %v1120 = vpack.c.b16 %v856, %v834
  %v1121 = vpack.c.b16 %v857, %v835
  %v1122 = vpack.c.b16 %v858, %v836
  %v1123 = vpack.c.b16 %v859, %v837
  %v1124 = vpack.c.b16 %v860, %v838
  %v1125 = vpack.c.b16 %v861, %v839
  %v1126 = vpack.c.b16 %v862, %v840
  %v1127 = vpack.c.b16 %v885, %v863
  %v1128 = vpack.c.b16 %v886, %v864
  %v1129 = vpack.c.b16 %v887, %v865
  %v1130 = vpack.c.b16 %v888, %v866
  %v1131 = vpack.c.b16 %v889, %v867
  %v1132 = vpack.c.b16 %v890, %v868
  %v1133 = vpack.c.b16 %v891, %v869
  %v1134 = vpack.c.b16 %v892, %v870
  %v1135 = vpack.c.b16 %v893, %v871
  %v1136 = vpack.c.b16 %v894, %v872
  %v1137 = vpack.c.b16 %v895, %v873
  %v1138 = vpack.c.b16 %v896, %v874
  %v1139 = vpack.c.b16 %v897, %v875
  %v1140 = vpack.c.b16 %v898, %v876
  %v1141 = vpack.c.b16 %v899, %v877
  %v1142 = vpack.c.b16 %v900, %v878
  %v1143 = vpack.c.b16 %v901, %v879
  %v1144 = vpack.c.b16 %v902, %v880
  %v1145 = vpack.c.b16 %v903, %v881
  %v1146 = vpack.c.b16 %v904, %v882
  %v1147 = vpack.c.b16 %v905, %v883
  %v1148 = vpack.c.b16 %v906, %v884
  %v1149 = vpack.c.b16 %v929, %v907
  %v1150 = vpack.c.b16 %v930, %v908
  %v1151 = vpack.c.b16 %v931, %v909
  %v1152 = vpack.c.b16 %v932, %v910
  %v1153 = vpack.c.b16 %v933, %v911
  %v1154 = vpack.c.b16 %v934, %v912
  %v1155 = vpack.c.b16 %v935, %v913
  %v1156 = vpack.c.b16 %v936, %v914
  %v1157 = vpack.c.b16 %v937, %v915
  %v1158 = vpack.c.b16 %v938, %v916
  %v1159 = vpack.c.b16 %v939, %v917
  %v1160 = vpack.c.b16 %v940, %v918
  %v1161 = vpack.c.b16 %v941, %v919
  %v1162 = vpack.c.b16 %v942, %v920
  %v1163 = vpack.c.b16 %v943, %v921
  %v1164 = vpack.c.b16 %v944, %v922
  %v1165 = vpack.c.b16 %v945, %v923
  %v1166 = vpack.c.b16 %v946, %v924
  %v1167 = vpack.c.b16 %v947, %v925
  %v1168 = vpack.c.b16 %v948, %v926
  %v1169 = vpack.c.b16 %v949, %v927
  %v1170 = vpack.c.b16 %v950, %v928
  %v1171 = vpack.c.b16 %v951, %v951
  %v1172 = vpack.c.b16 %v952, %v952
  %v1173 = vpack.c.b16 %v953, %v953
  %v1174 = vpack.c.b16 %v954, %v954
  %v1175 = vpack.c.b16 %v955, %v955
  %v1176 = vpack.c.b16 %v956, %v956
  %v1177 = vpack.c.b16 %v957, %v957
  %v1178 = vpack.c.b16 %v958, %v958
  %v1179 = vpack.c.b16 %v959, %v959
  %v1180 = vpack.c.b16 %v960, %v960
  %v1181 = vpack.c.b16 %v961, %v961
  %v1182 = vpack.c.b16 %v962, %v962
  %v1183 = vpack.c.b16 %v963, %v963
  %v1184 = vpack.c.b16 %v964, %v964
  %v1185 = vpack.c.b16 %v965, %v965
  %v1186 = vpack.c.b16 %v966, %v966
  %v1187 = vpack.c.b16 %v967, %v967
  %v1188 = vpack.c.b16 %v968, %v968
  %v1189 = vpack.c.b16 %v969, %v969
  %v1190 = vpack.c.b16 %v970, %v970
  %v1191 = vpack.c.b16 %v971, %v971
  %v1192 = vpack.c.b16 %v972, %v972
  %vm1391 = vcmask 138240
  %v1393 = vsel %vm1391, %v20, 0
  %vm1395 = vcmask 1040384
  %v1396 = vsel 0, 4294967295, 65535
  %v1397 = vsel %vm1395, %v1396, 0
  %v1399 = vand.u32 %v1171, %v1397
  %v1402 = vand.u32 %v1172, %v1397
  %v1405 = vand.u32 %v1173, %v1397
  %v1408 = vand.u32 %v1174, %v1397
  %v1411 = vand.u32 %v1175, %v1397
  %v1414 = vand.u32 %v1176, %v1397
  %v1417 = vand.u32 %v1177, %v1397
  %v1420 = vand.u32 %v1178, %v1397
  %v1423 = vand.u32 %v1179, %v1397
  %v1426 = vand.u32 %v1180, %v1397
  %v1429 = vand.u32 %v1181, %v1397
  %v1432 = vand.u32 %v1182, %v1397
  %v1435 = vand.u32 %v1183, %v1397
  %v1438 = vand.u32 %v1184, %v1397
  %v1441 = vand.u32 %v1185, %v1397
  %v1444 = vand.u32 %v1186, %v1397
  %v1447 = vand.u32 %v1187, %v1397
  %v1450 = vand.u32 %v1188, %v1397
  %v1453 = vand.u32 %v1189, %v1397
  %v1456 = vand.u32 %v1190, %v1397
  %v1459 = vand.u32 %v1191, %v1397
  %v1462 = vand.u32 %v1192, %v1397
  %1464 = vmatprep.subr.bf16.mxu0 %v974
  %1465 = vmatpush1.bf16.msra.mxu0 %v973
  %1466 = vmatprep.subr.bf16.mxu0 %v996
  %1467 = vmatpush1.bf16.msra.mxu0 %v995
  %1468 = vmatprep.subr.bf16.mxu0 %v1018
  %1469 = vmatpush1.bf16.msra.mxu0 %v1017
  %1470 = vmatprep.subr.bf16.mxu0 %v1040
  %1471 = vmatpush1.bf16.msra.mxu0 %v1039
  %1472 = vmatprep.subr.bf16.mxu0 %v1062
  %1473 = vmatpush1.bf16.msra.mxu0 %v1061
  %1474 = vmatprep.subr.bf16.mxu0 %v1084
  %1475 = vmatpush1.bf16.msra.mxu0 %v1083
  %1476 = vmatprep.subr.bf16.mxu0 %v1106
  %1477 = vmatpush1.bf16.msra.mxu0 %v1105
  %1478 = vmatprep.subr.bf16.mxu0 %v1128
  %1479 = vmatpush1.bf16.msra.mxu0 %v1127
  %1480 = vmatprep.subr.bf16.mxu0 %v1150
  %1481 = vmatpush1.bf16.msra.mxu0 %v1149
  %1482 = vmatprep.subr.bf16.mxu0 %v1402
  %1483 = vmatpush1.bf16.msra.mxu0 %v1399
  %1484 = vmatprep.subr.bf16.mxu0 0
  %1485 = vmatpush1.bf16.msra.mxu0 0
  %1486 = vmatprep.subr.bf16.mxu0 0
  %1487 = vmatpush1.bf16.msra.mxu0 0
  %1488 = vmatprep.subr.bf16.mxu0 0
  %1489 = vmatpush1.bf16.msra.mxu0 0
  %1490 = vmatprep.subr.bf16.mxu0 0
  %1491 = vmatpush1.bf16.msra.mxu0 0
  %1492 = vmatprep.subr.bf16.mxu0 0
  %1493 = vmatpush1.bf16.msra.mxu0 0
  %1494 = vmatprep.subr.bf16.mxu0 0
  %1495 = vmatpush1.bf16.msra.mxu0 0
  %1496 = vmatprep.mubr.bf16.mxu0 %v1393
  %1497 = vmatmul.mubr.bf16.gmra.mrb[0].mxu0 %v19
  %v1498 = vpop.f32.mrb[0].mxu0
  %v1499 = vadd.f32 %v239, %v1498
  %v1500 = vpop.f32.mrb[0].mxu0
  %v1501 = vadd.f32 %v243, %v1500
  %v1502 = vpop.f32.mrb[0].mxu0
  %v1503 = vpop.f32.mrb[0].mxu0
  %1504 = vdwg.mxu0
  %1505 = vmatprep.subr.bf16.mxu0 %v976
  %1506 = vmatpush1.bf16.msra.mxu0 %v975
  %1507 = vmatprep.subr.bf16.mxu0 %v998
  %1508 = vmatpush1.bf16.msra.mxu0 %v997
  %1509 = vmatprep.subr.bf16.mxu0 %v1020
  %1510 = vmatpush1.bf16.msra.mxu0 %v1019
  %1511 = vmatprep.subr.bf16.mxu0 %v1042
  %1512 = vmatpush1.bf16.msra.mxu0 %v1041
  %1513 = vmatprep.subr.bf16.mxu0 %v1064
  %1514 = vmatpush1.bf16.msra.mxu0 %v1063
  %1515 = vmatprep.subr.bf16.mxu0 %v1086
  %1516 = vmatpush1.bf16.msra.mxu0 %v1085
  %1517 = vmatprep.subr.bf16.mxu0 %v1108
  %1518 = vmatpush1.bf16.msra.mxu0 %v1107
  %1519 = vmatprep.subr.bf16.mxu0 %v1130
  %1520 = vmatpush1.bf16.msra.mxu0 %v1129
  %1521 = vmatprep.subr.bf16.mxu0 %v1152
  %1522 = vmatpush1.bf16.msra.mxu0 %v1151
  %1523 = vmatprep.subr.bf16.mxu0 %v1408
  %1524 = vmatpush1.bf16.msra.mxu0 %v1405
  %1525 = vmatprep.subr.bf16.mxu0 0
  %1526 = vmatpush1.bf16.msra.mxu0 0
  %1527 = vmatprep.subr.bf16.mxu0 0
  %1528 = vmatpush1.bf16.msra.mxu0 0
  %1529 = vmatprep.subr.bf16.mxu0 0
  %1530 = vmatpush1.bf16.msra.mxu0 0
  %1531 = vmatprep.subr.bf16.mxu0 0
  %1532 = vmatpush1.bf16.msra.mxu0 0
  %1533 = vmatprep.subr.bf16.mxu0 0
  %1534 = vmatpush1.bf16.msra.mxu0 0
  %1535 = vmatprep.subr.bf16.mxu0 0
  %1536 = vmatpush1.bf16.msra.mxu0 0
  %1537 = vmatprep.mubr.bf16.mxu0 %v1393
  %1538 = vmatmul.mubr.bf16.gmra.mrb[0].mxu0 %v19
  %v1539 = vpop.f32.mrb[0].mxu0
  %v1540 = vadd.f32 %v247, %v1539
  %v1541 = vpop.f32.mrb[0].mxu0
  %v1542 = vadd.f32 %v251, %v1541
  %v1543 = vpop.f32.mrb[0].mxu0
  %v1544 = vpop.f32.mrb[0].mxu0
  %1545 = vdwg.mxu0
  %1546 = vmatprep.subr.bf16.mxu0 %v978
  %1547 = vmatpush1.bf16.msra.mxu0 %v977
  %1548 = vmatprep.subr.bf16.mxu0 %v1000
  %1549 = vmatpush1.bf16.msra.mxu0 %v999
  %1550 = vmatprep.subr.bf16.mxu0 %v1022
  %1551 = vmatpush1.bf16.msra.mxu0 %v1021
  %1552 = vmatprep.subr.bf16.mxu0 %v1044
  %1553 = vmatpush1.bf16.msra.mxu0 %v1043
  %1554 = vmatprep.subr.bf16.mxu0 %v1066
  %1555 = vmatpush1.bf16.msra.mxu0 %v1065
  %1556 = vmatprep.subr.bf16.mxu0 %v1088
  %1557 = vmatpush1.bf16.msra.mxu0 %v1087
  %1558 = vmatprep.subr.bf16.mxu0 %v1110
  %1559 = vmatpush1.bf16.msra.mxu0 %v1109
  %1560 = vmatprep.subr.bf16.mxu0 %v1132
  %1561 = vmatpush1.bf16.msra.mxu0 %v1131
  %1562 = vmatprep.subr.bf16.mxu0 %v1154
  %1563 = vmatpush1.bf16.msra.mxu0 %v1153
  %1564 = vmatprep.subr.bf16.mxu0 %v1414
  %1565 = vmatpush1.bf16.msra.mxu0 %v1411
  %1566 = vmatprep.subr.bf16.mxu0 0
  %1567 = vmatpush1.bf16.msra.mxu0 0
  %1568 = vmatprep.subr.bf16.mxu0 0
  %1569 = vmatpush1.bf16.msra.mxu0 0
  %1570 = vmatprep.subr.bf16.mxu0 0
  %1571 = vmatpush1.bf16.msra.mxu0 0
  %1572 = vmatprep.subr.bf16.mxu0 0
  %1573 = vmatpush1.bf16.msra.mxu0 0
  %1574 = vmatprep.subr.bf16.mxu0 0
  %1575 = vmatpush1.bf16.msra.mxu0 0
  %1576 = vmatprep.subr.bf16.mxu0 0
  %1577 = vmatpush1.bf16.msra.mxu0 0
  %1578 = vmatprep.mubr.bf16.mxu0 %v1393
  %1579 = vmatmul.mubr.bf16.gmra.mrb[0].mxu0 %v19
  %v1580 = vpop.f32.mrb[0].mxu0
  %v1581 = vadd.f32 %v255, %v1580
  %v1582 = vpop.f32.mrb[0].mxu0
  %v1583 = vadd.f32 %v259, %v1582
  %v1584 = vpop.f32.mrb[0].mxu0
  %v1585 = vpop.f32.mrb[0].mxu0
  %1586 = vdwg.mxu0
  %1587 = vmatprep.subr.bf16.mxu0 %v980
  %1588 = vmatpush1.bf16.msra.mxu0 %v979
  %1589 = vmatprep.subr.bf16.mxu0 %v1002
  %1590 = vmatpush1.bf16.msra.mxu0 %v1001
  %1591 = vmatprep.subr.bf16.mxu0 %v1024
  %1592 = vmatpush1.bf16.msra.mxu0 %v1023
  %1593 = vmatprep.subr.bf16.mxu0 %v1046
  %1594 = vmatpush1.bf16.msra.mxu0 %v1045
  %1595 = vmatprep.subr.bf16.mxu0 %v1068
  %1596 = vmatpush1.bf16.msra.mxu0 %v1067
  %1597 = vmatprep.subr.bf16.mxu0 %v1090
  %1598 = vmatpush1.bf16.msra.mxu0 %v1089
  %1599 = vmatprep.subr.bf16.mxu0 %v1112
  %1600 = vmatpush1.bf16.msra.mxu0 %v1111
  %1601 = vmatprep.subr.bf16.mxu0 %v1134
  %1602 = vmatpush1.bf16.msra.mxu0 %v1133
  %1603 = vmatprep.subr.bf16.mxu0 %v1156
  %1604 = vmatpush1.bf16.msra.mxu0 %v1155
  %1605 = vmatprep.subr.bf16.mxu0 %v1420
  %1606 = vmatpush1.bf16.msra.mxu0 %v1417
  %1607 = vmatprep.subr.bf16.mxu0 0
  %1608 = vmatpush1.bf16.msra.mxu0 0
  %1609 = vmatprep.subr.bf16.mxu0 0
  %1610 = vmatpush1.bf16.msra.mxu0 0
  %1611 = vmatprep.subr.bf16.mxu0 0
  %1612 = vmatpush1.bf16.msra.mxu0 0
  %1613 = vmatprep.subr.bf16.mxu0 0
  %1614 = vmatpush1.bf16.msra.mxu0 0
  %1615 = vmatprep.subr.bf16.mxu0 0
  %1616 = vmatpush1.bf16.msra.mxu0 0
  %1617 = vmatprep.subr.bf16.mxu0 0
  %1618 = vmatpush1.bf16.msra.mxu0 0
  %1619 = vmatprep.mubr.bf16.mxu0 %v1393
  %1620 = vmatmul.mubr.bf16.gmra.mrb[0].mxu0 %v19
  %v1621 = vpop.f32.mrb[0].mxu0
  %v1622 = vadd.f32 %v263, %v1621
  %v1623 = vpop.f32.mrb[0].mxu0
  %v1624 = vadd.f32 %v267, %v1623
  %v1625 = vpop.f32.mrb[0].mxu0
  %v1626 = vpop.f32.mrb[0].mxu0
  %1627 = vdwg.mxu0
  %1628 = vmatprep.subr.bf16.mxu0 %v982
  %1629 = vmatpush1.bf16.msra.mxu0 %v981
  %1630 = vmatprep.subr.bf16.mxu0 %v1004
  %1631 = vmatpush1.bf16.msra.mxu0 %v1003
  %1632 = vmatprep.subr.bf16.mxu0 %v1026
  %1633 = vmatpush1.bf16.msra.mxu0 %v1025
  %1634 = vmatprep.subr.bf16.mxu0 %v1048
  %1635 = vmatpush1.bf16.msra.mxu0 %v1047
  %1636 = vmatprep.subr.bf16.mxu0 %v1070
  %1637 = vmatpush1.bf16.msra.mxu0 %v1069
  %1638 = vmatprep.subr.bf16.mxu0 %v1092
  %1639 = vmatpush1.bf16.msra.mxu0 %v1091
  %1640 = vmatprep.subr.bf16.mxu0 %v1114
  %1641 = vmatpush1.bf16.msra.mxu0 %v1113
  %1642 = vmatprep.subr.bf16.mxu0 %v1136
  %1643 = vmatpush1.bf16.msra.mxu0 %v1135
  %1644 = vmatprep.subr.bf16.mxu0 %v1158
  %1645 = vmatpush1.bf16.msra.mxu0 %v1157
  %1646 = vmatprep.subr.bf16.mxu0 %v1426
  %1647 = vmatpush1.bf16.msra.mxu0 %v1423
  %1648 = vmatprep.subr.bf16.mxu0 0
  %1649 = vmatpush1.bf16.msra.mxu0 0
  %1650 = vmatprep.subr.bf16.mxu0 0
  %1651 = vmatpush1.bf16.msra.mxu0 0
  %1652 = vmatprep.subr.bf16.mxu0 0
  %1653 = vmatpush1.bf16.msra.mxu0 0
  %1654 = vmatprep.subr.bf16.mxu0 0
  %1655 = vmatpush1.bf16.msra.mxu0 0
  %1656 = vmatprep.subr.bf16.mxu0 0
  %1657 = vmatpush1.bf16.msra.mxu0 0
  %1658 = vmatprep.subr.bf16.mxu0 0
  %1659 = vmatpush1.bf16.msra.mxu0 0
  %1660 = vmatprep.mubr.bf16.mxu0 %v1393
  %1661 = vmatmul.mubr.bf16.gmra.mrb[0].mxu0 %v19
  %v1662 = vpop.f32.mrb[0].mxu0
  %v1663 = vadd.f32 %v271, %v1662
  %v1664 = vpop.f32.mrb[0].mxu0
  %v1665 = vadd.f32 %v275, %v1664
  %v1666 = vpop.f32.mrb[0].mxu0
  %v1667 = vpop.f32.mrb[0].mxu0
  %1668 = vdwg.mxu0
  %1669 = vmatprep.subr.bf16.mxu0 %v984
  %1670 = vmatpush1.bf16.msra.mxu0 %v983
  %1671 = vmatprep.subr.bf16.mxu0 %v1006
  %1672 = vmatpush1.bf16.msra.mxu0 %v1005
  %1673 = vmatprep.subr.bf16.mxu0 %v1028
  %1674 = vmatpush1.bf16.msra.mxu0 %v1027
  %1675 = vmatprep.subr.bf16.mxu0 %v1050
  %1676 = vmatpush1.bf16.msra.mxu0 %v1049
  %1677 = vmatprep.subr.bf16.mxu0 %v1072
  %1678 = vmatpush1.bf16.msra.mxu0 %v1071
  %1679 = vmatprep.subr.bf16.mxu0 %v1094
  %1680 = vmatpush1.bf16.msra.mxu0 %v1093
  %1681 = vmatprep.subr.bf16.mxu0 %v1116
  %1682 = vmatpush1.bf16.msra.mxu0 %v1115
  %1683 = vmatprep.subr.bf16.mxu0 %v1138
  %1684 = vmatpush1.bf16.msra.mxu0 %v1137
  %1685 = vmatprep.subr.bf16.mxu0 %v1160
  %1686 = vmatpush1.bf16.msra.mxu0 %v1159
  %1687 = vmatprep.subr.bf16.mxu0 %v1432
  %1688 = vmatpush1.bf16.msra.mxu0 %v1429
  %1689 = vmatprep.subr.bf16.mxu0 0
  %1690 = vmatpush1.bf16.msra.mxu0 0
  %1691 = vmatprep.subr.bf16.mxu0 0
  %1692 = vmatpush1.bf16.msra.mxu0 0
  %1693 = vmatprep.subr.bf16.mxu0 0
  %1694 = vmatpush1.bf16.msra.mxu0 0
  %1695 = vmatprep.subr.bf16.mxu0 0
  %1696 = vmatpush1.bf16.msra.mxu0 0
  %1697 = vmatprep.subr.bf16.mxu0 0
  %1698 = vmatpush1.bf16.msra.mxu0 0
  %1699 = vmatprep.subr.bf16.mxu0 0
  %1700 = vmatpush1.bf16.msra.mxu0 0
  %1701 = vmatprep.mubr.bf16.mxu0 %v1393
  %1702 = vmatmul.mubr.bf16.gmra.mrb[0].mxu0 %v19
  %v1703 = vpop.f32.mrb[0].mxu0
  %v1704 = vadd.f32 %v279, %v1703
  %v1705 = vpop.f32.mrb[0].mxu0
  %v1706 = vadd.f32 %v283, %v1705
  %v1707 = vpop.f32.mrb[0].mxu0
  %v1708 = vpop.f32.mrb[0].mxu0
  %1709 = vdwg.mxu0
  %1710 = vmatprep.subr.bf16.mxu0 %v986
  %1711 = vmatpush1.bf16.msra.mxu0 %v985
  %1712 = vmatprep.subr.bf16.mxu0 %v1008
  %1713 = vmatpush1.bf16.msra.mxu0 %v1007
  %1714 = vmatprep.subr.bf16.mxu0 %v1030
  %1715 = vmatpush1.bf16.msra.mxu0 %v1029
  %1716 = vmatprep.subr.bf16.mxu0 %v1052
  %1717 = vmatpush1.bf16.msra.mxu0 %v1051
  %1718 = vmatprep.subr.bf16.mxu0 %v1074
  %1719 = vmatpush1.bf16.msra.mxu0 %v1073
  %1720 = vmatprep.subr.bf16.mxu0 %v1096
  %1721 = vmatpush1.bf16.msra.mxu0 %v1095
  %1722 = vmatprep.subr.bf16.mxu0 %v1118
  %1723 = vmatpush1.bf16.msra.mxu0 %v1117
  %1724 = vmatprep.subr.bf16.mxu0 %v1140
  %1725 = vmatpush1.bf16.msra.mxu0 %v1139
  %1726 = vmatprep.subr.bf16.mxu0 %v1162
  %1727 = vmatpush1.bf16.msra.mxu0 %v1161
  %1728 = vmatprep.subr.bf16.mxu0 %v1438
  %1729 = vmatpush1.bf16.msra.mxu0 %v1435
  %1730 = vmatprep.subr.bf16.mxu0 0
  %1731 = vmatpush1.bf16.msra.mxu0 0
  %1732 = vmatprep.subr.bf16.mxu0 0
  %1733 = vmatpush1.bf16.msra.mxu0 0
  %1734 = vmatprep.subr.bf16.mxu0 0
  %1735 = vmatpush1.bf16.msra.mxu0 0
  %1736 = vmatprep.subr.bf16.mxu0 0
  %1737 = vmatpush1.bf16.msra.mxu0 0
  %1738 = vmatprep.subr.bf16.mxu0 0
  %1739 = vmatpush1.bf16.msra.mxu0 0
  %1740 = vmatprep.subr.bf16.mxu0 0
  %1741 = vmatpush1.bf16.msra.mxu0 0
  %1742 = vmatprep.mubr.bf16.mxu0 %v1393
  %1743 = vmatmul.mubr.bf16.gmra.mrb[0].mxu0 %v19
  %v1744 = vpop.f32.mrb[0].mxu0
  %v1745 = vadd.f32 %v287, %v1744
  %v1746 = vpop.f32.mrb[0].mxu0
  %v1747 = vadd.f32 %v291, %v1746
  %v1748 = vpop.f32.mrb[0].mxu0
  %v1749 = vpop.f32.mrb[0].mxu0
  %1750 = vdwg.mxu0
  %1751 = vmatprep.subr.bf16.mxu0 %v988
  %1752 = vmatpush1.bf16.msra.mxu0 %v987
  %1753 = vmatprep.subr.bf16.mxu0 %v1010
  %1754 = vmatpush1.bf16.msra.mxu0 %v1009
  %1755 = vmatprep.subr.bf16.mxu0 %v1032
  %1756 = vmatpush1.bf16.msra.mxu0 %v1031
  %1757 = vmatprep.subr.bf16.mxu0 %v1054
  %1758 = vmatpush1.bf16.msra.mxu0 %v1053
  %1759 = vmatprep.subr.bf16.mxu0 %v1076
  %1760 = vmatpush1.bf16.msra.mxu0 %v1075
  %1761 = vmatprep.subr.bf16.mxu0 %v1098
  %1762 = vmatpush1.bf16.msra.mxu0 %v1097
  %1763 = vmatprep.subr.bf16.mxu0 %v1120
  %1764 = vmatpush1.bf16.msra.mxu0 %v1119
  %1765 = vmatprep.subr.bf16.mxu0 %v1142
  %1766 = vmatpush1.bf16.msra.mxu0 %v1141
  %1767 = vmatprep.subr.bf16.mxu0 %v1164
  %1768 = vmatpush1.bf16.msra.mxu0 %v1163
  %1769 = vmatprep.subr.bf16.mxu0 %v1444
  %1770 = vmatpush1.bf16.msra.mxu0 %v1441
  %1771 = vmatprep.subr.bf16.mxu0 0
  %1772 = vmatpush1.bf16.msra.mxu0 0
  %1773 = vmatprep.subr.bf16.mxu0 0
  %1774 = vmatpush1.bf16.msra.mxu0 0
  %1775 = vmatprep.subr.bf16.mxu0 0
  %1776 = vmatpush1.bf16.msra.mxu0 0
  %1777 = vmatprep.subr.bf16.mxu0 0
  %1778 = vmatpush1.bf16.msra.mxu0 0
  %1779 = vmatprep.subr.bf16.mxu0 0
  %1780 = vmatpush1.bf16.msra.mxu0 0
  %1781 = vmatprep.subr.bf16.mxu0 0
  %1782 = vmatpush1.bf16.msra.mxu0 0
  %1783 = vmatprep.mubr.bf16.mxu0 %v1393
  %1784 = vmatmul.mubr.bf16.gmra.mrb[0].mxu0 %v19
  %v1785 = vpop.f32.mrb[0].mxu0
  %v1786 = vadd.f32 %v295, %v1785
  %v1787 = vpop.f32.mrb[0].mxu0
  %v1788 = vadd.f32 %v299, %v1787
  %v1789 = vpop.f32.mrb[0].mxu0
  %v1790 = vpop.f32.mrb[0].mxu0
  %1791 = vdwg.mxu0
  %1792 = vmatprep.subr.bf16.mxu0 %v990
  %1793 = vmatpush1.bf16.msra.mxu0 %v989
  %1794 = vmatprep.subr.bf16.mxu0 %v1012
  %1795 = vmatpush1.bf16.msra.mxu0 %v1011
  %1796 = vmatprep.subr.bf16.mxu0 %v1034
  %1797 = vmatpush1.bf16.msra.mxu0 %v1033
  %1798 = vmatprep.subr.bf16.mxu0 %v1056
  %1799 = vmatpush1.bf16.msra.mxu0 %v1055
  %1800 = vmatprep.subr.bf16.mxu0 %v1078
  %1801 = vmatpush1.bf16.msra.mxu0 %v1077
  %1802 = vmatprep.subr.bf16.mxu0 %v1100
  %1803 = vmatpush1.bf16.msra.mxu0 %v1099
  %1804 = vmatprep.subr.bf16.mxu0 %v1122
  %1805 = vmatpush1.bf16.msra.mxu0 %v1121
  %1806 = vmatprep.subr.bf16.mxu0 %v1144
  %1807 = vmatpush1.bf16.msra.mxu0 %v1143
  %1808 = vmatprep.subr.bf16.mxu0 %v1166
  %1809 = vmatpush1.bf16.msra.mxu0 %v1165
  %1810 = vmatprep.subr.bf16.mxu0 %v1450
  %1811 = vmatpush1.bf16.msra.mxu0 %v1447
  %1812 = vmatprep.subr.bf16.mxu0 0
  %1813 = vmatpush1.bf16.msra.mxu0 0
  %1814 = vmatprep.subr.bf16.mxu0 0
  %1815 = vmatpush1.bf16.msra.mxu0 0
  %1816 = vmatprep.subr.bf16.mxu0 0
  %1817 = vmatpush1.bf16.msra.mxu0 0
  %1818 = vmatprep.subr.bf16.mxu0 0
  %1819 = vmatpush1.bf16.msra.mxu0 0
  %1820 = vmatprep.subr.bf16.mxu0 0
  %1821 = vmatpush1.bf16.msra.mxu0 0
  %1822 = vmatprep.subr.bf16.mxu0 0
  %1823 = vmatpush1.bf16.msra.mxu0 0
  %1824 = vmatprep.mubr.bf16.mxu0 %v1393
  %1825 = vmatmul.mubr.bf16.gmra.mrb[0].mxu0 %v19
  %v1826 = vpop.f32.mrb[0].mxu0
  %v1827 = vadd.f32 %v303, %v1826
  %v1828 = vpop.f32.mrb[0].mxu0
  %v1829 = vadd.f32 %v307, %v1828
  %v1830 = vpop.f32.mrb[0].mxu0
  %v1831 = vpop.f32.mrb[0].mxu0
  %1832 = vdwg.mxu0
  %1833 = vmatprep.subr.bf16.mxu0 %v992
  %1834 = vmatpush1.bf16.msra.mxu0 %v991
  %1835 = vmatprep.subr.bf16.mxu0 %v1014
  %1836 = vmatpush1.bf16.msra.mxu0 %v1013
  %1837 = vmatprep.subr.bf16.mxu0 %v1036
  %1838 = vmatpush1.bf16.msra.mxu0 %v1035
  %1839 = vmatprep.subr.bf16.mxu0 %v1058
  %1840 = vmatpush1.bf16.msra.mxu0 %v1057
  %1841 = vmatprep.subr.bf16.mxu0 %v1080
  %1842 = vmatpush1.bf16.msra.mxu0 %v1079
  %1843 = vmatprep.subr.bf16.mxu0 %v1102
  %1844 = vmatpush1.bf16.msra.mxu0 %v1101
  %1845 = vmatprep.subr.bf16.mxu0 %v1124
  %1846 = vmatpush1.bf16.msra.mxu0 %v1123
  %1847 = vmatprep.subr.bf16.mxu0 %v1146
  %1848 = vmatpush1.bf16.msra.mxu0 %v1145
  %1849 = vmatprep.subr.bf16.mxu0 %v1168
  %1850 = vmatpush1.bf16.msra.mxu0 %v1167
  %1851 = vmatprep.subr.bf16.mxu0 %v1456
  %1852 = vmatpush1.bf16.msra.mxu0 %v1453
  %1853 = vmatprep.subr.bf16.mxu0 0
  %1854 = vmatpush1.bf16.msra.mxu0 0
  %1855 = vmatprep.subr.bf16.mxu0 0
  %1856 = vmatpush1.bf16.msra.mxu0 0
  %1857 = vmatprep.subr.bf16.mxu0 0
  %1858 = vmatpush1.bf16.msra.mxu0 0
  %1859 = vmatprep.subr.bf16.mxu0 0
  %1860 = vmatpush1.bf16.msra.mxu0 0
  %1861 = vmatprep.subr.bf16.mxu0 0
  %1862 = vmatpush1.bf16.msra.mxu0 0
  %1863 = vmatprep.subr.bf16.mxu0 0
  %1864 = vmatpush1.bf16.msra.mxu0 0
  %1865 = vmatprep.mubr.bf16.mxu0 %v1393
  %1866 = vmatmul.mubr.bf16.gmra.mrb[0].mxu0 %v19
  %v1867 = vpop.f32.mrb[0].mxu0
  %v1868 = vadd.f32 %v311, %v1867
  %v1869 = vpop.f32.mrb[0].mxu0
  %v1870 = vadd.f32 %v315, %v1869
  %v1871 = vpop.f32.mrb[0].mxu0
  %v1872 = vpop.f32.mrb[0].mxu0
  %1873 = vdwg.mxu0
  %1874 = vmatprep.subr.bf16.mxu0 %v994
  %1875 = vmatpush1.bf16.msra.mxu0 %v993
  %1876 = vmatprep.subr.bf16.mxu0 %v1016
  %1877 = vmatpush1.bf16.msra.mxu0 %v1015
  %1878 = vmatprep.subr.bf16.mxu0 %v1038
  %1879 = vmatpush1.bf16.msra.mxu0 %v1037
  %1880 = vmatprep.subr.bf16.mxu0 %v1060
  %1881 = vmatpush1.bf16.msra.mxu0 %v1059
  %1882 = vmatprep.subr.bf16.mxu0 %v1082
  %1883 = vmatpush1.bf16.msra.mxu0 %v1081
  %1884 = vmatprep.subr.bf16.mxu0 %v1104
  %1885 = vmatpush1.bf16.msra.mxu0 %v1103
  %1886 = vmatprep.subr.bf16.mxu0 %v1126
  %1887 = vmatpush1.bf16.msra.mxu0 %v1125
  %1888 = vmatprep.subr.bf16.mxu0 %v1148
  %1889 = vmatpush1.bf16.msra.mxu0 %v1147
  %1890 = vmatprep.subr.bf16.mxu0 %v1170
  %1891 = vmatpush1.bf16.msra.mxu0 %v1169
  %1892 = vmatprep.subr.bf16.mxu0 %v1462
  %1893 = vmatpush1.bf16.msra.mxu0 %v1459
  %1894 = vmatprep.subr.bf16.mxu0 0
  %1895 = vmatpush1.bf16.msra.mxu0 0
  %1896 = vmatprep.subr.bf16.mxu0 0
  %1897 = vmatpush1.bf16.msra.mxu0 0
  %1898 = vmatprep.subr.bf16.mxu0 0
  %1899 = vmatpush1.bf16.msra.mxu0 0
  %1900 = vmatprep.subr.bf16.mxu0 0
  %1901 = vmatpush1.bf16.msra.mxu0 0
  %1902 = vmatprep.subr.bf16.mxu0 0
  %1903 = vmatpush1.bf16.msra.mxu0 0
  %1904 = vmatprep.subr.bf16.mxu0 0
  %1905 = vmatpush1.bf16.msra.mxu0 0
  %1906 = vmatprep.mubr.bf16.mxu0 %v1393
  %1907 = vmatmul.mubr.bf16.gmra.mrb[0].mxu0 %v19
  %v1908 = vpop.f32.mrb[0].mxu0
  %v1909 = vadd.f32 %v319, %v1908
  %v1910 = vpop.f32.mrb[0].mxu0
  %v1911 = vadd.f32 %v323, %v1910
  %v1912 = vpop.f32.mrb[0].mxu0
  %v1913 = vpop.f32.mrb[0].mxu0
  %1914 = vdwg.mxu0
  %1915 = vst [vmem:[%s3] sm:$0xff] %v1499
  %1916 = vst [vmem:[%s3 + $0x8] sm:$0xff] %v1501
  %1917 = vst [vmem:[%s3 + $0x10] sm:$0xff] %v1540
  %1918 = vst [vmem:[%s3 + $0x18] sm:$0xff] %v1542
  %1919 = vst [vmem:[%s3 + $0x20] sm:$0xff] %v1581
  %1920 = vst [vmem:[%s3 + $0x28] sm:$0xff] %v1583
  %1921 = vst [vmem:[%s3 + $0x30] sm:$0xff] %v1622
  %1922 = vst [vmem:[%s3 + $0x38] sm:$0xff] %v1624
  %1923 = vst [vmem:[%s3 + $0x40] sm:$0xff] %v1663
  %1924 = vst [vmem:[%s3 + $0x48] sm:$0xff] %v1665
  %1925 = vst [vmem:[%s3 + $0x50] sm:$0xff] %v1704
  %1926 = vst [vmem:[%s3 + $0x58] sm:$0xff] %v1706
  %1927 = vst [vmem:[%s3 + $0x60] sm:$0xff] %v1745
  %1928 = vst [vmem:[%s3 + $0x68] sm:$0xff] %v1747
  %1929 = vst [vmem:[%s3 + $0x70] sm:$0xff] %v1786
  %1930 = vst [vmem:[%s3 + $0x78] sm:$0xff] %v1788
  %1931 = vst [vmem:[%s3 + $0x80] sm:$0xff] %v1827
  %1932 = vst [vmem:[%s3 + $0x88] sm:$0xff] %v1829
  %1933 = vst [vmem:[%s3 + $0x90] sm:$0xff] %v1868
  %1934 = vst [vmem:[%s3 + $0x98] sm:$0xff] %v1870
  %1935 = vst [vmem:[%s3 + $0xa0] sm:$0xff] %v1909
  %1936 = vst [vmem:[%s4] sm:$0xff] %v1911
  // Predicated region
  $region14: #{mano_forward.2} parent=0 // pred_check
    _
  $region15: #{mano_forward.2} parent=0 // pred_check_branch
    %1938 = sbr.rel (0) target = $region17
  $region16: #{mano_forward.2} parent=0 // pred_region
    _
  $region17: #{mano_forward.2} parent=0 // pred_fallthru
    _
  // Predicated region
  $region18: #{mano_forward.2} parent=0 // pred_check
    _
  $region19: #{mano_forward.2} parent=0 // pred_check_branch
    %1940 = sbr.rel (0) target = $region21
  $region20: #{mano_forward.2} parent=0 // pred_region
    _
  $region21: #{mano_forward.2} parent=0 // pred_fallthru
    _
  // Predicated region
  $region22: #{mano_forward.2} parent=0 // pred_check
    _
  $region23: #{mano_forward.2} parent=0 // pred_check_branch
    %1942 = sbr.rel (0) target = $region25
  $region24: #{mano_forward.2} parent=0 // pred_region
    _
  $region25: #{mano_forward.2} parent=0 // pred_fallthru
    _
  // Predicated region
  $region26: #{mano_forward.2} parent=0 // pred_check
    _
  $region27: #{mano_forward.2} parent=0 // pred_check_branch
    %1944 = sbr.rel (0) target = $region29
  $region28: #{mano_forward.2} parent=0 // pred_region
    _
  $region29: #{mano_forward.2} parent=0 // pred_fallthru
    _

// kernel: mano_forward.3
$region0: #{mano_forward.3}
  #allocation0 [shape = 'u32[]', space=smem, size = 0x4, offset = 0x4, fixed_abs, tag = 'smem constant byte address 0x4 - core index']
  #allocation1 [shape = 'u32[144,128]{1,0:T(1,128)}', space=vmem, size = 0x12000, scoped, tag = 'internal scratch']
  %s0 = inlined_call_operand.vmem [shape: f32[1,96,16], index: 0, kind: input, shape index: {}]
  %s1 = inlined_call_operand.vmem [shape: f32[16,896], index: 1, kind: input, shape index: {}]
  %s2 = inlined_call_operand.vmem [shape: f32[896,21], index: 2, kind: input, shape index: {}]
  %s3 = inlined_call_operand.vmem [shape: f32[8,2688], index: 3, kind: input, shape index: {}]
  %s4 = inlined_call_operand.vmem [shape: f32[8,3], index: 4, kind: input, shape index: {}]
  %s5 = inlined_call_operand.vmem [shape: f32[8,2688], index: 5, kind: output, shape index: {0}]
  %s6 = inlined_call_operand.vmem [shape: f32[3,8,21], index: 6, kind: output, shape index: {1}]
  %7 = xla_tuple %s5, %s6
  %s8 = sld [smem:[#allocation0]]
  $region38: #{mano_forward.3} parent=0
    _
  %s10 = ssub.s32 1, %s8
  %s11 = scalar_select 0, %s10, %s8
  // Predicated region
  $region2: #{mano_forward.3} parent=0 // pred_check
    _
  $region3: #{mano_forward.3} parent=0 // pred_check_branch
    %13 = sbr.rel (0) target = $region5
  $region4: #{mano_forward.3} parent=0 // pred_region
    _
  $region5: #{mano_forward.3} parent=0 // pred_fallthru
    _
  // Predicated region
  $region6: #{mano_forward.3} parent=0 // pred_check
    _
  $region7: #{mano_forward.3} parent=0 // pred_check_branch
    %15 = sbr.rel (0) target = $region9
  $region8: #{mano_forward.3} parent=0 // pred_region
    _
  $region9: #{mano_forward.3} parent=0 // pred_fallthru
    _
  // Predicated region
  $region10: #{mano_forward.3} parent=0 // pred_check
    _
  $region11: #{mano_forward.3} parent=0 // pred_check_branch
    %17 = sbr.rel (0) target = $region13
  $region12: #{mano_forward.3} parent=0 // pred_region
    _
  $region13: #{mano_forward.3} parent=0 // pred_fallthru
    _
  // Predicated region
  $region14: #{mano_forward.3} parent=0 // pred_check
    _
  $region15: #{mano_forward.3} parent=0 // pred_check_branch
    %19 = sbr.rel (0) target = $region17
  $region16: #{mano_forward.3} parent=0 // pred_region
    _
  $region17: #{mano_forward.3} parent=0 // pred_fallthru
    _
  // Predicated region
  $region18: #{mano_forward.3} parent=0 // pred_check
    _
  $region19: #{mano_forward.3} parent=0 // pred_check_branch
    %21 = sbr.rel (0) target = $region21
  $region20: #{mano_forward.3} parent=0 // pred_region
    _
  $region21: #{mano_forward.3} parent=0 // pred_fallthru
    _
  %v22 = vld [vmem:[%s1] sm:$0xff]
  %v23 = vld [vmem:[%s1 + $0x8] sm:$0xff]
  %v24 = vld [vmem:[%s1 + $0x10] sm:$0xff]
  %v25 = vld [vmem:[%s1 + $0x18] sm:$0xff]
  %v26 = vld [vmem:[%s1 + $0x20] sm:$0xff]
  %v27 = vld [vmem:[%s1 + $0x28] sm:$0xff]
  %v28 = vld [vmem:[%s1 + $0x30] sm:$0xff]
  %v29 = vld [vmem:[%s1 + $0x38] sm:$0xff]
  %v30 = vld [vmem:[%s1 + $0x40] sm:$0xff]
  %v31 = vld [vmem:[%s1 + $0x48] sm:$0xff]
  %v32 = vld [vmem:[%s1 + $0x50] sm:$0xff]
  %v33 = vld [vmem:[%s1 + $0x58] sm:$0xff]
  %v34 = vld [vmem:[%s1 + $0x60] sm:$0xff]
  %v35 = vld [vmem:[%s1 + $0x68] sm:$0xff]
  %v36 = vld [vmem:[%s2] sm:$0xff]
  %v37 = vld [vmem:[%s2 + $0x8] sm:$0xff]
  %v38 = vld [vmem:[%s2 + $0x10] sm:$0xff]
  %v39 = vld [vmem:[%s2 + $0x18] sm:$0xff]
  %v40 = vld [vmem:[%s2 + $0x20] sm:$0xff]
  %v41 = vld [vmem:[%s2 + $0x28] sm:$0xff]
  %v42 = vld [vmem:[%s2 + $0x30] sm:$0xff]
  %v43 = vld [vmem:[%s2 + $0x38] sm:$0xff]
  %v44 = vld [vmem:[%s2 + $0x40] sm:$0xff]
  %v45 = vld [vmem:[%s2 + $0x48] sm:$0xff]
  %v46 = vld [vmem:[%s2 + $0x50] sm:$0xff]
  %v47 = vld [vmem:[%s2 + $0x58] sm:$0xff]
  %v48 = vld [vmem:[%s2 + $0x60] sm:$0xff]
  %v49 = vld [vmem:[%s2 + $0x68] sm:$0xff]
  %v50 = vld [vmem:[%s2 + $0x70] sm:$0xff]
  %v51 = vld [vmem:[%s2 + $0x78] sm:$0xff]
  %v52 = vld [vmem:[%s2 + $0x80] sm:$0xff]
  %v53 = vld [vmem:[%s2 + $0x88] sm:$0xff]
  %v54 = vld [vmem:[%s2 + $0x90] sm:$0xff]
  %v55 = vld [vmem:[%s2 + $0x98] sm:$0xff]
  %v56 = vld [vmem:[%s2 + $0xa0] sm:$0xff]
  %v57 = vld [vmem:[%s2 + $0xa8] sm:$0xff]
  %v58 = vld [vmem:[%s2 + $0xb0] sm:$0xff]
  %v59 = vld [vmem:[%s2 + $0xb8] sm:$0xff]
  %v60 = vld [vmem:[%s2 + $0xc0] sm:$0xff]
  %v61 = vld [vmem:[%s2 + $0xc8] sm:$0xff]
  %v62 = vld [vmem:[%s2 + $0xd0] sm:$0xff]
  %v63 = vld [vmem:[%s2 + $0xd8] sm:$0xff]
  %v64 = vld [vmem:[%s2 + $0xe0] sm:$0xff]
  %v65 = vld [vmem:[%s2 + $0xe8] sm:$0xff]
  %v66 = vld [vmem:[%s2 + $0xf0] sm:$0xff]
  %v67 = vld [vmem:[%s2 + $0xf8] sm:$0xff]
  %v68 = vld [vmem:[%s2 + $0x100] sm:$0xff]
  %v69 = vld [vmem:[%s2 + $0x108] sm:$0xff]
  %v70 = vld [vmem:[%s2 + $0x110] sm:$0xff]
  %v71 = vld [vmem:[%s2 + $0x118] sm:$0xff]
  %v72 = vld [vmem:[%s2 + $0x120] sm:$0xff]
  %v73 = vld [vmem:[%s2 + $0x128] sm:$0xff]
  %v74 = vld [vmem:[%s2 + $0x130] sm:$0xff]
  %v75 = vld [vmem:[%s2 + $0x138] sm:$0xff]
  %v76 = vld [vmem:[%s2 + $0x140] sm:$0xff]
  %v77 = vld [vmem:[%s2 + $0x148] sm:$0xff]
  %v78 = vld [vmem:[%s2 + $0x150] sm:$0xff]
  %v79 = vld [vmem:[%s2 + $0x158] sm:$0xff]
  %v80 = vld [vmem:[%s2 + $0x160] sm:$0xff]
  %v81 = vld [vmem:[%s2 + $0x168] sm:$0xff]
  %v82 = vld [vmem:[%s2 + $0x170] sm:$0xff]
  %v83 = vld [vmem:[%s2 + $0x178] sm:$0xff]
  %v84 = vld [vmem:[%s2 + $0x180] sm:$0xff]
  %v85 = vld [vmem:[%s2 + $0x188] sm:$0xff]
  %v86 = vld [vmem:[%s2 + $0x190] sm:$0xff]
  %v87 = vld [vmem:[%s2 + $0x198] sm:$0xff]
  %v88 = vld [vmem:[%s2 + $0x1a0] sm:$0xff]
  %v89 = vld [vmem:[%s2 + $0x1a8] sm:$0xff]
  %v90 = vld [vmem:[%s2 + $0x1b0] sm:$0xff]
  %v91 = vld [vmem:[%s2 + $0x1b8] sm:$0xff]
  %v92 = vld [vmem:[%s2 + $0x1c0] sm:$0xff]
  %v93 = vld [vmem:[%s2 + $0x1c8] sm:$0xff]
  %v94 = vld [vmem:[%s2 + $0x1d0] sm:$0xff]
  %v95 = vld [vmem:[%s2 + $0x1d8] sm:$0xff]
  %v96 = vld [vmem:[%s2 + $0x1e0] sm:$0xff]
  %v97 = vld [vmem:[%s2 + $0x1e8] sm:$0xff]
  %v98 = vld [vmem:[%s2 + $0x1f0] sm:$0xff]
  %v99 = vld [vmem:[%s2 + $0x1f8] sm:$0xff]
  %v100 = vld [vmem:[%s2 + $0x200] sm:$0xff]
  %v101 = vld [vmem:[%s2 + $0x208] sm:$0xff]
  %v102 = vld [vmem:[%s2 + $0x210] sm:$0xff]
  %v103 = vld [vmem:[%s2 + $0x218] sm:$0xff]
  %v104 = vld [vmem:[%s2 + $0x220] sm:$0xff]
  %v105 = vld [vmem:[%s2 + $0x228] sm:$0xff]
  %v106 = vld [vmem:[%s2 + $0x230] sm:$0xff]
  %v107 = vld [vmem:[%s2 + $0x238] sm:$0xff]
  %v108 = vld [vmem:[%s2 + $0x240] sm:$0xff]
  %v109 = vld [vmem:[%s2 + $0x248] sm:$0xff]
  %v110 = vld [vmem:[%s2 + $0x250] sm:$0xff]
  %v111 = vld [vmem:[%s2 + $0x258] sm:$0xff]
  %v112 = vld [vmem:[%s2 + $0x260] sm:$0xff]
  %v113 = vld [vmem:[%s2 + $0x268] sm:$0xff]
  %v114 = vld [vmem:[%s2 + $0x270] sm:$0xff]
  %v115 = vld [vmem:[%s2 + $0x278] sm:$0xff]
  %v116 = vld [vmem:[%s2 + $0x280] sm:$0xff]
  %v117 = vld [vmem:[%s2 + $0x288] sm:$0xff]
  %v118 = vld [vmem:[%s2 + $0x290] sm:$0xff]
  %v119 = vld [vmem:[%s2 + $0x298] sm:$0xff]
  %v120 = vld [vmem:[%s2 + $0x2a0] sm:$0xff]
  %v121 = vld [vmem:[%s2 + $0x2a8] sm:$0xff]
  %v122 = vld [vmem:[%s2 + $0x2b0] sm:$0xff]
  %v123 = vld [vmem:[%s2 + $0x2b8] sm:$0xff]
  %v124 = vld [vmem:[%s2 + $0x2c0] sm:$0xff]
  %v125 = vld [vmem:[%s2 + $0x2c8] sm:$0xff]
  %v126 = vld [vmem:[%s2 + $0x2d0] sm:$0xff]
  %v127 = vld [vmem:[%s2 + $0x2d8] sm:$0xff]
  %v128 = vld [vmem:[%s2 + $0x2e0] sm:$0xff]
  %v129 = vld [vmem:[%s2 + $0x2e8] sm:$0xff]
  %v130 = vld [vmem:[%s2 + $0x2f0] sm:$0xff]
  %v131 = vld [vmem:[%s2 + $0x2f8] sm:$0xff]
  %v132 = vld [vmem:[%s2 + $0x300] sm:$0xff]
  %v133 = vld [vmem:[%s2 + $0x308] sm:$0xff]
  %v134 = vld [vmem:[%s2 + $0x310] sm:$0xff]
  %v135 = vld [vmem:[%s2 + $0x318] sm:$0xff]
  %v136 = vld [vmem:[%s2 + $0x320] sm:$0xff]
  %v137 = vld [vmem:[%s2 + $0x328] sm:$0xff]
  %v138 = vld [vmem:[%s2 + $0x330] sm:$0xff]
  %v139 = vld [vmem:[%s2 + $0x338] sm:$0xff]
  %v140 = vld [vmem:[%s2 + $0x340] sm:$0xff]
  %v141 = vld [vmem:[%s2 + $0x348] sm:$0xff]
  %v142 = vld [vmem:[%s2 + $0x350] sm:$0xff]
  %v143 = vld [vmem:[%s2 + $0x358] sm:$0xff]
  %v144 = vld [vmem:[%s2 + $0x360] sm:$0xff]
  %v145 = vld [vmem:[%s2 + $0x368] sm:$0xff]
  %v146 = vld [vmem:[%s2 + $0x370] sm:$0xff]
  %v147 = vld [vmem:[%s2 + $0x378] sm:$0xff]
  %v148 = vld [vmem:[%s3] sm:$0xff]
  %v149 = vld [vmem:[%s3 + $0x8] sm:$0xff]
  %v150 = vld [vmem:[%s3 + $0x10] sm:$0xff]
  %v151 = vld [vmem:[%s3 + $0x18] sm:$0xff]
  %v152 = vld [vmem:[%s3 + $0x20] sm:$0xff]
  %v153 = vld [vmem:[%s3 + $0x28] sm:$0xff]
  %v154 = vld [vmem:[%s3 + $0x30] sm:$0xff]
  %v155 = vld [vmem:[%s3 + $0x38] sm:$0xff]
  %v156 = vld [vmem:[%s3 + $0x40] sm:$0xff]
  %v157 = vld [vmem:[%s3 + $0x48] sm:$0xff]
  %v158 = vld [vmem:[%s3 + $0x50] sm:$0xff]
  %v159 = vld [vmem:[%s3 + $0x58] sm:$0xff]
  %v160 = vld [vmem:[%s3 + $0x60] sm:$0xff]
  %v161 = vld [vmem:[%s3 + $0x68] sm:$0xff]
  %v162 = vld [vmem:[%s3 + $0x70] sm:$0xff]
  %v163 = vld [vmem:[%s3 + $0x78] sm:$0xff]
  %v164 = vld [vmem:[%s3 + $0x80] sm:$0xff]
  %v165 = vld [vmem:[%s3 + $0x88] sm:$0xff]
  %v166 = vld [vmem:[%s3 + $0x90] sm:$0xff]
  %v167 = vld [vmem:[%s3 + $0x98] sm:$0xff]
  %v168 = vld [vmem:[%s3 + $0xa0] sm:$0xff]
  %v169 = vld [vmem:[%s4] sm:$0xff]
  %v170 = vld [vmem:[%s0] sm:$0xff]
  %v171 = vld [vmem:[%s0 + $0x8] sm:$0xff]
  %v172 = vld [vmem:[%s0 + $0x10] sm:$0xff]
  %v173 = vld [vmem:[%s0 + $0x18] sm:$0xff]
  %vm174 = vcmask 130048
  %v176 = vsel %vm174, %v170, 0
  %v179 = vsel %vm174, %v171, 0
  %v182 = vsel %vm174, %v172, 0
  %v185 = vsel %vm174, %v173, 0
  %187 = vmatprep.subr.mxu0 %v23
  %188 = vmatpush1.msra.mxu0 %v22
  %189 = vmatprep.subr.mxu0 %v30
  %190 = vmatpush1.msra.mxu0 %v29
  %191 = vmatprep.subr.mxu0 0.0
  %192 = vmatpush1.msra.mxu0 0.0
  %193 = vmatprep.subr.mxu0 0.0
  %194 = vmatpush1.msra.mxu0 0.0
  %195 = vmatprep.subr.mxu0 0.0
  %196 = vmatpush1.msra.mxu0 0.0
  %197 = vmatprep.subr.mxu0 0.0
  %198 = vmatpush1.msra.mxu0 0.0
  %199 = vmatprep.subr.mxu0 0.0
  %200 = vmatpush1.msra.mxu0 0.0
  %201 = vmatprep.subr.mxu0 0.0
  %202 = vmatpush1.msra.mxu0 0.0
  %203 = vmatprep.subr.mxu0 0.0
  %204 = vmatpush1.msra.mxu0 0.0
  %205 = vmatprep.subr.mxu0 0.0
  %206 = vmatpush1.msra.mxu0 0.0
  %207 = vmatprep.subr.mxu0 0.0
  %208 = vmatpush1.msra.mxu0 0.0
  %209 = vmatprep.subr.mxu0 0.0
  %210 = vmatpush1.msra.mxu0 0.0
  %211 = vmatprep.subr.mxu0 0.0
  %212 = vmatpush1.msra.mxu0 0.0
  %213 = vmatprep.subr.mxu0 0.0
  %214 = vmatpush1.msra.mxu0 0.0
  %215 = vmatprep.subr.mxu0 0.0
  %216 = vmatpush1.msra.mxu0 0.0
  %217 = vmatprep.subr.mxu0 0.0
  %218 = vmatpush1.msra.mxu0 0.0
  %219 = vmatprep.subr.mxu0 0.0
  %220 = vmatpush1.msra.mxu0 0.0
  %221 = vmatprep.subr.mxu0 0.0
  %222 = vmatpush1.msra.mxu0 0.0
  %223 = vmatprep.subr.mxu0 0.0
  %224 = vmatpush1.msra.mxu0 0.0
  %225 = vmatprep.subr.mxu0 0.0
  %226 = vmatpush1.msra.mxu0 0.0
  %227 = vmatprep.subr.mxu0 0.0
  %228 = vmatpush1.msra.mxu0 0.0
  %229 = vmatprep.subr.mxu0 0.0
  %230 = vmatpush1.msra.mxu0 0.0
  %231 = vmatprep.subr.mxu0 0.0
  %232 = vmatpush1.msra.mxu0 0.0
  %233 = vmatprep.subr.mxu0 0.0
  %234 = vmatpush1.msra.mxu0 0.0
  %235 = vmatprep.subr.mxu0 0.0
  %236 = vmatpush1.msra.mxu0 0.0
  %237 = vmatprep.subr.mxu0 0.0
  %238 = vmatpush1.msra.mxu0 0.0
  %239 = vmatprep.subr.mxu0 0.0
  %240 = vmatpush1.msra.mxu0 0.0
  %241 = vmatprep.subr.mxu0 0.0
  %242 = vmatpush1.msra.mxu0 0.0
  %243 = vmatprep.subr.mxu0 0.0
  %244 = vmatpush1.msra.mxu0 0.0
  %245 = vmatprep.subr.mxu0 0.0
  %246 = vmatpush1.msra.mxu0 0.0
  %247 = vmatprep.subr.mxu0 0.0
  %248 = vmatpush1.msra.mxu0 0.0
  %249 = vmatprep.subr.mxu0 0.0
  %250 = vmatpush1.msra.mxu0 0.0
  %251 = vmatprep.mubr.f32.mxu0 0.0
  %252 = vmatmul.mubr.f32.gmra.mrb[0].mxu0 %v176
  %v253 = vpop.f32.mrb[0].mxu0
  %v254 = vadd.f32 0.0, %v253
  %v255 = vpop.f32.mrb[0].mxu0
  %v256 = vadd.f32 0.0, %v255
  %257 = vmatprep.mubr.f32.mxu0 0.0
  %258 = vmatmul.mubr.f32.gmra.mrb[0].mxu0 %v179
  %v259 = vpop.f32.mrb[0].mxu0
  %v260 = vadd.f32 0.0, %v259
  %v261 = vpop.f32.mrb[0].mxu0
  %v262 = vadd.f32 0.0, %v261
  %263 = vmatprep.mubr.f32.mxu0 0.0
  %264 = vmatmul.mubr.f32.gmra.mrb[0].mxu0 %v182
  %v265 = vpop.f32.mrb[0].mxu0
  %v266 = vadd.f32 0.0, %v265
  %v267 = vpop.f32.mrb[0].mxu0
  %v268 = vadd.f32 0.0, %v267
  %269 = vmatprep.mubr.f32.mxu0 0.0
  %270 = vmatmul.mubr.f32.gmra.mrb[0].mxu0 %v185
  %v271 = vpop.f32.mrb[0].mxu0
  %v272 = vadd.f32 0.0, %v271
  %v273 = vpop.f32.mrb[0].mxu0
  %v274 = vadd.f32 0.0, %v273
  %275 = vdwg.mxu0
  %276 = vmatprep.subr.mxu0 %v25
  %277 = vmatpush1.msra.mxu0 %v24
  %278 = vmatprep.subr.mxu0 %v32
  %279 = vmatpush1.msra.mxu0 %v31
  %280 = vmatprep.subr.mxu0 0.0
  %281 = vmatpush1.msra.mxu0 0.0
  %282 = vmatprep.subr.mxu0 0.0
  %283 = vmatpush1.msra.mxu0 0.0
  %284 = vmatprep.subr.mxu0 0.0
  %285 = vmatpush1.msra.mxu0 0.0
  %286 = vmatprep.subr.mxu0 0.0
  %287 = vmatpush1.msra.mxu0 0.0
  %288 = vmatprep.subr.mxu0 0.0
  %289 = vmatpush1.msra.mxu0 0.0
  %290 = vmatprep.subr.mxu0 0.0
  %291 = vmatpush1.msra.mxu0 0.0
  %292 = vmatprep.subr.mxu0 0.0
  %293 = vmatpush1.msra.mxu0 0.0
  %294 = vmatprep.subr.mxu0 0.0
  %295 = vmatpush1.msra.mxu0 0.0
  %296 = vmatprep.subr.mxu0 0.0
  %297 = vmatpush1.msra.mxu0 0.0
  %298 = vmatprep.subr.mxu0 0.0
  %299 = vmatpush1.msra.mxu0 0.0
  %300 = vmatprep.subr.mxu0 0.0
  %301 = vmatpush1.msra.mxu0 0.0
  %302 = vmatprep.subr.mxu0 0.0
  %303 = vmatpush1.msra.mxu0 0.0
  %304 = vmatprep.subr.mxu0 0.0
  %305 = vmatpush1.msra.mxu0 0.0
  %306 = vmatprep.subr.mxu0 0.0
  %307 = vmatpush1.msra.mxu0 0.0
  %308 = vmatprep.subr.mxu0 0.0
  %309 = vmatpush1.msra.mxu0 0.0
  %310 = vmatprep.subr.mxu0 0.0
  %311 = vmatpush1.msra.mxu0 0.0
  %312 = vmatprep.subr.mxu0 0.0
  %313 = vmatpush1.msra.mxu0 0.0
  %314 = vmatprep.subr.mxu0 0.0
  %315 = vmatpush1.msra.mxu0 0.0
  %316 = vmatprep.subr.mxu0 0.0
  %317 = vmatpush1.msra.mxu0 0.0
  %318 = vmatprep.subr.mxu0 0.0
  %319 = vmatpush1.msra.mxu0 0.0
  %320 = vmatprep.subr.mxu0 0.0
  %321 = vmatpush1.msra.mxu0 0.0
  %322 = vmatprep.subr.mxu0 0.0
  %323 = vmatpush1.msra.mxu0 0.0
  %324 = vmatprep.subr.mxu0 0.0
  %325 = vmatpush1.msra.mxu0 0.0
  %326 = vmatprep.subr.mxu0 0.0
  %327 = vmatpush1.msra.mxu0 0.0
  %328 = vmatprep.subr.mxu0 0.0
  %329 = vmatpush1.msra.mxu0 0.0
  %330 = vmatprep.subr.mxu0 0.0
  %331 = vmatpush1.msra.mxu0 0.0
  %332 = vmatprep.subr.mxu0 0.0
  %333 = vmatpush1.msra.mxu0 0.0
  %334 = vmatprep.subr.mxu0 0.0
  %335 = vmatpush1.msra.mxu0 0.0
  %336 = vmatprep.subr.mxu0 0.0
  %337 = vmatpush1.msra.mxu0 0.0
  %338 = vmatprep.subr.mxu0 0.0
  %339 = vmatpush1.msra.mxu0 0.0
  %340 = vmatprep.mubr.f32.mxu0 0.0
  %341 = vmatmul.mubr.f32.gmra.mrb[0].mxu0 %v176
  %v342 = vpop.f32.mrb[0].mxu0
  %v343 = vadd.f32 0.0, %v342
  %v344 = vpop.f32.mrb[0].mxu0
  %v345 = vadd.f32 0.0, %v344
  %346 = vmatprep.mubr.f32.mxu0 0.0
  %347 = vmatmul.mubr.f32.gmra.mrb[0].mxu0 %v179
  %v348 = vpop.f32.mrb[0].mxu0
  %v349 = vadd.f32 0.0, %v348
  %v350 = vpop.f32.mrb[0].mxu0
  %v351 = vadd.f32 0.0, %v350
  %352 = vmatprep.mubr.f32.mxu0 0.0
  %353 = vmatmul.mubr.f32.gmra.mrb[0].mxu0 %v182
  %v354 = vpop.f32.mrb[0].mxu0
  %v355 = vadd.f32 0.0, %v354
  %v356 = vpop.f32.mrb[0].mxu0
  %v357 = vadd.f32 0.0, %v356
  %358 = vmatprep.mubr.f32.mxu0 0.0
  %359 = vmatmul.mubr.f32.gmra.mrb[0].mxu0 %v185
  %v360 = vpop.f32.mrb[0].mxu0
  %v361 = vadd.f32 0.0, %v360
  %v362 = vpop.f32.mrb[0].mxu0
  %v363 = vadd.f32 0.0, %v362
  %364 = vdwg.mxu0
  %365 = vmatprep.subr.mxu0 %v27
  %366 = vmatpush1.msra.mxu0 %v26
  %367 = vmatprep.subr.mxu0 %v34
  %368 = vmatpush1.msra.mxu0 %v33
  %369 = vmatprep.subr.mxu0 0.0
  %370 = vmatpush1.msra.mxu0 0.0
  %371 = vmatprep.subr.mxu0 0.0
  %372 = vmatpush1.msra.mxu0 0.0
  %373 = vmatprep.subr.mxu0 0.0
  %374 = vmatpush1.msra.mxu0 0.0
  %375 = vmatprep.subr.mxu0 0.0
  %376 = vmatpush1.msra.mxu0 0.0
  %377 = vmatprep.subr.mxu0 0.0
  %378 = vmatpush1.msra.mxu0 0.0
  %379 = vmatprep.subr.mxu0 0.0
  %380 = vmatpush1.msra.mxu0 0.0
  %381 = vmatprep.subr.mxu0 0.0
  %382 = vmatpush1.msra.mxu0 0.0
  %383 = vmatprep.subr.mxu0 0.0
  %384 = vmatpush1.msra.mxu0 0.0
  %385 = vmatprep.subr.mxu0 0.0
  %386 = vmatpush1.msra.mxu0 0.0
  %387 = vmatprep.subr.mxu0 0.0
  %388 = vmatpush1.msra.mxu0 0.0
  %389 = vmatprep.subr.mxu0 0.0
  %390 = vmatpush1.msra.mxu0 0.0
  %391 = vmatprep.subr.mxu0 0.0
  %392 = vmatpush1.msra.mxu0 0.0
  %393 = vmatprep.subr.mxu0 0.0
  %394 = vmatpush1.msra.mxu0 0.0
  %395 = vmatprep.subr.mxu0 0.0
  %396 = vmatpush1.msra.mxu0 0.0
  %397 = vmatprep.subr.mxu0 0.0
  %398 = vmatpush1.msra.mxu0 0.0
  %399 = vmatprep.subr.mxu0 0.0
  %400 = vmatpush1.msra.mxu0 0.0
  %401 = vmatprep.subr.mxu0 0.0
  %402 = vmatpush1.msra.mxu0 0.0
  %403 = vmatprep.subr.mxu0 0.0
  %404 = vmatpush1.msra.mxu0 0.0
  %405 = vmatprep.subr.mxu0 0.0
  %406 = vmatpush1.msra.mxu0 0.0
  %407 = vmatprep.subr.mxu0 0.0
  %408 = vmatpush1.msra.mxu0 0.0
  %409 = vmatprep.subr.mxu0 0.0
  %410 = vmatpush1.msra.mxu0 0.0
  %411 = vmatprep.subr.mxu0 0.0
  %412 = vmatpush1.msra.mxu0 0.0
  %413 = vmatprep.subr.mxu0 0.0
  %414 = vmatpush1.msra.mxu0 0.0
  %415 = vmatprep.subr.mxu0 0.0
  %416 = vmatpush1.msra.mxu0 0.0
  %417 = vmatprep.subr.mxu0 0.0
  %418 = vmatpush1.msra.mxu0 0.0
  %419 = vmatprep.subr.mxu0 0.0
  %420 = vmatpush1.msra.mxu0 0.0
  %421 = vmatprep.subr.mxu0 0.0
  %422 = vmatpush1.msra.mxu0 0.0
  %423 = vmatprep.subr.mxu0 0.0
  %424 = vmatpush1.msra.mxu0 0.0
  %425 = vmatprep.subr.mxu0 0.0
  %426 = vmatpush1.msra.mxu0 0.0
  %427 = vmatprep.subr.mxu0 0.0
  %428 = vmatpush1.msra.mxu0 0.0
  %429 = vmatprep.mubr.f32.mxu0 0.0
  %430 = vmatmul.mubr.f32.gmra.mrb[0].mxu0 %v176
  %v431 = vpop.f32.mrb[0].mxu0
  %v432 = vadd.f32 0.0, %v431
  %v433 = vpop.f32.mrb[0].mxu0
  %v434 = vadd.f32 0.0, %v433
  %435 = vmatprep.mubr.f32.mxu0 0.0
  %436 = vmatmul.mubr.f32.gmra.mrb[0].mxu0 %v179
  %v437 = vpop.f32.mrb[0].mxu0
  %v438 = vadd.f32 0.0, %v437
  %v439 = vpop.f32.mrb[0].mxu0
  %v440 = vadd.f32 0.0, %v439
  %441 = vmatprep.mubr.f32.mxu0 0.0
  %442 = vmatmul.mubr.f32.gmra.mrb[0].mxu0 %v182
  %v443 = vpop.f32.mrb[0].mxu0
  %v444 = vadd.f32 0.0, %v443
  %v445 = vpop.f32.mrb[0].mxu0
  %v446 = vadd.f32 0.0, %v445
  %447 = vmatprep.mubr.f32.mxu0 0.0
  %448 = vmatmul.mubr.f32.gmra.mrb[0].mxu0 %v185
  %v449 = vpop.f32.mrb[0].mxu0
  %v450 = vadd.f32 0.0, %v449
  %v451 = vpop.f32.mrb[0].mxu0
  %v452 = vadd.f32 0.0, %v451
  %453 = vdwg.mxu0
  %454 = vmatprep.subr.mxu0 0.0
  %455 = vmatpush1.msra.mxu0 %v28
  %456 = vmatprep.subr.mxu0 0.0
  %457 = vmatpush1.msra.mxu0 %v35
  %458 = vmatprep.subr.mxu0 0.0
  %459 = vmatpush1.msra.mxu0 0.0
  %460 = vmatprep.subr.mxu0 0.0
  %461 = vmatpush1.msra.mxu0 0.0
  %462 = vmatprep.subr.mxu0 0.0
  %463 = vmatpush1.msra.mxu0 0.0
  %464 = vmatprep.subr.mxu0 0.0
  %465 = vmatpush1.msra.mxu0 0.0
  %466 = vmatprep.subr.mxu0 0.0
  %467 = vmatpush1.msra.mxu0 0.0
  %468 = vmatprep.subr.mxu0 0.0
  %469 = vmatpush1.msra.mxu0 0.0
  %470 = vmatprep.subr.mxu0 0.0
  %471 = vmatpush1.msra.mxu0 0.0
  %472 = vmatprep.subr.mxu0 0.0
  %473 = vmatpush1.msra.mxu0 0.0
  %474 = vmatprep.subr.mxu0 0.0
  %475 = vmatpush1.msra.mxu0 0.0
  %476 = vmatprep.subr.mxu0 0.0
  %477 = vmatpush1.msra.mxu0 0.0
  %478 = vmatprep.subr.mxu0 0.0
  %479 = vmatpush1.msra.mxu0 0.0
  %480 = vmatprep.subr.mxu0 0.0
  %481 = vmatpush1.msra.mxu0 0.0
  %482 = vmatprep.subr.mxu0 0.0
  %483 = vmatpush1.msra.mxu0 0.0
  %484 = vmatprep.subr.mxu0 0.0
  %485 = vmatpush1.msra.mxu0 0.0
  %486 = vmatprep.subr.mxu0 0.0
  %487 = vmatpush1.msra.mxu0 0.0
  %488 = vmatprep.subr.mxu0 0.0
  %489 = vmatpush1.msra.mxu0 0.0
  %490 = vmatprep.subr.mxu0 0.0
  %491 = vmatpush1.msra.mxu0 0.0
  %492 = vmatprep.subr.mxu0 0.0
  %493 = vmatpush1.msra.mxu0 0.0
  %494 = vmatprep.subr.mxu0 0.0
  %495 = vmatpush1.msra.mxu0 0.0
  %496 = vmatprep.subr.mxu0 0.0
  %497 = vmatpush1.msra.mxu0 0.0
  %498 = vmatprep.subr.mxu0 0.0
  %499 = vmatpush1.msra.mxu0 0.0
  %500 = vmatprep.subr.mxu0 0.0
  %501 = vmatpush1.msra.mxu0 0.0
  %502 = vmatprep.subr.mxu0 0.0
  %503 = vmatpush1.msra.mxu0 0.0
  %504 = vmatprep.subr.mxu0 0.0
  %505 = vmatpush1.msra.mxu0 0.0
  %506 = vmatprep.subr.mxu0 0.0
  %507 = vmatpush1.msra.mxu0 0.0
  %508 = vmatprep.subr.mxu0 0.0
  %509 = vmatpush1.msra.mxu0 0.0
  %510 = vmatprep.subr.mxu0 0.0
  %511 = vmatpush1.msra.mxu0 0.0
  %512 = vmatprep.subr.mxu0 0.0
  %513 = vmatpush1.msra.mxu0 0.0
  %514 = vmatprep.subr.mxu0 0.0
  %515 = vmatpush1.msra.mxu0 0.0
  %516 = vmatprep.subr.mxu0 0.0
  %517 = vmatpush1.msra.mxu0 0.0
  %518 = vmatprep.mubr.f32.mxu0 0.0
  %519 = vmatmul.mubr.f32.gmra.mrb[0].mxu0 %v176
  %v520 = vpop.f32.mrb[0].mxu0
  %v521 = vadd.f32 0.0, %v520
  %v522 = vpop.f32.mrb[0].mxu0
  %523 = vmatprep.mubr.f32.mxu0 0.0
  %524 = vmatmul.mubr.f32.gmra.mrb[0].mxu0 %v179
  %v525 = vpop.f32.mrb[0].mxu0
  %v526 = vadd.f32 0.0, %v525
  %v527 = vpop.f32.mrb[0].mxu0
  %528 = vmatprep.mubr.f32.mxu0 0.0
  %529 = vmatmul.mubr.f32.gmra.mrb[0].mxu0 %v182
  %v530 = vpop.f32.mrb[0].mxu0
  %v531 = vadd.f32 0.0, %v530
  %v532 = vpop.f32.mrb[0].mxu0
  %533 = vmatprep.mubr.f32.mxu0 0.0
  %534 = vmatmul.mubr.f32.gmra.mrb[0].mxu0 %v185
  %v535 = vpop.f32.mrb[0].mxu0
  %v536 = vadd.f32 0.0, %v535
  %v537 = vpop.f32.mrb[0].mxu0
  %538 = vdwg.mxu0
  %v539 = vmul.f32 %v254, %v148
  %v540 = vmul.f32 %v256, %v149
  %v541 = vmul.f32 %v343, %v150
  %v542 = vmul.f32 %v345, %v151
  %v543 = vmul.f32 %v432, %v152
  %v544 = vmul.f32 %v434, %v153
  %v545 = vmul.f32 %v521, %v154
  %v546 = vmul.f32 %v260, %v155
  %v547 = vmul.f32 %v262, %v156
  %v548 = vmul.f32 %v349, %v157
  %v549 = vmul.f32 %v351, %v158
  %v550 = vmul.f32 %v438, %v159
  %v551 = vmul.f32 %v440, %v160
  %v552 = vmul.f32 %v526, %v161
  %v553 = vadd.f32 %v539, %v546
  %v554 = vadd.f32 %v540, %v547
  %v555 = vadd.f32 %v541, %v548
  %v556 = vadd.f32 %v542, %v549
  %v557 = vadd.f32 %v543, %v550
  %v558 = vadd.f32 %v544, %v551
  %v559 = vadd.f32 %v545, %v552
  %v560 = vmul.f32 %v266, %v162
  %v561 = vmul.f32 %v268, %v163
  %v562 = vmul.f32 %v355, %v164
  %v563 = vmul.f32 %v357, %v165
  %v564 = vmul.f32 %v444, %v166
  %v565 = vmul.f32 %v446, %v167
  %v566 = vmul.f32 %v531, %v168
  %v567 = vadd.f32 %v553, %v560
  %v568 = vadd.f32 %v554, %v561
  %v569 = vadd.f32 %v555, %v562
  %v570 = vadd.f32 %v556, %v563
  %v571 = vadd.f32 %v557, %v564
  %v572 = vadd.f32 %v558, %v565
  %v573 = vadd.f32 %v559, %v566
  %v574 = vadd.f32 %v567, %v272
  %v575 = vadd.f32 %v568, %v274
  %v576 = vadd.f32 %v569, %v361
  %v577 = vadd.f32 %v570, %v363
  %v578 = vadd.f32 %v571, %v450
  %v579 = vadd.f32 %v572, %v452
  %v580 = vadd.f32 %v573, %v536
  %582 = vset.pattern.permute.xlu0 0
  %583 = vperm.xlu0 %582, %v169
  %v584 = vpop.permute.xlu0 %583
  %v586 = vadd.f32 %v574, %v584
  %v587 = vadd.f32 %v575, %v584
  %v588 = vadd.f32 %v576, %v584
  %v589 = vadd.f32 %v577, %v584
  %v590 = vadd.f32 %v578, %v584
  %v591 = vadd.f32 %v579, %v584
  %v592 = vadd.f32 %v580, %v584
  %593 = vst [vmem:[%s5] sm:$0xff] %v586
  %594 = vst [vmem:[%s5 + $0x8] sm:$0xff] %v587
  %595 = vst [vmem:[%s5 + $0x10] sm:$0xff] %v588
  %596 = vst [vmem:[%s5 + $0x18] sm:$0xff] %v589
  %597 = vst [vmem:[%s5 + $0x20] sm:$0xff] %v590
  %598 = vst [vmem:[%s5 + $0x28] sm:$0xff] %v591
  %599 = vst [vmem:[%s5 + $0x30] sm:$0xff] %v592
  %600 = vmatprep.subr.mxu0 0.0
  %601 = vmatpush1.msra.mxu0 %v36
  %602 = vmatprep.subr.mxu0 0.0
  %603 = vmatpush1.msra.mxu0 %v37
  %604 = vmatprep.subr.mxu0 0.0
  %605 = vmatpush1.msra.mxu0 %v38
  %606 = vmatprep.subr.mxu0 0.0
  %607 = vmatpush1.msra.mxu0 %v39
  %608 = vmatprep.subr.mxu0 0.0
  %609 = vmatpush1.msra.mxu0 %v40
  %610 = vmatprep.subr.mxu0 0.0
  %611 = vmatpush1.msra.mxu0 %v41
  %612 = vmatprep.subr.mxu0 0.0
  %613 = vmatpush1.msra.mxu0 %v42
  %614 = vmatprep.subr.mxu0 0.0
  %615 = vmatpush1.msra.mxu0 %v43
  %616 = vmatprep.subr.mxu0 0.0
  %617 = vmatpush1.msra.mxu0 %v44
  %618 = vmatprep.subr.mxu0 0.0
  %619 = vmatpush1.msra.mxu0 %v45
  %620 = vmatprep.subr.mxu0 0.0
  %621 = vmatpush1.msra.mxu0 %v46
  %622 = vmatprep.subr.mxu0 0.0
  %623 = vmatpush1.msra.mxu0 %v47
  %624 = vmatprep.subr.mxu0 0.0
  %625 = vmatpush1.msra.mxu0 %v48
  %626 = vmatprep.subr.mxu0 0.0
  %627 = vmatpush1.msra.mxu0 %v49
  %628 = vmatprep.subr.mxu0 0.0
  %629 = vmatpush1.msra.mxu0 %v50
  %630 = vmatprep.subr.mxu0 0.0
  %631 = vmatpush1.msra.mxu0 %v51
  %632 = vmatprep.subr.mxu0 0.0
  %633 = vmatpush1.msra.mxu0 %v52
  %634 = vmatprep.subr.mxu0 0.0
  %635 = vmatpush1.msra.mxu0 %v53
  %636 = vmatprep.subr.mxu0 0.0
  %637 = vmatpush1.msra.mxu0 %v54
  %638 = vmatprep.subr.mxu0 0.0
  %639 = vmatpush1.msra.mxu0 %v55
  %640 = vmatprep.subr.mxu0 0.0
  %641 = vmatpush1.msra.mxu0 %v56
  %642 = vmatprep.subr.mxu0 0.0
  %643 = vmatpush1.msra.mxu0 %v57
  %644 = vmatprep.subr.mxu0 0.0
  %645 = vmatpush1.msra.mxu0 %v58
  %646 = vmatprep.subr.mxu0 0.0
  %647 = vmatpush1.msra.mxu0 %v59
  %648 = vmatprep.subr.mxu0 0.0
  %649 = vmatpush1.msra.mxu0 %v60
  %650 = vmatprep.subr.mxu0 0.0
  %651 = vmatpush1.msra.mxu0 %v61
  %652 = vmatprep.subr.mxu0 0.0
  %653 = vmatpush1.msra.mxu0 %v62
  %654 = vmatprep.subr.mxu0 0.0
  %655 = vmatpush1.msra.mxu0 %v63
  %656 = vmatprep.subr.mxu0 0.0
  %657 = vmatpush1.msra.mxu0 %v64
  %658 = vmatprep.subr.mxu0 0.0
  %659 = vmatpush1.msra.mxu0 %v65
  %660 = vmatprep.subr.mxu0 0.0
  %661 = vmatpush1.msra.mxu0 %v66
  %662 = vmatprep.subr.mxu0 0.0
  %663 = vmatpush1.msra.mxu0 %v67
  %664 = vmatprep.mubr.f32.mxu0 %v587
  %665 = vmatmul.mubr.f32.gmra.mrb[0].mxu0 %v586
  %v666 = vpop.f32.mrb[0].mxu0
  %v667 = vadd.f32 0.0, %v666
  %v668 = vpop.f32.mrb[0].mxu0
  %669 = vdwg.mxu0
  %670 = vmatprep.subr.mxu0 0.0
  %671 = vmatpush1.msra.mxu0 %v68
  %672 = vmatprep.subr.mxu0 0.0
  %673 = vmatpush1.msra.mxu0 %v69
  %674 = vmatprep.subr.mxu0 0.0
  %675 = vmatpush1.msra.mxu0 %v70
  %676 = vmatprep.subr.mxu0 0.0
  %677 = vmatpush1.msra.mxu0 %v71
  %678 = vmatprep.subr.mxu0 0.0
  %679 = vmatpush1.msra.mxu0 %v72
  %680 = vmatprep.subr.mxu0 0.0
  %681 = vmatpush1.msra.mxu0 %v73
  %682 = vmatprep.subr.mxu0 0.0
  %683 = vmatpush1.msra.mxu0 %v74
  %684 = vmatprep.subr.mxu0 0.0
  %685 = vmatpush1.msra.mxu0 %v75
  %686 = vmatprep.subr.mxu0 0.0
  %687 = vmatpush1.msra.mxu0 %v76
  %688 = vmatprep.subr.mxu0 0.0
  %689 = vmatpush1.msra.mxu0 %v77
  %690 = vmatprep.subr.mxu0 0.0
  %691 = vmatpush1.msra.mxu0 %v78
  %692 = vmatprep.subr.mxu0 0.0
  %693 = vmatpush1.msra.mxu0 %v79
  %694 = vmatprep.subr.mxu0 0.0
  %695 = vmatpush1.msra.mxu0 %v80
  %696 = vmatprep.subr.mxu0 0.0
  %697 = vmatpush1.msra.mxu0 %v81
  %698 = vmatprep.subr.mxu0 0.0
  %699 = vmatpush1.msra.mxu0 %v82
  %700 = vmatprep.subr.mxu0 0.0
  %701 = vmatpush1.msra.mxu0 %v83
  %702 = vmatprep.subr.mxu0 0.0
  %703 = vmatpush1.msra.mxu0 %v84
  %704 = vmatprep.subr.mxu0 0.0
  %705 = vmatpush1.msra.mxu0 %v85
  %706 = vmatprep.subr.mxu0 0.0
  %707 = vmatpush1.msra.mxu0 %v86
  %708 = vmatprep.subr.mxu0 0.0
  %709 = vmatpush1.msra.mxu0 %v87
  %710 = vmatprep.subr.mxu0 0.0
  %711 = vmatpush1.msra.mxu0 %v88
  %712 = vmatprep.subr.mxu0 0.0
  %713 = vmatpush1.msra.mxu0 %v89
  %714 = vmatprep.subr.mxu0 0.0
  %715 = vmatpush1.msra.mxu0 %v90
  %716 = vmatprep.subr.mxu0 0.0
  %717 = vmatpush1.msra.mxu0 %v91
  %718 = vmatprep.subr.mxu0 0.0
  %719 = vmatpush1.msra.mxu0 %v92
  %720 = vmatprep.subr.mxu0 0.0
  %721 = vmatpush1.msra.mxu0 %v93
  %722 = vmatprep.subr.mxu0 0.0
  %723 = vmatpush1.msra.mxu0 %v94
  %724 = vmatprep.subr.mxu0 0.0
  %725 = vmatpush1.msra.mxu0 %v95
  %726 = vmatprep.subr.mxu0 0.0
  %727 = vmatpush1.msra.mxu0 %v96
  %728 = vmatprep.subr.mxu0 0.0
  %729 = vmatpush1.msra.mxu0 %v97
  %730 = vmatprep.subr.mxu0 0.0
  %731 = vmatpush1.msra.mxu0 %v98
  %732 = vmatprep.subr.mxu0 0.0
  %733 = vmatpush1.msra.mxu0 %v99
  %734 = vmatprep.mubr.f32.mxu0 %v589
  %735 = vmatmul.mubr.f32.gmra.mrb[0].mxu0 %v588
  %v736 = vpop.f32.mrb[0].mxu0
  %v737 = vadd.f32 %v667, %v736
  %v738 = vpop.f32.mrb[0].mxu0
  %739 = vdwg.mxu0
  %740 = vmatprep.subr.mxu0 0.0
  %741 = vmatpush1.msra.mxu0 %v100
  %742 = vmatprep.subr.mxu0 0.0
  %743 = vmatpush1.msra.mxu0 %v101
  %744 = vmatprep.subr.mxu0 0.0
  %745 = vmatpush1.msra.mxu0 %v102
  %746 = vmatprep.subr.mxu0 0.0
  %747 = vmatpush1.msra.mxu0 %v103
  %748 = vmatprep.subr.mxu0 0.0
  %749 = vmatpush1.msra.mxu0 %v104
  %750 = vmatprep.subr.mxu0 0.0
  %751 = vmatpush1.msra.mxu0 %v105
  %752 = vmatprep.subr.mxu0 0.0
  %753 = vmatpush1.msra.mxu0 %v106
  %754 = vmatprep.subr.mxu0 0.0
  %755 = vmatpush1.msra.mxu0 %v107
  %756 = vmatprep.subr.mxu0 0.0
  %757 = vmatpush1.msra.mxu0 %v108
  %758 = vmatprep.subr.mxu0 0.0
  %759 = vmatpush1.msra.mxu0 %v109
  %760 = vmatprep.subr.mxu0 0.0
  %761 = vmatpush1.msra.mxu0 %v110
  %762 = vmatprep.subr.mxu0 0.0
  %763 = vmatpush1.msra.mxu0 %v111
  %764 = vmatprep.subr.mxu0 0.0
  %765 = vmatpush1.msra.mxu0 %v112
  %766 = vmatprep.subr.mxu0 0.0
  %767 = vmatpush1.msra.mxu0 %v113
  %768 = vmatprep.subr.mxu0 0.0
  %769 = vmatpush1.msra.mxu0 %v114
  %770 = vmatprep.subr.mxu0 0.0
  %771 = vmatpush1.msra.mxu0 %v115
  %772 = vmatprep.subr.mxu0 0.0
  %773 = vmatpush1.msra.mxu0 %v116
  %774 = vmatprep.subr.mxu0 0.0
  %775 = vmatpush1.msra.mxu0 %v117
  %776 = vmatprep.subr.mxu0 0.0
  %777 = vmatpush1.msra.mxu0 %v118
  %778 = vmatprep.subr.mxu0 0.0
  %779 = vmatpush1.msra.mxu0 %v119
  %780 = vmatprep.subr.mxu0 0.0
  %781 = vmatpush1.msra.mxu0 %v120
  %782 = vmatprep.subr.mxu0 0.0
  %783 = vmatpush1.msra.mxu0 %v121
  %784 = vmatprep.subr.mxu0 0.0
  %785 = vmatpush1.msra.mxu0 %v122
  %786 = vmatprep.subr.mxu0 0.0
  %787 = vmatpush1.msra.mxu0 %v123
  %788 = vmatprep.subr.mxu0 0.0
  %789 = vmatpush1.msra.mxu0 %v124
  %790 = vmatprep.subr.mxu0 0.0
  %791 = vmatpush1.msra.mxu0 %v125
  %792 = vmatprep.subr.mxu0 0.0
  %793 = vmatpush1.msra.mxu0 %v126
  %794 = vmatprep.subr.mxu0 0.0
  %795 = vmatpush1.msra.mxu0 %v127
  %796 = vmatprep.subr.mxu0 0.0
  %797 = vmatpush1.msra.mxu0 %v128
  %798 = vmatprep.subr.mxu0 0.0
  %799 = vmatpush1.msra.mxu0 %v129
  %800 = vmatprep.subr.mxu0 0.0
  %801 = vmatpush1.msra.mxu0 %v130
  %802 = vmatprep.subr.mxu0 0.0
  %803 = vmatpush1.msra.mxu0 %v131
  %804 = vmatprep.mubr.f32.mxu0 %v591
  %805 = vmatmul.mubr.f32.gmra.mrb[0].mxu0 %v590
  %v806 = vpop.f32.mrb[0].mxu0
  %v807 = vadd.f32 %v737, %v806
  %v808 = vpop.f32.mrb[0].mxu0
  %809 = vdwg.mxu0
  %810 = vmatprep.subr.mxu0 0.0
  %811 = vmatpush1.msra.mxu0 %v132
  %812 = vmatprep.subr.mxu0 0.0
  %813 = vmatpush1.msra.mxu0 %v133
  %814 = vmatprep.subr.mxu0 0.0
  %815 = vmatpush1.msra.mxu0 %v134
  %816 = vmatprep.subr.mxu0 0.0
  %817 = vmatpush1.msra.mxu0 %v135
  %818 = vmatprep.subr.mxu0 0.0
  %819 = vmatpush1.msra.mxu0 %v136
  %820 = vmatprep.subr.mxu0 0.0
  %821 = vmatpush1.msra.mxu0 %v137
  %822 = vmatprep.subr.mxu0 0.0
  %823 = vmatpush1.msra.mxu0 %v138
  %824 = vmatprep.subr.mxu0 0.0
  %825 = vmatpush1.msra.mxu0 %v139
  %826 = vmatprep.subr.mxu0 0.0
  %827 = vmatpush1.msra.mxu0 %v140
  %828 = vmatprep.subr.mxu0 0.0
  %829 = vmatpush1.msra.mxu0 %v141
  %830 = vmatprep.subr.mxu0 0.0
  %831 = vmatpush1.msra.mxu0 %v142
  %832 = vmatprep.subr.mxu0 0.0
  %833 = vmatpush1.msra.mxu0 %v143
  %834 = vmatprep.subr.mxu0 0.0
  %835 = vmatpush1.msra.mxu0 %v144
  %836 = vmatprep.subr.mxu0 0.0
  %837 = vmatpush1.msra.mxu0 %v145
  %838 = vmatprep.subr.mxu0 0.0
  %839 = vmatpush1.msra.mxu0 %v146
  %840 = vmatprep.subr.mxu0 0.0
  %841 = vmatpush1.msra.mxu0 %v147
  %842 = vmatprep.subr.mxu0 0.0
  %843 = vmatpush1.msra.mxu0 0.0
  %844 = vmatprep.subr.mxu0 0.0
  %845 = vmatpush1.msra.mxu0 0.0
  %846 = vmatprep.subr.mxu0 0.0
  %847 = vmatpush1.msra.mxu0 0.0
  %848 = vmatprep.subr.mxu0 0.0
  %849 = vmatpush1.msra.mxu0 0.0
  %850 = vmatprep.subr.mxu0 0.0
  %851 = vmatpush1.msra.mxu0 0.0
  %852 = vmatprep.subr.mxu0 0.0
  %853 = vmatpush1.msra.mxu0 0.0
  %854 = vmatprep.subr.mxu0 0.0
  %855 = vmatpush1.msra.mxu0 0.0
  %856 = vmatprep.subr.mxu0 0.0
  %857 = vmatpush1.msra.mxu0 0.0
  %858 = vmatprep.subr.mxu0 0.0
  %859 = vmatpush1.msra.mxu0 0.0
  %860 = vmatprep.subr.mxu0 0.0
  %861 = vmatpush1.msra.mxu0 0.0
  %862 = vmatprep.subr.mxu0 0.0
  %863 = vmatpush1.msra.mxu0 0.0
  %864 = vmatprep.subr.mxu0 0.0
  %865 = vmatpush1.msra.mxu0 0.0
  %866 = vmatprep.subr.mxu0 0.0
  %867 = vmatpush1.msra.mxu0 0.0
  %868 = vmatprep.subr.mxu0 0.0
  %869 = vmatpush1.msra.mxu0 0.0
  %870 = vmatprep.subr.mxu0 0.0
  %871 = vmatpush1.msra.mxu0 0.0
  %872 = vmatprep.subr.mxu0 0.0
  %873 = vmatpush1.msra.mxu0 0.0
  %874 = vmatprep.mubr.f32.mxu0 0.0
  %875 = vmatmul.mubr.f32.gmra.mrb[0].mxu0 %v592
  %v876 = vpop.f32.mrb[0].mxu0
  %v877 = vadd.f32 %v807, %v876
  %v878 = vpop.f32.mrb[0].mxu0
  %879 = vdwg.mxu0
  %vm880 = vcmask 171008
  %881 = vst.msk [vmem:[%s6] sm:$0xff] %vm880, %v877
  %v882 = vld [vmem:[%s0 + $0x20] sm:$0xff]
  %v883 = vld [vmem:[%s0 + $0x28] sm:$0xff]
  %v884 = vld [vmem:[%s0 + $0x30] sm:$0xff]
  %v885 = vld [vmem:[%s0 + $0x38] sm:$0xff]
  %v887 = vsel %vm174, %v882, 0
  %v890 = vsel %vm174, %v883, 0
  %v893 = vsel %vm174, %v884, 0
  %v896 = vsel %vm174, %v885, 0
  %898 = vmatprep.subr.mxu0 %v23
  %899 = vmatpush1.msra.mxu0 %v22
  %900 = vmatprep.subr.mxu0 %v30
  %901 = vmatpush1.msra.mxu0 %v29
  %902 = vmatprep.subr.mxu0 0.0
  %903 = vmatpush1.msra.mxu0 0.0
  %904 = vmatprep.subr.mxu0 0.0
  %905 = vmatpush1.msra.mxu0 0.0
  %906 = vmatprep.subr.mxu0 0.0
  %907 = vmatpush1.msra.mxu0 0.0
  %908 = vmatprep.subr.mxu0 0.0
  %909 = vmatpush1.msra.mxu0 0.0
  %910 = vmatprep.subr.mxu0 0.0
  %911 = vmatpush1.msra.mxu0 0.0
  %912 = vmatprep.subr.mxu0 0.0
  %913 = vmatpush1.msra.mxu0 0.0
  %914 = vmatprep.subr.mxu0 0.0
  %915 = vmatpush1.msra.mxu0 0.0
  %916 = vmatprep.subr.mxu0 0.0
  %917 = vmatpush1.msra.mxu0 0.0
  %918 = vmatprep.subr.mxu0 0.0
  %919 = vmatpush1.msra.mxu0 0.0
  %920 = vmatprep.subr.mxu0 0.0
  %921 = vmatpush1.msra.mxu0 0.0
  %922 = vmatprep.subr.mxu0 0.0
  %923 = vmatpush1.msra.mxu0 0.0
  %924 = vmatprep.subr.mxu0 0.0
  %925 = vmatpush1.msra.mxu0 0.0
  %926 = vmatprep.subr.mxu0 0.0
  %927 = vmatpush1.msra.mxu0 0.0
  %928 = vmatprep.subr.mxu0 0.0
  %929 = vmatpush1.msra.mxu0 0.0
  %930 = vmatprep.subr.mxu0 0.0
  %931 = vmatpush1.msra.mxu0 0.0
  %932 = vmatprep.subr.mxu0 0.0
  %933 = vmatpush1.msra.mxu0 0.0
  %934 = vmatprep.subr.mxu0 0.0
  %935 = vmatpush1.msra.mxu0 0.0
  %936 = vmatprep.subr.mxu0 0.0
  %937 = vmatpush1.msra.mxu0 0.0
  %938 = vmatprep.subr.mxu0 0.0
  %939 = vmatpush1.msra.mxu0 0.0
  %940 = vmatprep.subr.mxu0 0.0
  %941 = vmatpush1.msra.mxu0 0.0
  %942 = vmatprep.subr.mxu0 0.0
  %943 = vmatpush1.msra.mxu0 0.0
  %944 = vmatprep.subr.mxu0 0.0
  %945 = vmatpush1.msra.mxu0 0.0
  %946 = vmatprep.subr.mxu0 0.0
  %947 = vmatpush1.msra.mxu0 0.0
  %948 = vmatprep.subr.mxu0 0.0
  %949 = vmatpush1.msra.mxu0 0.0
  %950 = vmatprep.subr.mxu0 0.0
  %951 = vmatpush1.msra.mxu0 0.0
  %952 = vmatprep.subr.mxu0 0.0
  %953 = vmatpush1.msra.mxu0 0.0
  %954 = vmatprep.subr.mxu0 0.0
  %955 = vmatpush1.msra.mxu0 0.0
  %956 = vmatprep.subr.mxu0 0.0
  %957 = vmatpush1.msra.mxu0 0.0
  %958 = vmatprep.subr.mxu0 0.0
  %959 = vmatpush1.msra.mxu0 0.0
  %960 = vmatprep.subr.mxu0 0.0
  %961 = vmatpush1.msra.mxu0 0.0
  %962 = vmatprep.mubr.f32.mxu0 0.0
  %963 = vmatmul.mubr.f32.gmra.mrb[0].mxu0 %v887
  %v964 = vpop.f32.mrb[0].mxu0
  %v965 = vadd.f32 0.0, %v964
  %v966 = vpop.f32.mrb[0].mxu0
  %v967 = vadd.f32 0.0, %v966
  %968 = vmatprep.mubr.f32.mxu0 0.0
  %969 = vmatmul.mubr.f32.gmra.mrb[0].mxu0 %v890
  %v970 = vpop.f32.mrb[0].mxu0
  %v971 = vadd.f32 0.0, %v970
  %v972 = vpop.f32.mrb[0].mxu0
  %v973 = vadd.f32 0.0, %v972
  %974 = vmatprep.mubr.f32.mxu0 0.0
  %975 = vmatmul.mubr.f32.gmra.mrb[0].mxu0 %v893
  %v976 = vpop.f32.mrb[0].mxu0
  %v977 = vadd.f32 0.0, %v976
  %v978 = vpop.f32.mrb[0].mxu0
  %v979 = vadd.f32 0.0, %v978
  %980 = vmatprep.mubr.f32.mxu0 0.0
  %981 = vmatmul.mubr.f32.gmra.mrb[0].mxu0 %v896
  %v982 = vpop.f32.mrb[0].mxu0
  %v983 = vadd.f32 0.0, %v982
  %v984 = vpop.f32.mrb[0].mxu0
  %v985 = vadd.f32 0.0, %v984
  %986 = vdwg.mxu0
  %987 = vmatprep.subr.mxu0 %v25
  %988 = vmatpush1.msra.mxu0 %v24
  %989 = vmatprep.subr.mxu0 %v32
  %990 = vmatpush1.msra.mxu0 %v31
  %991 = vmatprep.subr.mxu0 0.0
  %992 = vmatpush1.msra.mxu0 0.0
  %993 = vmatprep.subr.mxu0 0.0
  %994 = vmatpush1.msra.mxu0 0.0
  %995 = vmatprep.subr.mxu0 0.0
  %996 = vmatpush1.msra.mxu0 0.0
  %997 = vmatprep.subr.mxu0 0.0
  %998 = vmatpush1.msra.mxu0 0.0
  %999 = vmatprep.subr.mxu0 0.0
  %1000 = vmatpush1.msra.mxu0 0.0
  %1001 = vmatprep.subr.mxu0 0.0
  %1002 = vmatpush1.msra.mxu0 0.0
  %1003 = vmatprep.subr.mxu0 0.0
  %1004 = vmatpush1.msra.mxu0 0.0
  %1005 = vmatprep.subr.mxu0 0.0
  %1006 = vmatpush1.msra.mxu0 0.0
  %1007 = vmatprep.subr.mxu0 0.0
  %1008 = vmatpush1.msra.mxu0 0.0
  %1009 = vmatprep.subr.mxu0 0.0
  %1010 = vmatpush1.msra.mxu0 0.0
  %1011 = vmatprep.subr.mxu0 0.0
  %1012 = vmatpush1.msra.mxu0 0.0
  %1013 = vmatprep.subr.mxu0 0.0
  %1014 = vmatpush1.msra.mxu0 0.0
  %1015 = vmatprep.subr.mxu0 0.0
  %1016 = vmatpush1.msra.mxu0 0.0
  %1017 = vmatprep.subr.mxu0 0.0
  %1018 = vmatpush1.msra.mxu0 0.0
  %1019 = vmatprep.subr.mxu0 0.0
  %1020 = vmatpush1.msra.mxu0 0.0
  %1021 = vmatprep.subr.mxu0 0.0
  %1022 = vmatpush1.msra.mxu0 0.0
  %1023 = vmatprep.subr.mxu0 0.0
  %1024 = vmatpush1.msra.mxu0 0.0
  %1025 = vmatprep.subr.mxu0 0.0
  %1026 = vmatpush1.msra.mxu0 0.0
  %1027 = vmatprep.subr.mxu0 0.0
  %1028 = vmatpush1.msra.mxu0 0.0
  %1029 = vmatprep.subr.mxu0 0.0
  %1030 = vmatpush1.msra.mxu0 0.0
  %1031 = vmatprep.subr.mxu0 0.0
  %1032 = vmatpush1.msra.mxu0 0.0
  %1033 = vmatprep.subr.mxu0 0.0
  %1034 = vmatpush1.msra.mxu0 0.0
  %1035 = vmatprep.subr.mxu0 0.0
  %1036 = vmatpush1.msra.mxu0 0.0
  %1037 = vmatprep.subr.mxu0 0.0
  %1038 = vmatpush1.msra.mxu0 0.0
  %1039 = vmatprep.subr.mxu0 0.0
  %1040 = vmatpush1.msra.mxu0 0.0
  %1041 = vmatprep.subr.mxu0 0.0
  %1042 = vmatpush1.msra.mxu0 0.0
  %1043 = vmatprep.subr.mxu0 0.0
  %1044 = vmatpush1.msra.mxu0 0.0
  %1045 = vmatprep.subr.mxu0 0.0
  %1046 = vmatpush1.msra.mxu0 0.0
  %1047 = vmatprep.subr.mxu0 0.0
  %1048 = vmatpush1.msra.mxu0 0.0
  %1049 = vmatprep.subr.mxu0 0.0
  %1050 = vmatpush1.msra.mxu0 0.0
  %1051 = vmatprep.mubr.f32.mxu0 0.0
  %1052 = vmatmul.mubr.f32.gmra.mrb[0].mxu0 %v887
  %v1053 = vpop.f32.mrb[0].mxu0
  %v1054 = vadd.f32 0.0, %v1053
  %v1055 = vpop.f32.mrb[0].mxu0
  %v1056 = vadd.f32 0.0, %v1055
  %1057 = vmatprep.mubr.f32.mxu0 0.0
  %1058 = vmatmul.mubr.f32.gmra.mrb[0].mxu0 %v890
  %v1059 = vpop.f32.mrb[0].mxu0
  %v1060 = vadd.f32 0.0, %v1059
  %v1061 = vpop.f32.mrb[0].mxu0
  %v1062 = vadd.f32 0.0, %v1061
  %1063 = vmatprep.mubr.f32.mxu0 0.0
  %1064 = vmatmul.mubr.f32.gmra.mrb[0].mxu0 %v893
  %v1065 = vpop.f32.mrb[0].mxu0
  %v1066 = vadd.f32 0.0, %v1065
  %v1067 = vpop.f32.mrb[0].mxu0
  %v1068 = vadd.f32 0.0, %v1067
  %1069 = vmatprep.mubr.f32.mxu0 0.0
  %1070 = vmatmul.mubr.f32.gmra.mrb[0].mxu0 %v896
  %v1071 = vpop.f32.mrb[0].mxu0
  %v1072 = vadd.f32 0.0, %v1071
  %v1073 = vpop.f32.mrb[0].mxu0
  %v1074 = vadd.f32 0.0, %v1073
  %1075 = vdwg.mxu0
  %1076 = vmatprep.subr.mxu0 %v27
  %1077 = vmatpush1.msra.mxu0 %v26
  %1078 = vmatprep.subr.mxu0 %v34
  %1079 = vmatpush1.msra.mxu0 %v33
  %1080 = vmatprep.subr.mxu0 0.0
  %1081 = vmatpush1.msra.mxu0 0.0
  %1082 = vmatprep.subr.mxu0 0.0
  %1083 = vmatpush1.msra.mxu0 0.0
  %1084 = vmatprep.subr.mxu0 0.0
  %1085 = vmatpush1.msra.mxu0 0.0
  %1086 = vmatprep.subr.mxu0 0.0
  %1087 = vmatpush1.msra.mxu0 0.0
  %1088 = vmatprep.subr.mxu0 0.0
  %1089 = vmatpush1.msra.mxu0 0.0
  %1090 = vmatprep.subr.mxu0 0.0
  %1091 = vmatpush1.msra.mxu0 0.0
  %1092 = vmatprep.subr.mxu0 0.0
  %1093 = vmatpush1.msra.mxu0 0.0
  %1094 = vmatprep.subr.mxu0 0.0
  %1095 = vmatpush1.msra.mxu0 0.0
  %1096 = vmatprep.subr.mxu0 0.0
  %1097 = vmatpush1.msra.mxu0 0.0
  %1098 = vmatprep.subr.mxu0 0.0
  %1099 = vmatpush1.msra.mxu0 0.0
  %1100 = vmatprep.subr.mxu0 0.0
  %1101 = vmatpush1.msra.mxu0 0.0
  %1102 = vmatprep.subr.mxu0 0.0
  %1103 = vmatpush1.msra.mxu0 0.0
  %1104 = vmatprep.subr.mxu0 0.0
  %1105 = vmatpush1.msra.mxu0 0.0
  %1106 = vmatprep.subr.mxu0 0.0
  %1107 = vmatpush1.msra.mxu0 0.0
  %1108 = vmatprep.subr.mxu0 0.0
  %1109 = vmatpush1.msra.mxu0 0.0
  %1110 = vmatprep.subr.mxu0 0.0
  %1111 = vmatpush1.msra.mxu0 0.0
  %1112 = vmatprep.subr.mxu0 0.0
  %1113 = vmatpush1.msra.mxu0 0.0
  %1114 = vmatprep.subr.mxu0 0.0
  %1115 = vmatpush1.msra.mxu0 0.0
  %1116 = vmatprep.subr.mxu0 0.0
  %1117 = vmatpush1.msra.mxu0 0.0
  %1118 = vmatprep.subr.mxu0 0.0
  %1119 = vmatpush1.msra.mxu0 0.0
  %1120 = vmatprep.subr.mxu0 0.0
  %1121 = vmatpush1.msra.mxu0 0.0
  %1122 = vmatprep.subr.mxu0 0.0
  %1123 = vmatpush1.msra.mxu0 0.0
  %1124 = vmatprep.subr.mxu0 0.0
  %1125 = vmatpush1.msra.mxu0 0.0
  %1126 = vmatprep.subr.mxu0 0.0
  %1127 = vmatpush1.msra.mxu0 0.0
  %1128 = vmatprep.subr.mxu0 0.0
  %1129 = vmatpush1.msra.mxu0 0.0
  %1130 = vmatprep.subr.mxu0 0.0
  %1131 = vmatpush1.msra.mxu0 0.0
  %1132 = vmatprep.subr.mxu0 0.0
  %1133 = vmatpush1.msra.mxu0 0.0
  %1134 = vmatprep.subr.mxu0 0.0
  %1135 = vmatpush1.msra.mxu0 0.0
  %1136 = vmatprep.subr.mxu0 0.0
  %1137 = vmatpush1.msra.mxu0 0.0
  %1138 = vmatprep.subr.mxu0 0.0
  %1139 = vmatpush1.msra.mxu0 0.0
  %1140 = vmatprep.mubr.f32.mxu0 0.0
  %1141 = vmatmul.mubr.f32.gmra.mrb[0].mxu0 %v887
  %v1142 = vpop.f32.mrb[0].mxu0
  %v1143 = vadd.f32 0.0, %v1142
  %v1144 = vpop.f32.mrb[0].mxu0
  %v1145 = vadd.f32 0.0, %v1144
  %1146 = vmatprep.mubr.f32.mxu0 0.0
  %1147 = vmatmul.mubr.f32.gmra.mrb[0].mxu0 %v890
  %v1148 = vpop.f32.mrb[0].mxu0
  %v1149 = vadd.f32 0.0, %v1148
  %v1150 = vpop.f32.mrb[0].mxu0
  %v1151 = vadd.f32 0.0, %v1150
  %1152 = vmatprep.mubr.f32.mxu0 0.0
  %1153 = vmatmul.mubr.f32.gmra.mrb[0].mxu0 %v893
  %v1154 = vpop.f32.mrb[0].mxu0
  %v1155 = vadd.f32 0.0, %v1154
  %v1156 = vpop.f32.mrb[0].mxu0
  %v1157 = vadd.f32 0.0, %v1156
  %1158 = vmatprep.mubr.f32.mxu0 0.0
  %1159 = vmatmul.mubr.f32.gmra.mrb[0].mxu0 %v896
  %v1160 = vpop.f32.mrb[0].mxu0
  %v1161 = vadd.f32 0.0, %v1160
  %v1162 = vpop.f32.mrb[0].mxu0
  %v1163 = vadd.f32 0.0, %v1162
  %1164 = vdwg.mxu0
  %1165 = vmatprep.subr.mxu0 0.0
  %1166 = vmatpush1.msra.mxu0 %v28
  %1167 = vmatprep.subr.mxu0 0.0
  %1168 = vmatpush1.msra.mxu0 %v35
  %1169 = vmatprep.subr.mxu0 0.0
  %1170 = vmatpush1.msra.mxu0 0.0
  %1171 = vmatprep.subr.mxu0 0.0
  %1172 = vmatpush1.msra.mxu0 0.0
  %1173 = vmatprep.subr.mxu0 0.0
  %1174 = vmatpush1.msra.mxu0 0.0
  %1175 = vmatprep.subr.mxu0 0.0
  %1176 = vmatpush1.msra.mxu0 0.0
  %1177 = vmatprep.subr.mxu0 0.0
  %1178 = vmatpush1.msra.mxu0 0.0
  %1179 = vmatprep.subr.mxu0 0.0
  %1180 = vmatpush1.msra.mxu0 0.0
  %1181 = vmatprep.subr.mxu0 0.0
  %1182 = vmatpush1.msra.mxu0 0.0
  %1183 = vmatprep.subr.mxu0 0.0
  %1184 = vmatpush1.msra.mxu0 0.0
  %1185 = vmatprep.subr.mxu0 0.0
  %1186 = vmatpush1.msra.mxu0 0.0
  %1187 = vmatprep.subr.mxu0 0.0
  %1188 = vmatpush1.msra.mxu0 0.0
  %1189 = vmatprep.subr.mxu0 0.0
  %1190 = vmatpush1.msra.mxu0 0.0
  %1191 = vmatprep.subr.mxu0 0.0
  %1192 = vmatpush1.msra.mxu0 0.0
  %1193 = vmatprep.subr.mxu0 0.0
  %1194 = vmatpush1.msra.mxu0 0.0
  %1195 = vmatprep.subr.mxu0 0.0
  %1196 = vmatpush1.msra.mxu0 0.0
  %1197 = vmatprep.subr.mxu0 0.0
  %1198 = vmatpush1.msra.mxu0 0.0
  %1199 = vmatprep.subr.mxu0 0.0
  %1200 = vmatpush1.msra.mxu0 0.0
  %1201 = vmatprep.subr.mxu0 0.0
  %1202 = vmatpush1.msra.mxu0 0.0
  %1203 = vmatprep.subr.mxu0 0.0
  %1204 = vmatpush1.msra.mxu0 0.0
  %1205 = vmatprep.subr.mxu0 0.0
  %1206 = vmatpush1.msra.mxu0 0.0
  %1207 = vmatprep.subr.mxu0 0.0
  %1208 = vmatpush1.msra.mxu0 0.0
  %1209 = vmatprep.subr.mxu0 0.0
  %1210 = vmatpush1.msra.mxu0 0.0
  %1211 = vmatprep.subr.mxu0 0.0
  %1212 = vmatpush1.msra.mxu0 0.0
  %1213 = vmatprep.subr.mxu0 0.0
  %1214 = vmatpush1.msra.mxu0 0.0
  %1215 = vmatprep.subr.mxu0 0.0
  %1216 = vmatpush1.msra.mxu0 0.0
  %1217 = vmatprep.subr.mxu0 0.0
  %1218 = vmatpush1.msra.mxu0 0.0
  %1219 = vmatprep.subr.mxu0 0.0
  %1220 = vmatpush1.msra.mxu0 0.0
  %1221 = vmatprep.subr.mxu0 0.0
  %1222 = vmatpush1.msra.mxu0 0.0
  %1223 = vmatprep.subr.mxu0 0.0
  %1224 = vmatpush1.msra.mxu0 0.0
  %1225 = vmatprep.subr.mxu0 0.0
  %1226 = vmatpush1.msra.mxu0 0.0
  %1227 = vmatprep.subr.mxu0 0.0
  %1228 = vmatpush1.msra.mxu0 0.0
  %1229 = vmatprep.mubr.f32.mxu0 0.0
  %1230 = vmatmul.mubr.f32.gmra.mrb[0].mxu0 %v887
  %v1231 = vpop.f32.mrb[0].mxu0
  %v1232 = vadd.f32 0.0, %v1231
  %v1233 = vpop.f32.mrb[0].mxu0
  %1234 = vmatprep.mubr.f32.mxu0 0.0
  %1235 = vmatmul.mubr.f32.gmra.mrb[0].mxu0 %v890
  %v1236 = vpop.f32.mrb[0].mxu0
  %v1237 = vadd.f32 0.0, %v1236
  %v1238 = vpop.f32.mrb[0].mxu0
  %1239 = vmatprep.mubr.f32.mxu0 0.0
  %1240 = vmatmul.mubr.f32.gmra.mrb[0].mxu0 %v893
  %v1241 = vpop.f32.mrb[0].mxu0
  %v1242 = vadd.f32 0.0, %v1241
  %v1243 = vpop.f32.mrb[0].mxu0
  %1244 = vmatprep.mubr.f32.mxu0 0.0
  %1245 = vmatmul.mubr.f32.gmra.mrb[0].mxu0 %v896
  %v1246 = vpop.f32.mrb[0].mxu0
  %v1247 = vadd.f32 0.0, %v1246
  %v1248 = vpop.f32.mrb[0].mxu0
  %1249 = vdwg.mxu0
  %v1250 = vmul.f32 %v965, %v148
  %v1251 = vmul.f32 %v967, %v149
  %v1252 = vmul.f32 %v1054, %v150
  %v1253 = vmul.f32 %v1056, %v151
  %v1254 = vmul.f32 %v1143, %v152
  %v1255 = vmul.f32 %v1145, %v153
  %v1256 = vmul.f32 %v1232, %v154
  %v1257 = vmul.f32 %v971, %v155
  %v1258 = vmul.f32 %v973, %v156
  %v1259 = vmul.f32 %v1060, %v157
  %v1260 = vmul.f32 %v1062, %v158
  %v1261 = vmul.f32 %v1149, %v159
  %v1262 = vmul.f32 %v1151, %v160
  %v1263 = vmul.f32 %v1237, %v161
  %v1264 = vadd.f32 %v1250, %v1257
  %v1265 = vadd.f32 %v1251, %v1258
  %v1266 = vadd.f32 %v1252, %v1259
  %v1267 = vadd.f32 %v1253, %v1260
  %v1268 = vadd.f32 %v1254, %v1261
  %v1269 = vadd.f32 %v1255, %v1262
  %v1270 = vadd.f32 %v1256, %v1263
  %v1271 = vmul.f32 %v977, %v162
  %v1272 = vmul.f32 %v979, %v163
  %v1273 = vmul.f32 %v1066, %v164
  %v1274 = vmul.f32 %v1068, %v165
  %v1275 = vmul.f32 %v1155, %v166
  %v1276 = vmul.f32 %v1157, %v167
  %v1277 = vmul.f32 %v1242, %v168
  %v1278 = vadd.f32 %v1264, %v1271
  %v1279 = vadd.f32 %v1265, %v1272
  %v1280 = vadd.f32 %v1266, %v1273
  %v1281 = vadd.f32 %v1267, %v1274
  %v1282 = vadd.f32 %v1268, %v1275
  %v1283 = vadd.f32 %v1269, %v1276
  %v1284 = vadd.f32 %v1270, %v1277
  %v1285 = vadd.f32 %v1278, %v983
  %v1286 = vadd.f32 %v1279, %v985
  %v1287 = vadd.f32 %v1280, %v1072
  %v1288 = vadd.f32 %v1281, %v1074
  %v1289 = vadd.f32 %v1282, %v1161
  %v1290 = vadd.f32 %v1283, %v1163
  %v1291 = vadd.f32 %v1284, %v1247
  %1292 = vset.pattern.permute.xlu0 1
  %1293 = vperm.xlu0 %1292, %v169
  %v1294 = vpop.permute.xlu0 %1293
  %v1296 = vadd.f32 %v1285, %v1294
  %v1297 = vadd.f32 %v1286, %v1294
  %v1298 = vadd.f32 %v1287, %v1294
  %v1299 = vadd.f32 %v1288, %v1294
  %v1300 = vadd.f32 %v1289, %v1294
  %v1301 = vadd.f32 %v1290, %v1294
  %v1302 = vadd.f32 %v1291, %v1294
  %1303 = vst [vmem:[%s5 + $0x38] sm:$0xff] %v1296
  %1304 = vst [vmem:[%s5 + $0x40] sm:$0xff] %v1297
  %1305 = vst [vmem:[%s5 + $0x48] sm:$0xff] %v1298
  %1306 = vst [vmem:[%s5 + $0x50] sm:$0xff] %v1299
  %1307 = vst [vmem:[%s5 + $0x58] sm:$0xff] %v1300
  %1308 = vst [vmem:[%s5 + $0x60] sm:$0xff] %v1301
  %1309 = vst [vmem:[%s5 + $0x68] sm:$0xff] %v1302
  %1310 = vmatprep.subr.mxu0 0.0
  %1311 = vmatpush1.msra.mxu0 %v36
  %1312 = vmatprep.subr.mxu0 0.0
  %1313 = vmatpush1.msra.mxu0 %v37
  %1314 = vmatprep.subr.mxu0 0.0
  %1315 = vmatpush1.msra.mxu0 %v38
  %1316 = vmatprep.subr.mxu0 0.0
  %1317 = vmatpush1.msra.mxu0 %v39
  %1318 = vmatprep.subr.mxu0 0.0
  %1319 = vmatpush1.msra.mxu0 %v40
  %1320 = vmatprep.subr.mxu0 0.0
  %1321 = vmatpush1.msra.mxu0 %v41
  %1322 = vmatprep.subr.mxu0 0.0
  %1323 = vmatpush1.msra.mxu0 %v42
  %1324 = vmatprep.subr.mxu0 0.0
  %1325 = vmatpush1.msra.mxu0 %v43
  %1326 = vmatprep.subr.mxu0 0.0
  %1327 = vmatpush1.msra.mxu0 %v44
  %1328 = vmatprep.subr.mxu0 0.0
  %1329 = vmatpush1.msra.mxu0 %v45
  %1330 = vmatprep.subr.mxu0 0.0
  %1331 = vmatpush1.msra.mxu0 %v46
  %1332 = vmatprep.subr.mxu0 0.0
  %1333 = vmatpush1.msra.mxu0 %v47
  %1334 = vmatprep.subr.mxu0 0.0
  %1335 = vmatpush1.msra.mxu0 %v48
  %1336 = vmatprep.subr.mxu0 0.0
  %1337 = vmatpush1.msra.mxu0 %v49
  %1338 = vmatprep.subr.mxu0 0.0
  %1339 = vmatpush1.msra.mxu0 %v50
  %1340 = vmatprep.subr.mxu0 0.0
  %1341 = vmatpush1.msra.mxu0 %v51
  %1342 = vmatprep.subr.mxu0 0.0
  %1343 = vmatpush1.msra.mxu0 %v52
  %1344 = vmatprep.subr.mxu0 0.0
  %1345 = vmatpush1.msra.mxu0 %v53
  %1346 = vmatprep.subr.mxu0 0.0
  %1347 = vmatpush1.msra.mxu0 %v54
  %1348 = vmatprep.subr.mxu0 0.0
  %1349 = vmatpush1.msra.mxu0 %v55
  %1350 = vmatprep.subr.mxu0 0.0
  %1351 = vmatpush1.msra.mxu0 %v56
  %1352 = vmatprep.subr.mxu0 0.0
  %1353 = vmatpush1.msra.mxu0 %v57
  %1354 = vmatprep.subr.mxu0 0.0
  %1355 = vmatpush1.msra.mxu0 %v58
  %1356 = vmatprep.subr.mxu0 0.0
  %1357 = vmatpush1.msra.mxu0 %v59
  %1358 = vmatprep.subr.mxu0 0.0
  %1359 = vmatpush1.msra.mxu0 %v60
  %1360 = vmatprep.subr.mxu0 0.0
  %1361 = vmatpush1.msra.mxu0 %v61
  %1362 = vmatprep.subr.mxu0 0.0
  %1363 = vmatpush1.msra.mxu0 %v62
  %1364 = vmatprep.subr.mxu0 0.0
  %1365 = vmatpush1.msra.mxu0 %v63
  %1366 = vmatprep.subr.mxu0 0.0
  %1367 = vmatpush1.msra.mxu0 %v64
  %1368 = vmatprep.subr.mxu0 0.0
  %1369 = vmatpush1.msra.mxu0 %v65
  %1370 = vmatprep.subr.mxu0 0.0
  %1371 = vmatpush1.msra.mxu0 %v66
  %1372 = vmatprep.subr.mxu0 0.0
  %1373 = vmatpush1.msra.mxu0 %v67
  %1374 = vmatprep.mubr.f32.mxu0 %v1297
  %1375 = vmatmul.mubr.f32.gmra.mrb[0].mxu0 %v1296
  %v1376 = vpop.f32.mrb[0].mxu0
  %v1377 = vadd.f32 0.0, %v1376
  %v1378 = vpop.f32.mrb[0].mxu0
  %1379 = vdwg.mxu0
  %1380 = vmatprep.subr.mxu0 0.0
  %1381 = vmatpush1.msra.mxu0 %v68
  %1382 = vmatprep.subr.mxu0 0.0
  %1383 = vmatpush1.msra.mxu0 %v69
  %1384 = vmatprep.subr.mxu0 0.0
  %1385 = vmatpush1.msra.mxu0 %v70
  %1386 = vmatprep.subr.mxu0 0.0
  %1387 = vmatpush1.msra.mxu0 %v71
  %1388 = vmatprep.subr.mxu0 0.0
  %1389 = vmatpush1.msra.mxu0 %v72
  %1390 = vmatprep.subr.mxu0 0.0
  %1391 = vmatpush1.msra.mxu0 %v73
  %1392 = vmatprep.subr.mxu0 0.0
  %1393 = vmatpush1.msra.mxu0 %v74
  %1394 = vmatprep.subr.mxu0 0.0
  %1395 = vmatpush1.msra.mxu0 %v75
  %1396 = vmatprep.subr.mxu0 0.0
  %1397 = vmatpush1.msra.mxu0 %v76
  %1398 = vmatprep.subr.mxu0 0.0
  %1399 = vmatpush1.msra.mxu0 %v77
  %1400 = vmatprep.subr.mxu0 0.0
  %1401 = vmatpush1.msra.mxu0 %v78
  %1402 = vmatprep.subr.mxu0 0.0
  %1403 = vmatpush1.msra.mxu0 %v79
  %1404 = vmatprep.subr.mxu0 0.0
  %1405 = vmatpush1.msra.mxu0 %v80
  %1406 = vmatprep.subr.mxu0 0.0
  %1407 = vmatpush1.msra.mxu0 %v81
  %1408 = vmatprep.subr.mxu0 0.0
  %1409 = vmatpush1.msra.mxu0 %v82
  %1410 = vmatprep.subr.mxu0 0.0
  %1411 = vmatpush1.msra.mxu0 %v83
  %1412 = vmatprep.subr.mxu0 0.0
  %1413 = vmatpush1.msra.mxu0 %v84
  %1414 = vmatprep.subr.mxu0 0.0
  %1415 = vmatpush1.msra.mxu0 %v85
  %1416 = vmatprep.subr.mxu0 0.0
  %1417 = vmatpush1.msra.mxu0 %v86
  %1418 = vmatprep.subr.mxu0 0.0
  %1419 = vmatpush1.msra.mxu0 %v87
  %1420 = vmatprep.subr.mxu0 0.0
  %1421 = vmatpush1.msra.mxu0 %v88
  %1422 = vmatprep.subr.mxu0 0.0
  %1423 = vmatpush1.msra.mxu0 %v89
  %1424 = vmatprep.subr.mxu0 0.0
  %1425 = vmatpush1.msra.mxu0 %v90
  %1426 = vmatprep.subr.mxu0 0.0
  %1427 = vmatpush1.msra.mxu0 %v91
  %1428 = vmatprep.subr.mxu0 0.0
  %1429 = vmatpush1.msra.mxu0 %v92
  %1430 = vmatprep.subr.mxu0 0.0
  %1431 = vmatpush1.msra.mxu0 %v93
  %1432 = vmatprep.subr.mxu0 0.0
  %1433 = vmatpush1.msra.mxu0 %v94
  %1434 = vmatprep.subr.mxu0 0.0
  %1435 = vmatpush1.msra.mxu0 %v95
  %1436 = vmatprep.subr.mxu0 0.0
  %1437 = vmatpush1.msra.mxu0 %v96
  %1438 = vmatprep.subr.mxu0 0.0
  %1439 = vmatpush1.msra.mxu0 %v97
  %1440 = vmatprep.subr.mxu0 0.0
  %1441 = vmatpush1.msra.mxu0 %v98
  %1442 = vmatprep.subr.mxu0 0.0
  %1443 = vmatpush1.msra.mxu0 %v99
  %1444 = vmatprep.mubr.f32.mxu0 %v1299
  %1445 = vmatmul.mubr.f32.gmra.mrb[0].mxu0 %v1298
  %v1446 = vpop.f32.mrb[0].mxu0
  %v1447 = vadd.f32 %v1377, %v1446
  %v1448 = vpop.f32.mrb[0].mxu0
  %1449 = vdwg.mxu0
  %1450 = vmatprep.subr.mxu0 0.0
  %1451 = vmatpush1.msra.mxu0 %v100
  %1452 = vmatprep.subr.mxu0 0.0
  %1453 = vmatpush1.msra.mxu0 %v101
  %1454 = vmatprep.subr.mxu0 0.0
  %1455 = vmatpush1.msra.mxu0 %v102
  %1456 = vmatprep.subr.mxu0 0.0
  %1457 = vmatpush1.msra.mxu0 %v103
  %1458 = vmatprep.subr.mxu0 0.0
  %1459 = vmatpush1.msra.mxu0 %v104
  %1460 = vmatprep.subr.mxu0 0.0
  %1461 = vmatpush1.msra.mxu0 %v105
  %1462 = vmatprep.subr.mxu0 0.0
  %1463 = vmatpush1.msra.mxu0 %v106
  %1464 = vmatprep.subr.mxu0 0.0
  %1465 = vmatpush1.msra.mxu0 %v107
  %1466 = vmatprep.subr.mxu0 0.0
  %1467 = vmatpush1.msra.mxu0 %v108
  %1468 = vmatprep.subr.mxu0 0.0
  %1469 = vmatpush1.msra.mxu0 %v109
  %1470 = vmatprep.subr.mxu0 0.0
  %1471 = vmatpush1.msra.mxu0 %v110
  %1472 = vmatprep.subr.mxu0 0.0
  %1473 = vmatpush1.msra.mxu0 %v111
  %1474 = vmatprep.subr.mxu0 0.0
  %1475 = vmatpush1.msra.mxu0 %v112
  %1476 = vmatprep.subr.mxu0 0.0
  %1477 = vmatpush1.msra.mxu0 %v113
  %1478 = vmatprep.subr.mxu0 0.0
  %1479 = vmatpush1.msra.mxu0 %v114
  %1480 = vmatprep.subr.mxu0 0.0
  %1481 = vmatpush1.msra.mxu0 %v115
  %1482 = vmatprep.subr.mxu0 0.0
  %1483 = vmatpush1.msra.mxu0 %v116
  %1484 = vmatprep.subr.mxu0 0.0
  %1485 = vmatpush1.msra.mxu0 %v117
  %1486 = vmatprep.subr.mxu0 0.0
  %1487 = vmatpush1.msra.mxu0 %v118
  %1488 = vmatprep.subr.mxu0 0.0
  %1489 = vmatpush1.msra.mxu0 %v119
  %1490 = vmatprep.subr.mxu0 0.0
  %1491 = vmatpush1.msra.mxu0 %v120
  %1492 = vmatprep.subr.mxu0 0.0
  %1493 = vmatpush1.msra.mxu0 %v121
  %1494 = vmatprep.subr.mxu0 0.0
  %1495 = vmatpush1.msra.mxu0 %v122
  %1496 = vmatprep.subr.mxu0 0.0
  %1497 = vmatpush1.msra.mxu0 %v123
  %1498 = vmatprep.subr.mxu0 0.0
  %1499 = vmatpush1.msra.mxu0 %v124
  %1500 = vmatprep.subr.mxu0 0.0
  %1501 = vmatpush1.msra.mxu0 %v125
  %1502 = vmatprep.subr.mxu0 0.0
  %1503 = vmatpush1.msra.mxu0 %v126
  %1504 = vmatprep.subr.mxu0 0.0
  %1505 = vmatpush1.msra.mxu0 %v127
  %1506 = vmatprep.subr.mxu0 0.0
  %1507 = vmatpush1.msra.mxu0 %v128
  %1508 = vmatprep.subr.mxu0 0.0
  %1509 = vmatpush1.msra.mxu0 %v129
  %1510 = vmatprep.subr.mxu0 0.0
  %1511 = vmatpush1.msra.mxu0 %v130
  %1512 = vmatprep.subr.mxu0 0.0
  %1513 = vmatpush1.msra.mxu0 %v131
  %1514 = vmatprep.mubr.f32.mxu0 %v1301
  %1515 = vmatmul.mubr.f32.gmra.mrb[0].mxu0 %v1300
  %v1516 = vpop.f32.mrb[0].mxu0
  %v1517 = vadd.f32 %v1447, %v1516
  %v1518 = vpop.f32.mrb[0].mxu0
  %1519 = vdwg.mxu0
  %1520 = vmatprep.subr.mxu0 0.0
  %1521 = vmatpush1.msra.mxu0 %v132
  %1522 = vmatprep.subr.mxu0 0.0
  %1523 = vmatpush1.msra.mxu0 %v133
  %1524 = vmatprep.subr.mxu0 0.0
  %1525 = vmatpush1.msra.mxu0 %v134
  %1526 = vmatprep.subr.mxu0 0.0
  %1527 = vmatpush1.msra.mxu0 %v135
  %1528 = vmatprep.subr.mxu0 0.0
  %1529 = vmatpush1.msra.mxu0 %v136
  %1530 = vmatprep.subr.mxu0 0.0
  %1531 = vmatpush1.msra.mxu0 %v137
  %1532 = vmatprep.subr.mxu0 0.0
  %1533 = vmatpush1.msra.mxu0 %v138
  %1534 = vmatprep.subr.mxu0 0.0
  %1535 = vmatpush1.msra.mxu0 %v139
  %1536 = vmatprep.subr.mxu0 0.0
  %1537 = vmatpush1.msra.mxu0 %v140
  %1538 = vmatprep.subr.mxu0 0.0
  %1539 = vmatpush1.msra.mxu0 %v141
  %1540 = vmatprep.subr.mxu0 0.0
  %1541 = vmatpush1.msra.mxu0 %v142
  %1542 = vmatprep.subr.mxu0 0.0
  %1543 = vmatpush1.msra.mxu0 %v143
  %1544 = vmatprep.subr.mxu0 0.0
  %1545 = vmatpush1.msra.mxu0 %v144
  %1546 = vmatprep.subr.mxu0 0.0
  %1547 = vmatpush1.msra.mxu0 %v145
  %1548 = vmatprep.subr.mxu0 0.0
  %1549 = vmatpush1.msra.mxu0 %v146
  %1550 = vmatprep.subr.mxu0 0.0
  %1551 = vmatpush1.msra.mxu0 %v147
  %1552 = vmatprep.subr.mxu0 0.0
  %1553 = vmatpush1.msra.mxu0 0.0
  %1554 = vmatprep.subr.mxu0 0.0
  %1555 = vmatpush1.msra.mxu0 0.0
  %1556 = vmatprep.subr.mxu0 0.0
  %1557 = vmatpush1.msra.mxu0 0.0
  %1558 = vmatprep.subr.mxu0 0.0
  %1559 = vmatpush1.msra.mxu0 0.0
  %1560 = vmatprep.subr.mxu0 0.0
  %1561 = vmatpush1.msra.mxu0 0.0
  %1562 = vmatprep.subr.mxu0 0.0
  %1563 = vmatpush1.msra.mxu0 0.0
  %1564 = vmatprep.subr.mxu0 0.0
  %1565 = vmatpush1.msra.mxu0 0.0
  %1566 = vmatprep.subr.mxu0 0.0
  %1567 = vmatpush1.msra.mxu0 0.0
  %1568 = vmatprep.subr.mxu0 0.0
  %1569 = vmatpush1.msra.mxu0 0.0
  %1570 = vmatprep.subr.mxu0 0.0
  %1571 = vmatpush1.msra.mxu0 0.0
  %1572 = vmatprep.subr.mxu0 0.0
  %1573 = vmatpush1.msra.mxu0 0.0
  %1574 = vmatprep.subr.mxu0 0.0
  %1575 = vmatpush1.msra.mxu0 0.0
  %1576 = vmatprep.subr.mxu0 0.0
  %1577 = vmatpush1.msra.mxu0 0.0
  %1578 = vmatprep.subr.mxu0 0.0
  %1579 = vmatpush1.msra.mxu0 0.0
  %1580 = vmatprep.subr.mxu0 0.0
  %1581 = vmatpush1.msra.mxu0 0.0
  %1582 = vmatprep.subr.mxu0 0.0
  %1583 = vmatpush1.msra.mxu0 0.0
  %1584 = vmatprep.mubr.f32.mxu0 0.0
  %1585 = vmatmul.mubr.f32.gmra.mrb[0].mxu0 %v1302
  %v1586 = vpop.f32.mrb[0].mxu0
  %v1587 = vadd.f32 %v1517, %v1586
  %v1588 = vpop.f32.mrb[0].mxu0
  %1589 = vdwg.mxu0
  %s1590 = scalar_lea.vmem %s6, 8
  %1591 = vst.msk [vmem:[%s1590] sm:$0xff] %vm880, %v1587
  %v1592 = vld [vmem:[%s0 + $0x40] sm:$0xff]
  %v1593 = vld [vmem:[%s0 + $0x48] sm:$0xff]
  %v1594 = vld [vmem:[%s0 + $0x50] sm:$0xff]
  %v1595 = vld [vmem:[%s0 + $0x58] sm:$0xff]
  %v1597 = vsel %vm174, %v1592, 0
  %v1600 = vsel %vm174, %v1593, 0
  %v1603 = vsel %vm174, %v1594, 0
  %v1606 = vsel %vm174, %v1595, 0
  %1608 = vmatprep.subr.mxu0 %v23
  %1609 = vmatpush1.msra.mxu0 %v22
  %1610 = vmatprep.subr.mxu0 %v30
  %1611 = vmatpush1.msra.mxu0 %v29
  %1612 = vmatprep.subr.mxu0 0.0
  %1613 = vmatpush1.msra.mxu0 0.0
  %1614 = vmatprep.subr.mxu0 0.0
  %1615 = vmatpush1.msra.mxu0 0.0
  %1616 = vmatprep.subr.mxu0 0.0
  %1617 = vmatpush1.msra.mxu0 0.0
  %1618 = vmatprep.subr.mxu0 0.0
  %1619 = vmatpush1.msra.mxu0 0.0
  %1620 = vmatprep.subr.mxu0 0.0
  %1621 = vmatpush1.msra.mxu0 0.0
  %1622 = vmatprep.subr.mxu0 0.0
  %1623 = vmatpush1.msra.mxu0 0.0
  %1624 = vmatprep.subr.mxu0 0.0
  %1625 = vmatpush1.msra.mxu0 0.0
  %1626 = vmatprep.subr.mxu0 0.0
  %1627 = vmatpush1.msra.mxu0 0.0
  %1628 = vmatprep.subr.mxu0 0.0
  %1629 = vmatpush1.msra.mxu0 0.0
  %1630 = vmatprep.subr.mxu0 0.0
  %1631 = vmatpush1.msra.mxu0 0.0
  %1632 = vmatprep.subr.mxu0 0.0
  %1633 = vmatpush1.msra.mxu0 0.0
  %1634 = vmatprep.subr.mxu0 0.0
  %1635 = vmatpush1.msra.mxu0 0.0
  %1636 = vmatprep.subr.mxu0 0.0
  %1637 = vmatpush1.msra.mxu0 0.0
  %1638 = vmatprep.subr.mxu0 0.0
  %1639 = vmatpush1.msra.mxu0 0.0
  %1640 = vmatprep.subr.mxu0 0.0
  %1641 = vmatpush1.msra.mxu0 0.0
  %1642 = vmatprep.subr.mxu0 0.0
  %1643 = vmatpush1.msra.mxu0 0.0
  %1644 = vmatprep.subr.mxu0 0.0
  %1645 = vmatpush1.msra.mxu0 0.0
  %1646 = vmatprep.subr.mxu0 0.0
  %1647 = vmatpush1.msra.mxu0 0.0
  %1648 = vmatprep.subr.mxu0 0.0
  %1649 = vmatpush1.msra.mxu0 0.0
  %1650 = vmatprep.subr.mxu0 0.0
  %1651 = vmatpush1.msra.mxu0 0.0
  %1652 = vmatprep.subr.mxu0 0.0
  %1653 = vmatpush1.msra.mxu0 0.0
  %1654 = vmatprep.subr.mxu0 0.0
  %1655 = vmatpush1.msra.mxu0 0.0
  %1656 = vmatprep.subr.mxu0 0.0
  %1657 = vmatpush1.msra.mxu0 0.0
  %1658 = vmatprep.subr.mxu0 0.0
  %1659 = vmatpush1.msra.mxu0 0.0
  %1660 = vmatprep.subr.mxu0 0.0
  %1661 = vmatpush1.msra.mxu0 0.0
  %1662 = vmatprep.subr.mxu0 0.0
  %1663 = vmatpush1.msra.mxu0 0.0
  %1664 = vmatprep.subr.mxu0 0.0
  %1665 = vmatpush1.msra.mxu0 0.0
  %1666 = vmatprep.subr.mxu0 0.0
  %1667 = vmatpush1.msra.mxu0 0.0
  %1668 = vmatprep.subr.mxu0 0.0
  %1669 = vmatpush1.msra.mxu0 0.0
  %1670 = vmatprep.subr.mxu0 0.0
  %1671 = vmatpush1.msra.mxu0 0.0
  %1672 = vmatprep.mubr.f32.mxu0 0.0
  %1673 = vmatmul.mubr.f32.gmra.mrb[0].mxu0 %v1597
  %v1674 = vpop.f32.mrb[0].mxu0
  %v1675 = vadd.f32 0.0, %v1674
  %v1676 = vpop.f32.mrb[0].mxu0
  %v1677 = vadd.f32 0.0, %v1676
  %1678 = vmatprep.mubr.f32.mxu0 0.0
  %1679 = vmatmul.mubr.f32.gmra.mrb[0].mxu0 %v1600
  %v1680 = vpop.f32.mrb[0].mxu0
  %v1681 = vadd.f32 0.0, %v1680
  %v1682 = vpop.f32.mrb[0].mxu0
  %v1683 = vadd.f32 0.0, %v1682
  %1684 = vmatprep.mubr.f32.mxu0 0.0
  %1685 = vmatmul.mubr.f32.gmra.mrb[0].mxu0 %v1603
  %v1686 = vpop.f32.mrb[0].mxu0
  %v1687 = vadd.f32 0.0, %v1686
  %v1688 = vpop.f32.mrb[0].mxu0
  %v1689 = vadd.f32 0.0, %v1688
  %1690 = vmatprep.mubr.f32.mxu0 0.0
  %1691 = vmatmul.mubr.f32.gmra.mrb[0].mxu0 %v1606
  %v1692 = vpop.f32.mrb[0].mxu0
  %v1693 = vadd.f32 0.0, %v1692
  %v1694 = vpop.f32.mrb[0].mxu0
  %v1695 = vadd.f32 0.0, %v1694
  %1696 = vdwg.mxu0
  %1697 = vmatprep.subr.mxu0 %v25
  %1698 = vmatpush1.msra.mxu0 %v24
  %1699 = vmatprep.subr.mxu0 %v32
  %1700 = vmatpush1.msra.mxu0 %v31
  %1701 = vmatprep.subr.mxu0 0.0
  %1702 = vmatpush1.msra.mxu0 0.0
  %1703 = vmatprep.subr.mxu0 0.0
  %1704 = vmatpush1.msra.mxu0 0.0
  %1705 = vmatprep.subr.mxu0 0.0
  %1706 = vmatpush1.msra.mxu0 0.0
  %1707 = vmatprep.subr.mxu0 0.0
  %1708 = vmatpush1.msra.mxu0 0.0
  %1709 = vmatprep.subr.mxu0 0.0
  %1710 = vmatpush1.msra.mxu0 0.0
  %1711 = vmatprep.subr.mxu0 0.0
  %1712 = vmatpush1.msra.mxu0 0.0
  %1713 = vmatprep.subr.mxu0 0.0
  %1714 = vmatpush1.msra.mxu0 0.0
  %1715 = vmatprep.subr.mxu0 0.0
  %1716 = vmatpush1.msra.mxu0 0.0
  %1717 = vmatprep.subr.mxu0 0.0
  %1718 = vmatpush1.msra.mxu0 0.0
  %1719 = vmatprep.subr.mxu0 0.0
  %1720 = vmatpush1.msra.mxu0 0.0
  %1721 = vmatprep.subr.mxu0 0.0
  %1722 = vmatpush1.msra.mxu0 0.0
  %1723 = vmatprep.subr.mxu0 0.0
  %1724 = vmatpush1.msra.mxu0 0.0
  %1725 = vmatprep.subr.mxu0 0.0
  %1726 = vmatpush1.msra.mxu0 0.0
  %1727 = vmatprep.subr.mxu0 0.0
  %1728 = vmatpush1.msra.mxu0 0.0
  %1729 = vmatprep.subr.mxu0 0.0
  %1730 = vmatpush1.msra.mxu0 0.0
  %1731 = vmatprep.subr.mxu0 0.0
  %1732 = vmatpush1.msra.mxu0 0.0
  %1733 = vmatprep.subr.mxu0 0.0
  %1734 = vmatpush1.msra.mxu0 0.0
  %1735 = vmatprep.subr.mxu0 0.0
  %1736 = vmatpush1.msra.mxu0 0.0
  %1737 = vmatprep.subr.mxu0 0.0
  %1738 = vmatpush1.msra.mxu0 0.0
  %1739 = vmatprep.subr.mxu0 0.0
  %1740 = vmatpush1.msra.mxu0 0.0
  %1741 = vmatprep.subr.mxu0 0.0
  %1742 = vmatpush1.msra.mxu0 0.0
  %1743 = vmatprep.subr.mxu0 0.0
  %1744 = vmatpush1.msra.mxu0 0.0
  %1745 = vmatprep.subr.mxu0 0.0
  %1746 = vmatpush1.msra.mxu0 0.0
  %1747 = vmatprep.subr.mxu0 0.0
  %1748 = vmatpush1.msra.mxu0 0.0
  %1749 = vmatprep.subr.mxu0 0.0
  %1750 = vmatpush1.msra.mxu0 0.0
  %1751 = vmatprep.subr.mxu0 0.0
  %1752 = vmatpush1.msra.mxu0 0.0
  %1753 = vmatprep.subr.mxu0 0.0
  %1754 = vmatpush1.msra.mxu0 0.0
  %1755 = vmatprep.subr.mxu0 0.0
  %1756 = vmatpush1.msra.mxu0 0.0
  %1757 = vmatprep.subr.mxu0 0.0
  %1758 = vmatpush1.msra.mxu0 0.0
  %1759 = vmatprep.subr.mxu0 0.0
  %1760 = vmatpush1.msra.mxu0 0.0
  %1761 = vmatprep.mubr.f32.mxu0 0.0
  %1762 = vmatmul.mubr.f32.gmra.mrb[0].mxu0 %v1597
  %v1763 = vpop.f32.mrb[0].mxu0
  %v1764 = vadd.f32 0.0, %v1763
  %v1765 = vpop.f32.mrb[0].mxu0
  %v1766 = vadd.f32 0.0, %v1765
  %1767 = vmatprep.mubr.f32.mxu0 0.0
  %1768 = vmatmul.mubr.f32.gmra.mrb[0].mxu0 %v1600
  %v1769 = vpop.f32.mrb[0].mxu0
  %v1770 = vadd.f32 0.0, %v1769
  %v1771 = vpop.f32.mrb[0].mxu0
  %v1772 = vadd.f32 0.0, %v1771
  %1773 = vmatprep.mubr.f32.mxu0 0.0
  %1774 = vmatmul.mubr.f32.gmra.mrb[0].mxu0 %v1603
  %v1775 = vpop.f32.mrb[0].mxu0
  %v1776 = vadd.f32 0.0, %v1775
  %v1777 = vpop.f32.mrb[0].mxu0
  %v1778 = vadd.f32 0.0, %v1777
  %1779 = vmatprep.mubr.f32.mxu0 0.0
  %1780 = vmatmul.mubr.f32.gmra.mrb[0].mxu0 %v1606
  %v1781 = vpop.f32.mrb[0].mxu0
  %v1782 = vadd.f32 0.0, %v1781
  %v1783 = vpop.f32.mrb[0].mxu0
  %v1784 = vadd.f32 0.0, %v1783
  %1785 = vdwg.mxu0
  %1786 = vmatprep.subr.mxu0 %v27
  %1787 = vmatpush1.msra.mxu0 %v26
  %1788 = vmatprep.subr.mxu0 %v34
  %1789 = vmatpush1.msra.mxu0 %v33
  %1790 = vmatprep.subr.mxu0 0.0
  %1791 = vmatpush1.msra.mxu0 0.0
  %1792 = vmatprep.subr.mxu0 0.0
  %1793 = vmatpush1.msra.mxu0 0.0
  %1794 = vmatprep.subr.mxu0 0.0
  %1795 = vmatpush1.msra.mxu0 0.0
  %1796 = vmatprep.subr.mxu0 0.0
  %1797 = vmatpush1.msra.mxu0 0.0
  %1798 = vmatprep.subr.mxu0 0.0
  %1799 = vmatpush1.msra.mxu0 0.0
  %1800 = vmatprep.subr.mxu0 0.0
  %1801 = vmatpush1.msra.mxu0 0.0
  %1802 = vmatprep.subr.mxu0 0.0
  %1803 = vmatpush1.msra.mxu0 0.0
  %1804 = vmatprep.subr.mxu0 0.0
  %1805 = vmatpush1.msra.mxu0 0.0
  %1806 = vmatprep.subr.mxu0 0.0
  %1807 = vmatpush1.msra.mxu0 0.0
  %1808 = vmatprep.subr.mxu0 0.0
  %1809 = vmatpush1.msra.mxu0 0.0
  %1810 = vmatprep.subr.mxu0 0.0
  %1811 = vmatpush1.msra.mxu0 0.0
  %1812 = vmatprep.subr.mxu0 0.0
  %1813 = vmatpush1.msra.mxu0 0.0
  %1814 = vmatprep.subr.mxu0 0.0
  %1815 = vmatpush1.msra.mxu0 0.0
  %1816 = vmatprep.subr.mxu0 0.0
  %1817 = vmatpush1.msra.mxu0 0.0
  %1818 = vmatprep.subr.mxu0 0.0
  %1819 = vmatpush1.msra.mxu0 0.0
  %1820 = vmatprep.subr.mxu0 0.0
  %1821 = vmatpush1.msra.mxu0 0.0
  %1822 = vmatprep.subr.mxu0 0.0
  %1823 = vmatpush1.msra.mxu0 0.0
  %1824 = vmatprep.subr.mxu0 0.0
  %1825 = vmatpush1.msra.mxu0 0.0
  %1826 = vmatprep.subr.mxu0 0.0
  %1827 = vmatpush1.msra.mxu0 0.0
  %1828 = vmatprep.subr.mxu0 0.0
  %1829 = vmatpush1.msra.mxu0 0.0
  %1830 = vmatprep.subr.mxu0 0.0
  %1831 = vmatpush1.msra.mxu0 0.0
  %1832 = vmatprep.subr.mxu0 0.0
  %1833 = vmatpush1.msra.mxu0 0.0
  %1834 = vmatprep.subr.mxu0 0.0
  %1835 = vmatpush1.msra.mxu0 0.0
  %1836 = vmatprep.subr.mxu0 0.0
  %1837 = vmatpush1.msra.mxu0 0.0
  %1838 = vmatprep.subr.mxu0 0.0
  %1839 = vmatpush1.msra.mxu0 0.0
  %1840 = vmatprep.subr.mxu0 0.0
  %1841 = vmatpush1.msra.mxu0 0.0
  %1842 = vmatprep.subr.mxu0 0.0
  %1843 = vmatpush1.msra.mxu0 0.0
  %1844 = vmatprep.subr.mxu0 0.0
  %1845 = vmatpush1.msra.mxu0 0.0
  %1846 = vmatprep.subr.mxu0 0.0
  %1847 = vmatpush1.msra.mxu0 0.0
  %1848 = vmatprep.subr.mxu0 0.0
  %1849 = vmatpush1.msra.mxu0 0.0
  %1850 = vmatprep.mubr.f32.mxu0 0.0
  %1851 = vmatmul.mubr.f32.gmra.mrb[0].mxu0 %v1597
  %v1852 = vpop.f32.mrb[0].mxu0
  %v1853 = vadd.f32 0.0, %v1852
  %v1854 = vpop.f32.mrb[0].mxu0
  %v1855 = vadd.f32 0.0, %v1854
  %1856 = vmatprep.mubr.f32.mxu0 0.0
  %1857 = vmatmul.mubr.f32.gmra.mrb[0].mxu0 %v1600
  %v1858 = vpop.f32.mrb[0].mxu0
  %v1859 = vadd.f32 0.0, %v1858
  %v1860 = vpop.f32.mrb[0].mxu0
  %v1861 = vadd.f32 0.0, %v1860
  %1862 = vmatprep.mubr.f32.mxu0 0.0
  %1863 = vmatmul.mubr.f32.gmra.mrb[0].mxu0 %v1603
  %v1864 = vpop.f32.mrb[0].mxu0
  %v1865 = vadd.f32 0.0, %v1864
  %v1866 = vpop.f32.mrb[0].mxu0
  %v1867 = vadd.f32 0.0, %v1866
  %1868 = vmatprep.mubr.f32.mxu0 0.0
  %1869 = vmatmul.mubr.f32.gmra.mrb[0].mxu0 %v1606
  %v1870 = vpop.f32.mrb[0].mxu0
  %v1871 = vadd.f32 0.0, %v1870
  %v1872 = vpop.f32.mrb[0].mxu0
  %v1873 = vadd.f32 0.0, %v1872
  %1874 = vdwg.mxu0
  %1875 = vmatprep.subr.mxu0 0.0
  %1876 = vmatpush1.msra.mxu0 %v28
  %1877 = vmatprep.subr.mxu0 0.0
  %1878 = vmatpush1.msra.mxu0 %v35
  %1879 = vmatprep.subr.mxu0 0.0
  %1880 = vmatpush1.msra.mxu0 0.0
  %1881 = vmatprep.subr.mxu0 0.0
  %1882 = vmatpush1.msra.mxu0 0.0
  %1883 = vmatprep.subr.mxu0 0.0
  %1884 = vmatpush1.msra.mxu0 0.0
  %1885 = vmatprep.subr.mxu0 0.0
  %1886 = vmatpush1.msra.mxu0 0.0
  %1887 = vmatprep.subr.mxu0 0.0
  %1888 = vmatpush1.msra.mxu0 0.0
  %1889 = vmatprep.subr.mxu0 0.0
  %1890 = vmatpush1.msra.mxu0 0.0
  %1891 = vmatprep.subr.mxu0 0.0
  %1892 = vmatpush1.msra.mxu0 0.0
  %1893 = vmatprep.subr.mxu0 0.0
  %1894 = vmatpush1.msra.mxu0 0.0
  %1895 = vmatprep.subr.mxu0 0.0
  %1896 = vmatpush1.msra.mxu0 0.0
  %1897 = vmatprep.subr.mxu0 0.0
  %1898 = vmatpush1.msra.mxu0 0.0
  %1899 = vmatprep.subr.mxu0 0.0
  %1900 = vmatpush1.msra.mxu0 0.0
  %1901 = vmatprep.subr.mxu0 0.0
  %1902 = vmatpush1.msra.mxu0 0.0
  %1903 = vmatprep.subr.mxu0 0.0
  %1904 = vmatpush1.msra.mxu0 0.0
  %1905 = vmatprep.subr.mxu0 0.0
  %1906 = vmatpush1.msra.mxu0 0.0
  %1907 = vmatprep.subr.mxu0 0.0
  %1908 = vmatpush1.msra.mxu0 0.0
  %1909 = vmatprep.subr.mxu0 0.0
  %1910 = vmatpush1.msra.mxu0 0.0
  %1911 = vmatprep.subr.mxu0 0.0
  %1912 = vmatpush1.msra.mxu0 0.0
  %1913 = vmatprep.subr.mxu0 0.0
  %1914 = vmatpush1.msra.mxu0 0.0
  %1915 = vmatprep.subr.mxu0 0.0
  %1916 = vmatpush1.msra.mxu0 0.0
  %1917 = vmatprep.subr.mxu0 0.0
  %1918 = vmatpush1.msra.mxu0 0.0
  %1919 = vmatprep.subr.mxu0 0.0
  %1920 = vmatpush1.msra.mxu0 0.0
  %1921 = vmatprep.subr.mxu0 0.0
  %1922 = vmatpush1.msra.mxu0 0.0
  %1923 = vmatprep.subr.mxu0 0.0
  %1924 = vmatpush1.msra.mxu0 0.0
  %1925 = vmatprep.subr.mxu0 0.0
  %1926 = vmatpush1.msra.mxu0 0.0
  %1927 = vmatprep.subr.mxu0 0.0
  %1928 = vmatpush1.msra.mxu0 0.0
  %1929 = vmatprep.subr.mxu0 0.0
  %1930 = vmatpush1.msra.mxu0 0.0
  %1931 = vmatprep.subr.mxu0 0.0
  %1932 = vmatpush1.msra.mxu0 0.0
  %1933 = vmatprep.subr.mxu0 0.0
  %1934 = vmatpush1.msra.mxu0 0.0
  %1935 = vmatprep.subr.mxu0 0.0
  %1936 = vmatpush1.msra.mxu0 0.0
  %1937 = vmatprep.subr.mxu0 0.0
  %1938 = vmatpush1.msra.mxu0 0.0
  %1939 = vmatprep.mubr.f32.mxu0 0.0
  %1940 = vmatmul.mubr.f32.gmra.mrb[0].mxu0 %v1597
  %v1941 = vpop.f32.mrb[0].mxu0
  %v1942 = vadd.f32 0.0, %v1941
  %v1943 = vpop.f32.mrb[0].mxu0
  %1944 = vmatprep.mubr.f32.mxu0 0.0
  %1945 = vmatmul.mubr.f32.gmra.mrb[0].mxu0 %v1600
  %v1946 = vpop.f32.mrb[0].mxu0
  %v1947 = vadd.f32 0.0, %v1946
  %v1948 = vpop.f32.mrb[0].mxu0
  %1949 = vmatprep.mubr.f32.mxu0 0.0
  %1950 = vmatmul.mubr.f32.gmra.mrb[0].mxu0 %v1603
  %v1951 = vpop.f32.mrb[0].mxu0
  %v1952 = vadd.f32 0.0, %v1951
  %v1953 = vpop.f32.mrb[0].mxu0
  %1954 = vmatprep.mubr.f32.mxu0 0.0
  %1955 = vmatmul.mubr.f32.gmra.mrb[0].mxu0 %v1606
  %v1956 = vpop.f32.mrb[0].mxu0
  %v1957 = vadd.f32 0.0, %v1956
  %v1958 = vpop.f32.mrb[0].mxu0
  %1959 = vdwg.mxu0
  %v1960 = vmul.f32 %v1675, %v148
  %v1961 = vmul.f32 %v1677, %v149
  %v1962 = vmul.f32 %v1764, %v150
  %v1963 = vmul.f32 %v1766, %v151
  %v1964 = vmul.f32 %v1853, %v152
  %v1965 = vmul.f32 %v1855, %v153
  %v1966 = vmul.f32 %v1942, %v154
  %v1967 = vmul.f32 %v1681, %v155
  %v1968 = vmul.f32 %v1683, %v156
  %v1969 = vmul.f32 %v1770, %v157
  %v1970 = vmul.f32 %v1772, %v158
  %v1971 = vmul.f32 %v1859, %v159
  %v1972 = vmul.f32 %v1861, %v160
  %v1973 = vmul.f32 %v1947, %v161
  %v1974 = vadd.f32 %v1960, %v1967
  %v1975 = vadd.f32 %v1961, %v1968
  %v1976 = vadd.f32 %v1962, %v1969
  %v1977 = vadd.f32 %v1963, %v1970
  %v1978 = vadd.f32 %v1964, %v1971
  %v1979 = vadd.f32 %v1965, %v1972
  %v1980 = vadd.f32 %v1966, %v1973
  %v1981 = vmul.f32 %v1687, %v162
  %v1982 = vmul.f32 %v1689, %v163
  %v1983 = vmul.f32 %v1776, %v164
  %v1984 = vmul.f32 %v1778, %v165
  %v1985 = vmul.f32 %v1865, %v166
  %v1986 = vmul.f32 %v1867, %v167
  %v1987 = vmul.f32 %v1952, %v168
  %v1988 = vadd.f32 %v1974, %v1981
  %v1989 = vadd.f32 %v1975, %v1982
  %v1990 = vadd.f32 %v1976, %v1983
  %v1991 = vadd.f32 %v1977, %v1984
  %v1992 = vadd.f32 %v1978, %v1985
  %v1993 = vadd.f32 %v1979, %v1986
  %v1994 = vadd.f32 %v1980, %v1987
  %v1995 = vadd.f32 %v1988, %v1693
  %v1996 = vadd.f32 %v1989, %v1695
  %v1997 = vadd.f32 %v1990, %v1782
  %v1998 = vadd.f32 %v1991, %v1784
  %v1999 = vadd.f32 %v1992, %v1871
  %v2000 = vadd.f32 %v1993, %v1873
  %v2001 = vadd.f32 %v1994, %v1957
  %2002 = vset.pattern.permute.xlu0 2
  %2003 = vperm.xlu0 %2002, %v169
  %v2004 = vpop.permute.xlu0 %2003
  %v2006 = vadd.f32 %v1995, %v2004
  %v2007 = vadd.f32 %v1996, %v2004
  %v2008 = vadd.f32 %v1997, %v2004
  %v2009 = vadd.f32 %v1998, %v2004
  %v2010 = vadd.f32 %v1999, %v2004
  %v2011 = vadd.f32 %v2000, %v2004
  %v2012 = vadd.f32 %v2001, %v2004
  %2013 = vst [vmem:[%s5 + $0x70] sm:$0xff] %v2006
  %2014 = vst [vmem:[%s5 + $0x78] sm:$0xff] %v2007
  %2015 = vst [vmem:[%s5 + $0x80] sm:$0xff] %v2008
  %2016 = vst [vmem:[%s5 + $0x88] sm:$0xff] %v2009
  %2017 = vst [vmem:[%s5 + $0x90] sm:$0xff] %v2010
  %2018 = vst [vmem:[%s5 + $0x98] sm:$0xff] %v2011
  %2019 = vst [vmem:[%s5 + $0xa0] sm:$0xff] %v2012
  %2020 = vmatprep.subr.mxu0 0.0
  %2021 = vmatpush1.msra.mxu0 %v36
  %2022 = vmatprep.subr.mxu0 0.0
  %2023 = vmatpush1.msra.mxu0 %v37
  %2024 = vmatprep.subr.mxu0 0.0
  %2025 = vmatpush1.msra.mxu0 %v38
  %2026 = vmatprep.subr.mxu0 0.0
  %2027 = vmatpush1.msra.mxu0 %v39
  %2028 = vmatprep.subr.mxu0 0.0
  %2029 = vmatpush1.msra.mxu0 %v40
  %2030 = vmatprep.subr.mxu0 0.0
  %2031 = vmatpush1.msra.mxu0 %v41
  %2032 = vmatprep.subr.mxu0 0.0
  %2033 = vmatpush1.msra.mxu0 %v42
  %2034 = vmatprep.subr.mxu0 0.0
  %2035 = vmatpush1.msra.mxu0 %v43
  %2036 = vmatprep.subr.mxu0 0.0
  %2037 = vmatpush1.msra.mxu0 %v44
  %2038 = vmatprep.subr.mxu0 0.0
  %2039 = vmatpush1.msra.mxu0 %v45
  %2040 = vmatprep.subr.mxu0 0.0
  %2041 = vmatpush1.msra.mxu0 %v46
  %2042 = vmatprep.subr.mxu0 0.0
  %2043 = vmatpush1.msra.mxu0 %v47
  %2044 = vmatprep.subr.mxu0 0.0
  %2045 = vmatpush1.msra.mxu0 %v48
  %2046 = vmatprep.subr.mxu0 0.0
  %2047 = vmatpush1.msra.mxu0 %v49
  %2048 = vmatprep.subr.mxu0 0.0
  %2049 = vmatpush1.msra.mxu0 %v50
  %2050 = vmatprep.subr.mxu0 0.0
  %2051 = vmatpush1.msra.mxu0 %v51
  %2052 = vmatprep.subr.mxu0 0.0
  %2053 = vmatpush1.msra.mxu0 %v52
  %2054 = vmatprep.subr.mxu0 0.0
  %2055 = vmatpush1.msra.mxu0 %v53
  %2056 = vmatprep.subr.mxu0 0.0
  %2057 = vmatpush1.msra.mxu0 %v54
  %2058 = vmatprep.subr.mxu0 0.0
  %2059 = vmatpush1.msra.mxu0 %v55
  %2060 = vmatprep.subr.mxu0 0.0
  %2061 = vmatpush1.msra.mxu0 %v56
  %2062 = vmatprep.subr.mxu0 0.0
  %2063 = vmatpush1.msra.mxu0 %v57
  %2064 = vmatprep.subr.mxu0 0.0
  %2065 = vmatpush1.msra.mxu0 %v58
  %2066 = vmatprep.subr.mxu0 0.0
  %2067 = vmatpush1.msra.mxu0 %v59
  %2068 = vmatprep.subr.mxu0 0.0
  %2069 = vmatpush1.msra.mxu0 %v60
  %2070 = vmatprep.subr.mxu0 0.0
  %2071 = vmatpush1.msra.mxu0 %v61
  %2072 = vmatprep.subr.mxu0 0.0
  %2073 = vmatpush1.msra.mxu0 %v62
  %2074 = vmatprep.subr.mxu0 0.0
  %2075 = vmatpush1.msra.mxu0 %v63
  %2076 = vmatprep.subr.mxu0 0.0
  %2077 = vmatpush1.msra.mxu0 %v64
  %2078 = vmatprep.subr.mxu0 0.0
  %2079 = vmatpush1.msra.mxu0 %v65
  %2080 = vmatprep.subr.mxu0 0.0
  %2081 = vmatpush1.msra.mxu0 %v66
  %2082 = vmatprep.subr.mxu0 0.0
  %2083 = vmatpush1.msra.mxu0 %v67
  %2084 = vmatprep.mubr.f32.mxu0 %v2007
  %2085 = vmatmul.mubr.f32.gmra.mrb[0].mxu0 %v2006
  %v2086 = vpop.f32.mrb[0].mxu0
  %v2087 = vadd.f32 0.0, %v2086
  %v2088 = vpop.f32.mrb[0].mxu0
  %2089 = vdwg.mxu0
  %2090 = vmatprep.subr.mxu0 0.0
  %2091 = vmatpush1.msra.mxu0 %v68
  %2092 = vmatprep.subr.mxu0 0.0
  %2093 = vmatpush1.msra.mxu0 %v69
  %2094 = vmatprep.subr.mxu0 0.0
  %2095 = vmatpush1.msra.mxu0 %v70
  %2096 = vmatprep.subr.mxu0 0.0
  %2097 = vmatpush1.msra.mxu0 %v71
  %2098 = vmatprep.subr.mxu0 0.0
  %2099 = vmatpush1.msra.mxu0 %v72
  %2100 = vmatprep.subr.mxu0 0.0
  %2101 = vmatpush1.msra.mxu0 %v73
  %2102 = vmatprep.subr.mxu0 0.0
  %2103 = vmatpush1.msra.mxu0 %v74
  %2104 = vmatprep.subr.mxu0 0.0
  %2105 = vmatpush1.msra.mxu0 %v75
  %2106 = vmatprep.subr.mxu0 0.0
  %2107 = vmatpush1.msra.mxu0 %v76
  %2108 = vmatprep.subr.mxu0 0.0
  %2109 = vmatpush1.msra.mxu0 %v77
  %2110 = vmatprep.subr.mxu0 0.0
  %2111 = vmatpush1.msra.mxu0 %v78
  %2112 = vmatprep.subr.mxu0 0.0
  %2113 = vmatpush1.msra.mxu0 %v79
  %2114 = vmatprep.subr.mxu0 0.0
  %2115 = vmatpush1.msra.mxu0 %v80
  %2116 = vmatprep.subr.mxu0 0.0
  %2117 = vmatpush1.msra.mxu0 %v81
  %2118 = vmatprep.subr.mxu0 0.0
  %2119 = vmatpush1.msra.mxu0 %v82
  %2120 = vmatprep.subr.mxu0 0.0
  %2121 = vmatpush1.msra.mxu0 %v83
  %2122 = vmatprep.subr.mxu0 0.0
  %2123 = vmatpush1.msra.mxu0 %v84
  %2124 = vmatprep.subr.mxu0 0.0
  %2125 = vmatpush1.msra.mxu0 %v85
  %2126 = vmatprep.subr.mxu0 0.0
  %2127 = vmatpush1.msra.mxu0 %v86
  %2128 = vmatprep.subr.mxu0 0.0
  %2129 = vmatpush1.msra.mxu0 %v87
  %2130 = vmatprep.subr.mxu0 0.0
  %2131 = vmatpush1.msra.mxu0 %v88
  %2132 = vmatprep.subr.mxu0 0.0
  %2133 = vmatpush1.msra.mxu0 %v89
  %2134 = vmatprep.subr.mxu0 0.0
  %2135 = vmatpush1.msra.mxu0 %v90
  %2136 = vmatprep.subr.mxu0 0.0
  %2137 = vmatpush1.msra.mxu0 %v91
  %2138 = vmatprep.subr.mxu0 0.0
  %2139 = vmatpush1.msra.mxu0 %v92
  %2140 = vmatprep.subr.mxu0 0.0
  %2141 = vmatpush1.msra.mxu0 %v93
  %2142 = vmatprep.subr.mxu0 0.0
  %2143 = vmatpush1.msra.mxu0 %v94
  %2144 = vmatprep.subr.mxu0 0.0
  %2145 = vmatpush1.msra.mxu0 %v95
  %2146 = vmatprep.subr.mxu0 0.0
  %2147 = vmatpush1.msra.mxu0 %v96
  %2148 = vmatprep.subr.mxu0 0.0
  %2149 = vmatpush1.msra.mxu0 %v97
  %2150 = vmatprep.subr.mxu0 0.0
  %2151 = vmatpush1.msra.mxu0 %v98
  %2152 = vmatprep.subr.mxu0 0.0
  %2153 = vmatpush1.msra.mxu0 %v99
  %2154 = vmatprep.mubr.f32.mxu0 %v2009
  %2155 = vmatmul.mubr.f32.gmra.mrb[0].mxu0 %v2008
  %v2156 = vpop.f32.mrb[0].mxu0
  %v2157 = vadd.f32 %v2087, %v2156
  %v2158 = vpop.f32.mrb[0].mxu0
  %2159 = vdwg.mxu0
  %2160 = vmatprep.subr.mxu0 0.0
  %2161 = vmatpush1.msra.mxu0 %v100
  %2162 = vmatprep.subr.mxu0 0.0
  %2163 = vmatpush1.msra.mxu0 %v101
  %2164 = vmatprep.subr.mxu0 0.0
  %2165 = vmatpush1.msra.mxu0 %v102
  %2166 = vmatprep.subr.mxu0 0.0
  %2167 = vmatpush1.msra.mxu0 %v103
  %2168 = vmatprep.subr.mxu0 0.0
  %2169 = vmatpush1.msra.mxu0 %v104
  %2170 = vmatprep.subr.mxu0 0.0
  %2171 = vmatpush1.msra.mxu0 %v105
  %2172 = vmatprep.subr.mxu0 0.0
  %2173 = vmatpush1.msra.mxu0 %v106
  %2174 = vmatprep.subr.mxu0 0.0
  %2175 = vmatpush1.msra.mxu0 %v107
  %2176 = vmatprep.subr.mxu0 0.0
  %2177 = vmatpush1.msra.mxu0 %v108
  %2178 = vmatprep.subr.mxu0 0.0
  %2179 = vmatpush1.msra.mxu0 %v109
  %2180 = vmatprep.subr.mxu0 0.0
  %2181 = vmatpush1.msra.mxu0 %v110
  %2182 = vmatprep.subr.mxu0 0.0
  %2183 = vmatpush1.msra.mxu0 %v111
  %2184 = vmatprep.subr.mxu0 0.0
  %2185 = vmatpush1.msra.mxu0 %v112
  %2186 = vmatprep.subr.mxu0 0.0
  %2187 = vmatpush1.msra.mxu0 %v113
  %2188 = vmatprep.subr.mxu0 0.0
  %2189 = vmatpush1.msra.mxu0 %v114
  %2190 = vmatprep.subr.mxu0 0.0
  %2191 = vmatpush1.msra.mxu0 %v115
  %2192 = vmatprep.subr.mxu0 0.0
  %2193 = vmatpush1.msra.mxu0 %v116
  %2194 = vmatprep.subr.mxu0 0.0
  %2195 = vmatpush1.msra.mxu0 %v117
  %2196 = vmatprep.subr.mxu0 0.0
  %2197 = vmatpush1.msra.mxu0 %v118
  %2198 = vmatprep.subr.mxu0 0.0
  %2199 = vmatpush1.msra.mxu0 %v119
  %2200 = vmatprep.subr.mxu0 0.0
  %2201 = vmatpush1.msra.mxu0 %v120
  %2202 = vmatprep.subr.mxu0 0.0
  %2203 = vmatpush1.msra.mxu0 %v121
  %2204 = vmatprep.subr.mxu0 0.0
  %2205 = vmatpush1.msra.mxu0 %v122
  %2206 = vmatprep.subr.mxu0 0.0
  %2207 = vmatpush1.msra.mxu0 %v123
  %2208 = vmatprep.subr.mxu0 0.0
  %2209 = vmatpush1.msra.mxu0 %v124
  %2210 = vmatprep.subr.mxu0 0.0
  %2211 = vmatpush1.msra.mxu0 %v125
  %2212 = vmatprep.subr.mxu0 0.0
  %2213 = vmatpush1.msra.mxu0 %v126
  %2214 = vmatprep.subr.mxu0 0.0
  %2215 = vmatpush1.msra.mxu0 %v127
  %2216 = vmatprep.subr.mxu0 0.0
  %2217 = vmatpush1.msra.mxu0 %v128
  %2218 = vmatprep.subr.mxu0 0.0
  %2219 = vmatpush1.msra.mxu0 %v129
  %2220 = vmatprep.subr.mxu0 0.0
  %2221 = vmatpush1.msra.mxu0 %v130
  %2222 = vmatprep.subr.mxu0 0.0
  %2223 = vmatpush1.msra.mxu0 %v131
  %2224 = vmatprep.mubr.f32.mxu0 %v2011
  %2225 = vmatmul.mubr.f32.gmra.mrb[0].mxu0 %v2010
  %v2226 = vpop.f32.mrb[0].mxu0
  %v2227 = vadd.f32 %v2157, %v2226
  %v2228 = vpop.f32.mrb[0].mxu0
  %2229 = vdwg.mxu0
  %2230 = vmatprep.subr.mxu0 0.0
  %2231 = vmatpush1.msra.mxu0 %v132
  %2232 = vmatprep.subr.mxu0 0.0
  %2233 = vmatpush1.msra.mxu0 %v133
  %2234 = vmatprep.subr.mxu0 0.0
  %2235 = vmatpush1.msra.mxu0 %v134
  %2236 = vmatprep.subr.mxu0 0.0
  %2237 = vmatpush1.msra.mxu0 %v135
  %2238 = vmatprep.subr.mxu0 0.0
  %2239 = vmatpush1.msra.mxu0 %v136
  %2240 = vmatprep.subr.mxu0 0.0
  %2241 = vmatpush1.msra.mxu0 %v137
  %2242 = vmatprep.subr.mxu0 0.0
  %2243 = vmatpush1.msra.mxu0 %v138
  %2244 = vmatprep.subr.mxu0 0.0
  %2245 = vmatpush1.msra.mxu0 %v139
  %2246 = vmatprep.subr.mxu0 0.0
  %2247 = vmatpush1.msra.mxu0 %v140
  %2248 = vmatprep.subr.mxu0 0.0
  %2249 = vmatpush1.msra.mxu0 %v141
  %2250 = vmatprep.subr.mxu0 0.0
  %2251 = vmatpush1.msra.mxu0 %v142
  %2252 = vmatprep.subr.mxu0 0.0
  %2253 = vmatpush1.msra.mxu0 %v143
  %2254 = vmatprep.subr.mxu0 0.0
  %2255 = vmatpush1.msra.mxu0 %v144
  %2256 = vmatprep.subr.mxu0 0.0
  %2257 = vmatpush1.msra.mxu0 %v145
  %2258 = vmatprep.subr.mxu0 0.0
  %2259 = vmatpush1.msra.mxu0 %v146
  %2260 = vmatprep.subr.mxu0 0.0
  %2261 = vmatpush1.msra.mxu0 %v147
  %2262 = vmatprep.subr.mxu0 0.0
  %2263 = vmatpush1.msra.mxu0 0.0
  %2264 = vmatprep.subr.mxu0 0.0
  %2265 = vmatpush1.msra.mxu0 0.0
  %2266 = vmatprep.subr.mxu0 0.0
  %2267 = vmatpush1.msra.mxu0 0.0
  %2268 = vmatprep.subr.mxu0 0.0
  %2269 = vmatpush1.msra.mxu0 0.0
  %2270 = vmatprep.subr.mxu0 0.0
  %2271 = vmatpush1.msra.mxu0 0.0
  %2272 = vmatprep.subr.mxu0 0.0
  %2273 = vmatpush1.msra.mxu0 0.0
  %2274 = vmatprep.subr.mxu0 0.0
  %2275 = vmatpush1.msra.mxu0 0.0
  %2276 = vmatprep.subr.mxu0 0.0
  %2277 = vmatpush1.msra.mxu0 0.0
  %2278 = vmatprep.subr.mxu0 0.0
  %2279 = vmatpush1.msra.mxu0 0.0
  %2280 = vmatprep.subr.mxu0 0.0
  %2281 = vmatpush1.msra.mxu0 0.0
  %2282 = vmatprep.subr.mxu0 0.0
  %2283 = vmatpush1.msra.mxu0 0.0
  %2284 = vmatprep.subr.mxu0 0.0
  %2285 = vmatpush1.msra.mxu0 0.0
  %2286 = vmatprep.subr.mxu0 0.0
  %2287 = vmatpush1.msra.mxu0 0.0
  %2288 = vmatprep.subr.mxu0 0.0
  %2289 = vmatpush1.msra.mxu0 0.0
  %2290 = vmatprep.subr.mxu0 0.0
  %2291 = vmatpush1.msra.mxu0 0.0
  %2292 = vmatprep.subr.mxu0 0.0
  %2293 = vmatpush1.msra.mxu0 0.0
  %2294 = vmatprep.mubr.f32.mxu0 0.0
  %2295 = vmatmul.mubr.f32.gmra.mrb[0].mxu0 %v2012
  %v2296 = vpop.f32.mrb[0].mxu0
  %v2297 = vadd.f32 %v2227, %v2296
  %v2298 = vpop.f32.mrb[0].mxu0
  %2299 = vdwg.mxu0
  %s2300 = scalar_lea.vmem %s6, 16
  %2301 = vst.msk [vmem:[%s2300] sm:$0xff] %vm880, %v2297
  // Predicated region
  $region22: #{mano_forward.3} parent=0 // pred_check
    _
  $region23: #{mano_forward.3} parent=0 // pred_check_branch
    %2303 = sbr.rel (0) target = $region25
  $region24: #{mano_forward.3} parent=0 // pred_region
    _
  $region25: #{mano_forward.3} parent=0 // pred_fallthru
    _
  // Predicated region
  $region26: #{mano_forward.3} parent=0 // pred_check
    _
  $region27: #{mano_forward.3} parent=0 // pred_check_branch
    %2305 = sbr.rel (0) target = $region29
  $region28: #{mano_forward.3} parent=0 // pred_region
    _
  $region29: #{mano_forward.3} parent=0 // pred_fallthru
    _
  // Predicated region
  $region30: #{mano_forward.3} parent=0 // pred_check
    _
  $region31: #{mano_forward.3} parent=0 // pred_check_branch
    %2307 = sbr.rel (0) target = $region33
  $region32: #{mano_forward.3} parent=0 // pred_region
    _
  $region33: #{mano_forward.3} parent=0 // pred_fallthru
    _
  // Predicated region
  $region34: #{mano_forward.3} parent=0 // pred_check
    _
  $region35: #{mano_forward.3} parent=0 // pred_check_branch
    %2309 = sbr.rel (0) target = $region37
  $region36: #{mano_forward.3} parent=0 // pred_region
    _
  $region37: #{mano_forward.3} parent=0 // pred_fallthru
    _

</llo_original>
